<compile_context>
chip_gen: v7x
topology: tpu7x:2x2x1
jax: 0.10.0
libtpu: 0.0.40
codegen_flags: <defaults>
</compile_context>

<pallas_src>
import functools

import jax
import jax.numpy as jnp
from jax.experimental import pallas as pl
from jax.experimental.pallas import tpu as pltpu

LANE = 128


# ----------------------------------------------------------------------------
# Kernel 1: head = 1x1 conv (BN folded) + bias + ReLU at native resolution.
# ----------------------------------------------------------------------------
def head_kernel(x_ref, w_ref, b_ref, o_ref):
    h0 = jnp.dot(x_ref[...], w_ref[...], preferred_element_type=jnp.float32)
    o_ref[...] = jnp.maximum(h0 + b_ref[...], 0.0).astype(o_ref.dtype)


# ----------------------------------------------------------------------------
# Kernel 2: fused 3-layer per-pixel MLP on [s8|s16] and the upsampled head.
# ----------------------------------------------------------------------------
def sghrq_mlp_kernel(sh_ref, h0_ref, w1sh_ref, w1a_ref, w2_ref, w3_ref,
                     b_ref, o_ref):
    f32 = jnp.float32
    bf16 = jnp.bfloat16

    b = b_ref[...]                 # (3, 128) f32: rows = b1, b2, b3
    b1, b2, b3 = b[0:1, :], b[1:2, :], b[2:3, :]

    # layer 1: virtual channel-concat [s8|s16 , aspp] as two partial matmuls
    h1 = jnp.dot(sh_ref[...], w1sh_ref[...], preferred_element_type=f32)
    h1 = h1 + jnp.dot(h0_ref[...], w1a_ref[...], preferred_element_type=f32)
    h1 = jnp.maximum(h1 + b1, 0.0)

    # layer 2
    h2 = jnp.dot(h1.astype(bf16), w2_ref[...], preferred_element_type=f32)
    h2 = jnp.maximum(h2 + b2, 0.0)

    # layer 3 (output lanes padded to 128; wrapper slices to num_classes)
    o = jnp.dot(h2.astype(bf16), w3_ref[...], preferred_element_type=f32)
    o_ref[...] = (o + b3).astype(o_ref.dtype)


# ----------------------------------------------------------------------------
# Tiling helper
# ----------------------------------------------------------------------------
def _pick_tile(n, cap=2048):
    """Pick a token tile (multiple of 128, <= cap).  Prefer a tile that
    divides the 128-aligned token count so no second row-padding copy of the
    input slabs is materialized in HBM; fall back to balanced tiles with a
    minimal pad otherwise.  Returns (tile, padded_token_count)."""
    n_pad = pl.cdiv(n, LANE) * LANE
    blocks = n_pad // LANE
    cap_blocks = max(1, cap // LANE)

    best = 1
    d = 1
    while d * d <= blocks:
        if blocks % d == 0:
            for cand in (d, blocks // d):
                if cand <= cap_blocks and cand > best:
                    best = cand
        d += 1
    tm = best * LANE

    # Divisors forced very small tiles -> balanced tiling with minimal pad.
    if tm * 4 < min(cap, n_pad):
        nblocks = pl.cdiv(n_pad, cap)
        tm = pl.cdiv(blocks, nblocks) * LANE
        n_pad = tm * nblocks
    return tm, n_pad


# ----------------------------------------------------------------------------
# pallas_call wrappers
# ----------------------------------------------------------------------------
def head_pallas(x, wh, bh, *, cap_tm=512):
    """x: (N, 640) bf16 tokens at the deep feature's native resolution.
    Returns (N, 256) bf16 head activations."""
    n, cin = x.shape
    cout = wh.shape[1]
    tm, n_pad = _pick_tile(n, cap_tm)
    if n_pad != n:
        x = jnp.pad(x, ((0, n_pad - n), (0, 0)))

    out = pl.pallas_call(
        head_kernel,
        out_shape=jax.ShapeDtypeStruct((n_pad, cout), jnp.bfloat16),
        grid=(n_pad // tm,),
        in_specs=[
            pl.BlockSpec((tm, cin), lambda i: (i, 0)),
            pl.BlockSpec((cin, cout), lambda i: (0, 0)),
            pl.BlockSpec((1, cout), lambda i: (0, 0)),
        ],
        out_specs=pl.BlockSpec((tm, cout), lambda i: (i, 0)),
        compiler_params=pltpu.CompilerParams(
            dimension_semantics=("parallel",)),
    )(x, wh, bh)
    return out[:n]


def fused_mlp(sh_t, h0_t, prep, *, cap_tm=2048):
    """sh_t: (N, 128) bf16 [s8|s16] slab; h0_t: (N, 256) bf16 upsampled head.
    Returns (N, 128) bf16 padded logits."""
    n = sh_t.shape[0]
    tm, n_pad = _pick_tile(n, cap_tm)
    if n_pad != n:
        pad = ((0, n_pad - n), (0, 0))
        sh_t = jnp.pad(sh_t, pad)
        h0_t = jnp.pad(h0_t, pad)

    csh = sh_t.shape[1]
    ca = h0_t.shape[1]
    hid = prep["w2"].shape[0]
    cout_pad = prep["w3"].shape[1]

    tok = lambda c: pl.BlockSpec((tm, c), lambda i: (i, 0))
    full = lambda r, c: pl.BlockSpec((r, c), lambda i: (0, 0))

    out = pl.pallas_call(
        sghrq_mlp_kernel,
        out_shape=jax.ShapeDtypeStruct((n_pad, cout_pad), jnp.bfloat16),
        grid=(n_pad // tm,),
        in_specs=[
            tok(csh), tok(ca),
            full(csh, hid), full(ca, hid),
            full(hid, hid), full(hid, cout_pad),
            full(3, hid),
        ],
        out_specs=pl.BlockSpec((tm, cout_pad), lambda i: (i, 0)),
        compiler_params=pltpu.CompilerParams(
            dimension_semantics=("parallel",)),
    )(sh_t, h0_t,
      prep["w1_sh"], prep["w1_aspp"], prep["w2"], prep["w3"], prep["b_stack"])
    return out[:n]


# ----------------------------------------------------------------------------
# Glue (plain JAX): layout plumbing, nearest resize, one-time parameter prep
# ----------------------------------------------------------------------------
def nearest_resize_nhwc(x, h, w):
    """Nearest-neighbour integer upsample of an NHWC tensor to (h, w)."""
    b, fh, fw, c = x.shape
    assert h % fh == 0 and w % fw == 0, (x.shape, h, w)
    ry, rx = h // fh, w // fw
    x = jnp.broadcast_to(x[:, :, None, :, None, :], (b, fh, ry, fw, rx, c))
    return x.reshape(b, h, w, c)


def init_params(key, *, c_shallow=64, head_cin=640, head_cout=256,
                hidden=128, num_classes=19):
    ks = jax.random.split(key, 12)
    p = {}
    # head: Conv2d(640, 256, 1) + BatchNorm2d(256)
    p["head_w"] = jax.random.normal(ks[0], (head_cin, head_cout),
                                    jnp.float32) / jnp.sqrt(float(head_cin))
    p["head_conv_b"] = 0.01 * jax.random.normal(ks[1], (head_cout,), jnp.float32)
    p["bn_gamma"] = 1.0 + 0.01 * jax.random.normal(ks[2], (head_cout,), jnp.float32)
    p["bn_beta"] = 0.01 * jax.random.normal(ks[3], (head_cout,), jnp.float32)
    p["bn_mean"] = 0.01 * jax.random.normal(ks[4], (head_cout,), jnp.float32)
    p["bn_var"] = jnp.abs(1.0 + 0.01 * jax.random.normal(ks[5], (head_cout,),
                                                         jnp.float32))
    # after_cat MLP (num_layer=2): (C8 + C16 + 256) -> hidden -> hidden -> 19
    in_dim = c_shallow + c_shallow + head_cout
    p["w1"] = jax.random.normal(ks[6], (in_dim, hidden),
                                jnp.float32) / jnp.sqrt(float(in_dim))
    p["b1"] = jnp.zeros((1, hidden), jnp.float32)
    p["w2"] = jax.random.normal(ks[7], (hidden, hidden),
                                jnp.float32) / jnp.sqrt(float(hidden))
    p["b2"] = jnp.zeros((1, hidden), jnp.float32)
    p["w3"] = jax.random.normal(ks[8], (hidden, num_classes),
                                jnp.float32) / jnp.sqrt(float(hidden))
    p["b3"] = jnp.zeros((1, num_classes), jnp.float32)
    return p


def prepare_params(p, *, c_s8=64, c_s16=64, eps=1e-5, lane=LANE):
    """One-time (outside jit): fold eval-mode BN into the head conv weight,
    split W1 into the [s8|s16] block and the aspp block, pad the classifier
    to a 128-lane output, stack the MLP biases into one operand, and cast
    matmul operands to bf16 (biases stay f32 for the VPU epilogue)."""
    scale = p["bn_gamma"] / jnp.sqrt(p["bn_var"] + eps)
    wh = (p["head_w"] * scale[None, :]).astype(jnp.bfloat16)
    bh = ((p["head_conv_b"] - p["bn_mean"]) * scale + p["bn_beta"])
    bh = bh.reshape(1, -1).astype(jnp.float32)

    w1 = p["w1"]
    w1_sh = w1[:c_s8 + c_s16].astype(jnp.bfloat16)      # [s8 | s16] rows
    w1_aspp = w1[c_s8 + c_s16:].astype(jnp.bfloat16)    # aspp rows

    hid = p["w2"].shape[0]
    cout = p["w3"].shape[1]
    pad = (-cout) % lane
    w3 = jnp.pad(p["w3"], ((0, 0), (0, pad))).astype(jnp.bfloat16)
    b3 = jnp.pad(p["b3"], ((0, 0), (0, pad))).astype(jnp.float32)
    assert w3.shape[1] == hid, "bias stacking assumes hidden == padded cout"

    b_stack = jnp.concatenate(
        [p["b1"].astype(jnp.float32), p["b2"].astype(jnp.float32), b3], axis=0)

    return {
        "wh": wh, "bh": bh,
        "w1_sh": w1_sh, "w1_aspp": w1_aspp,
        "w2": p["w2"].astype(jnp.bfloat16),
        "w3": w3,
        "b_stack": b_stack,   # (3, 128) f32: b1, b2, b3(padded)
    }


@functools.partial(jax.jit, static_argnames=("num_classes",))
def sghrq_forward(deep_feat, shallow_feat16, shallow_feat8, prep,
                  *, num_classes=19):
    b = deep_feat.shape[0]
    hd, wd = deep_feat.shape[-2], deep_feat.shape[-1]
    h, w = shallow_feat8.shape[-2], shallow_feat8.shape[-1]

    # Cast to bf16 BEFORE the NCHW->NHWC transpose / resize so wrapper-side
    # intermediates are half-width in HBM.
    deep = jnp.transpose(deep_feat.astype(jnp.bfloat16), (0, 2, 3, 1))
    s16 = jnp.transpose(shallow_feat16.astype(jnp.bfloat16), (0, 2, 3, 1))
    s8 = jnp.transpose(shallow_feat8.astype(jnp.bfloat16), (0, 2, 3, 1))

    # Head at the deep feature's NATIVE resolution (1x1 conv commutes with
    # nearest upsample: head(upsample(x)) == upsample(head(x))).
    n_deep = b * hd * wd
    h0 = head_pallas(deep.reshape(n_deep, deep.shape[-1]),
                     prep["wh"], prep["bh"])               # (n_deep, 256) bf16
    h0 = h0.reshape(b, hd, wd, -1)

    # Nearest-upsample the 256-ch head output and shallow16 to (h, w).
    h0u = nearest_resize_nhwc(h0, h, w)
    s16u = nearest_resize_nhwc(s16, h, w)

    # Single K=128 slab for the shallow features.
    sh = jnp.concatenate([s8, s16u], axis=-1)

    n = b * h * w
    out = fused_mlp(sh.reshape(n, sh.shape[-1]),
                    h0u.reshape(n, h0u.shape[-1]), prep)   # (n, 128) bf16
    out = out[:, :num_classes].astype(jnp.float32)
    out = out.reshape(b, h, w, num_classes)                # NHWC
    return jnp.transpose(out, (0, 3, 1, 2))                # NCHW


# ----------------------------------------------------------------------------
# Pure-JAX f32 reference for a tolerance check (same nearest-resize approx).
# ----------------------------------------------------------------------------
def reference_forward(deep_feat, shallow_feat16, shallow_feat8, p,
                      num_classes=19, eps=1e-5):
    h, w = shallow_feat8.shape[-2], shallow_feat8.shape[-1]
    deep = jnp.transpose(deep_feat, (0, 2, 3, 1))
    s16 = jnp.transpose(shallow_feat16, (0, 2, 3, 1))
    s8 = jnp.transpose(shallow_feat8, (0, 2, 3, 1))
    scale = p["bn_gamma"] / jnp.sqrt(p["bn_var"] + eps)
    aspp = jnp.maximum(
        (deep @ p["head_w"] + p["head_conv_b"] - p["bn_mean"]) * scale
        + p["bn_beta"], 0.0)
    asppu = nearest_resize_nhwc(aspp, h, w)
    s16u = nearest_resize_nhwc(s16, h, w)
    x = jnp.concatenate([s8, s16u, asppu], axis=-1)
    h1 = jnp.maximum(x @ p["w1"] + p["b1"], 0.0)
    h2 = jnp.maximum(h1 @ p["w2"] + p["b2"], 0.0)
    o = h2 @ p["w3"] + p["b3"]
    return jnp.transpose(o, (0, 3, 1, 2))


if __name__ == "__main__":
    key = jax.random.PRNGKey(0)
    k_deep, k_s16, k_s8, k_param = jax.random.split(key, 4)

    B = 2
    deep_feat = jax.random.normal(k_deep, (B, 640, 8, 8), jnp.float32)
    shallow_feat16 = jax.random.normal(k_s16, (B, 64, 8, 8), jnp.float32)
    shallow_feat8 = jax.random.normal(k_s8, (B, 64, 16, 16), jnp.float32)

    params = init_params(k_param)
    prep = prepare_params(params)   # one-time fold / split / pad / bf16 cast

    res = sghrq_forward(deep_feat, shallow_feat16, shallow_feat8, prep)
    res = jax.block_until_ready(res)

    assert res.shape == (B, 19, 16, 16), res.shape
    assert bool(jnp.all(jnp.isfinite(res)))

    # bf16-tolerance check against the pure-JAX f32 reference.
    ref = reference_forward(deep_feat, shallow_feat16, shallow_feat8, params)
    err = float(jnp.max(jnp.abs(res - ref)))
    scale = float(jnp.max(jnp.abs(ref))) + 1e-6
    assert err <= 0.1 * scale, (err, scale)

    print("KERNEL_OK")
</pallas_src>

<mosaic_0001>
module attributes {stable_mosaic.version = 11 : i64} {
  func.func @head_kernel(%arg0: i32, %arg1: memref<128x640xbf16, #tpu.memory_space<vmem>>, %arg2: memref<640x256xbf16, #tpu.memory_space<vmem>>, %arg3: memref<1x256xf32, #tpu.memory_space<vmem>>, %arg4: memref<128x256xbf16, #tpu.memory_space<vmem>>) attributes {dimension_semantics = [#tpu.dimension_semantics<parallel>], iteration_bounds = array<i64: 1>, scalar_prefetch = 0 : i64, scratch_operands = 0 : i64, tpu.core_type = #tpu.core_type<tc>, window_params = [{transform_indices = @transform_0, window_bounds = array<i64: 128, 640>}, {pipeline_mode = #tpu.pipeline_mode<synchronous>, transform_indices = @transform_1, window_bounds = array<i64: 640, 256>}, {pipeline_mode = #tpu.pipeline_mode<synchronous>, transform_indices = @transform_2, window_bounds = array<i64: 1, 256>}, {transform_indices = @transform_3, window_bounds = array<i64: 128, 256>}]} {
    %c0 = arith.constant 0 : index
    %c0_0 = arith.constant 0 : index
    %0 = vector.load %arg1[%c0, %c0_0] : memref<128x640xbf16, #tpu.memory_space<vmem>>, vector<128x640xbf16>
    %c0_1 = arith.constant 0 : index
    %c0_2 = arith.constant 0 : index
    %1 = vector.load %arg2[%c0_1, %c0_2] : memref<640x256xbf16, #tpu.memory_space<vmem>>, vector<640x256xbf16>
    %cst = arith.constant dense<0.000000e+00> : vector<128x256xf32>
    %2 = tpu.matmul %0, %1, %cst {dimension_numbers = #tpu.dot_dimension_numbers<[1], [0], [0], [1], [0, 0, 1, 1], [], []>} : vector<128x640xbf16>, vector<640x256xbf16>, vector<128x256xf32> -> vector<128x256xf32>
    %c0_3 = arith.constant 0 : index
    %c0_4 = arith.constant 0 : index
    %3 = vector.load %arg3[%c0_3, %c0_4] : memref<1x256xf32, #tpu.memory_space<vmem>>, vector<1x256xf32>
    %4 = vector.broadcast %3 : vector<1x256xf32> to vector<128x256xf32>
    %5 = arith.addf %2, %4 : vector<128x256xf32>
    %cst_5 = arith.constant 0.000000e+00 : f32
    %6 = vector.broadcast %cst_5 : f32 to vector<128x256xf32>
    %7 = arith.maximumf %5, %6 : vector<128x256xf32>
    %8 = arith.truncf %7 : vector<128x256xf32> to vector<128x256xbf16>
    %c0_6 = arith.constant 0 : index
    %c0_7 = arith.constant 0 : index
    %9 = vector.load %arg4[%c0_6, %c0_7] : memref<128x256xbf16, #tpu.memory_space<vmem>>, vector<128x256xbf16>
    tpu.vector_store %arg4[%c0_6, %c0_7], %8 {strides = array<i32>} : memref<128x256xbf16, #tpu.memory_space<vmem>>, vector<128x256xbf16>,
    return
  }
  func.func @transform_0(%arg0: i32) -> (i32, i32) {
    %c0_i32 = arith.constant 0 : i32
    %c0_i32_0 = arith.constant 0 : i32
    return %arg0, %c0_i32 : i32, i32
  }
  func.func @transform_1(%arg0: i32) -> (i32, i32) {
    %c0_i32 = arith.constant 0 : i32
    %c0_i32_0 = arith.constant 0 : i32
    %c0_i32_1 = arith.constant 0 : i32
    return %c0_i32, %c0_i32_0 : i32, i32
  }
  func.func @transform_2(%arg0: i32) -> (i32, i32) {
    %c0_i32 = arith.constant 0 : i32
    %c0_i32_0 = arith.constant 0 : i32
    %c0_i32_1 = arith.constant 0 : i32
    return %c0_i32, %c0_i32_0 : i32, i32
  }
  func.func @transform_3(%arg0: i32) -> (i32, i32) {
    %c0_i32 = arith.constant 0 : i32
    %c0_i32_0 = arith.constant 0 : i32
    return %arg0, %c0_i32 : i32, i32
  }
}

module attributes {stable_mosaic.version = 11 : i64} {
  func.func @sghrq_mlp_kernel(%arg0: i32, %arg1: memref<512x128xbf16, #tpu.memory_space<vmem>>, %arg2: memref<512x256xbf16, #tpu.memory_space<vmem>>, %arg3: memref<128x128xbf16, #tpu.memory_space<vmem>>, %arg4: memref<256x128xbf16, #tpu.memory_space<vmem>>, %arg5: memref<128x128xbf16, #tpu.memory_space<vmem>>, %arg6: memref<128x128xbf16, #tpu.memory_space<vmem>>, %arg7: memref<3x128xf32, #tpu.memory_space<vmem>>, %arg8: memref<512x128xbf16, #tpu.memory_space<vmem>>) attributes {dimension_semantics = [#tpu.dimension_semantics<parallel>], iteration_bounds = array<i64: 1>, scalar_prefetch = 0 : i64, scratch_operands = 0 : i64, tpu.core_type = #tpu.core_type<tc>, window_params = [{transform_indices = @transform_0, window_bounds = array<i64: 512, 128>}, {transform_indices = @transform_1, window_bounds = array<i64: 512, 256>}, {pipeline_mode = #tpu.pipeline_mode<synchronous>, transform_indices = @transform_2, window_bounds = array<i64: 128, 128>}, {pipeline_mode = #tpu.pipeline_mode<synchronous>, transform_indices = @transform_3, window_bounds = array<i64: 256, 128>}, {pipeline_mode = #tpu.pipeline_mode<synchronous>, transform_indices = @transform_4, window_bounds = array<i64: 128, 128>}, {pipeline_mode = #tpu.pipeline_mode<synchronous>, transform_indices = @transform_5, window_bounds = array<i64: 128, 128>}, {pipeline_mode = #tpu.pipeline_mode<synchronous>, transform_indices = @transform_6, window_bounds = array<i64: 3, 128>}, {transform_indices = @transform_7, window_bounds = array<i64: 512, 128>}]} {
    %c0 = arith.constant 0 : index
    %c0_0 = arith.constant 0 : index
    %0 = vector.load %arg7[%c0, %c0_0] : memref<3x128xf32, #tpu.memory_space<vmem>>, vector<3x128xf32>
    %1 = vector.extract_strided_slice %0 {offsets = [0, 0], sizes = [1, 128], strides = [1, 1]} : vector<3x128xf32> to vector<1x128xf32>
    %2 = vector.extract_strided_slice %0 {offsets = [1, 0], sizes = [1, 128], strides = [1, 1]} : vector<3x128xf32> to vector<1x128xf32>
    %3 = vector.extract_strided_slice %0 {offsets = [2, 0], sizes = [1, 128], strides = [1, 1]} : vector<3x128xf32> to vector<1x128xf32>
    %c0_1 = arith.constant 0 : index
    %c0_2 = arith.constant 0 : index
    %4 = vector.load %arg1[%c0_1, %c0_2] : memref<512x128xbf16, #tpu.memory_space<vmem>>, vector<512x128xbf16>
    %c0_3 = arith.constant 0 : index
    %c0_4 = arith.constant 0 : index
    %5 = vector.load %arg3[%c0_3, %c0_4] : memref<128x128xbf16, #tpu.memory_space<vmem>>, vector<128x128xbf16>
    %cst = arith.constant dense<0.000000e+00> : vector<512x128xf32>
    %6 = tpu.matmul %4, %5, %cst {dimension_numbers = #tpu.dot_dimension_numbers<[1], [0], [0], [1], [0, 0, 1, 1], [], []>} : vector<512x128xbf16>, vector<128x128xbf16>, vector<512x128xf32> -> vector<512x128xf32>
    %c0_5 = arith.constant 0 : index
    %c0_6 = arith.constant 0 : index
    %7 = vector.load %arg2[%c0_5, %c0_6] : memref<512x256xbf16, #tpu.memory_space<vmem>>, vector<512x256xbf16>
    %c0_7 = arith.constant 0 : index
    %c0_8 = arith.constant 0 : index
    %8 = vector.load %arg4[%c0_7, %c0_8] : memref<256x128xbf16, #tpu.memory_space<vmem>>, vector<256x128xbf16>
    %cst_9 = arith.constant dense<0.000000e+00> : vector<512x128xf32>
    %9 = tpu.matmul %7, %8, %cst_9 {dimension_numbers = #tpu.dot_dimension_numbers<[1], [0], [0], [1], [0, 0, 1, 1], [], []>} : vector<512x256xbf16>, vector<256x128xbf16>, vector<512x128xf32> -> vector<512x128xf32>
    %10 = arith.addf %6, %9 : vector<512x128xf32>
    %11 = vector.broadcast %1 : vector<1x128xf32> to vector<512x128xf32>
    %12 = arith.addf %10, %11 : vector<512x128xf32>
    %cst_10 = arith.constant 0.000000e+00 : f32
    %13 = vector.broadcast %cst_10 : f32 to vector<512x128xf32>
    %14 = arith.maximumf %12, %13 : vector<512x128xf32>
    %15 = arith.truncf %14 : vector<512x128xf32> to vector<512x128xbf16>
    %c0_11 = arith.constant 0 : index
    %c0_12 = arith.constant 0 : index
    %16 = vector.load %arg5[%c0_11, %c0_12] : memref<128x128xbf16, #tpu.memory_space<vmem>>, vector<128x128xbf16>
    %cst_13 = arith.constant dense<0.000000e+00> : vector<512x128xf32>
    %17 = tpu.matmul %15, %16, %cst_13 {dimension_numbers = #tpu.dot_dimension_numbers<[1], [0], [0], [1], [0, 0, 1, 1], [], []>} : vector<512x128xbf16>, vector<128x128xbf16>, vector<512x128xf32> -> vector<512x128xf32>
    %18 = vector.broadcast %2 : vector<1x128xf32> to vector<512x128xf32>
    %19 = arith.addf %17, %18 : vector<512x128xf32>
    %cst_14 = arith.constant 0.000000e+00 : f32
    %20 = vector.broadcast %cst_14 : f32 to vector<512x128xf32>
    %21 = arith.maximumf %19, %20 : vector<512x128xf32>
    %22 = arith.truncf %21 : vector<512x128xf32> to vector<512x128xbf16>
    %c0_15 = arith.constant 0 : index
    %c0_16 = arith.constant 0 : index
    %23 = vector.load %arg6[%c0_15, %c0_16] : memref<128x128xbf16, #tpu.memory_space<vmem>>, vector<128x128xbf16>
    %cst_17 = arith.constant dense<0.000000e+00> : vector<512x128xf32>
    %24 = tpu.matmul %22, %23, %cst_17 {dimension_numbers = #tpu.dot_dimension_numbers<[1], [0], [0], [1], [0, 0, 1, 1], [], []>} : vector<512x128xbf16>, vector<128x128xbf16>, vector<512x128xf32> -> vector<512x128xf32>
    %25 = vector.broadcast %3 : vector<1x128xf32> to vector<512x128xf32>
    %26 = arith.addf %24, %25 : vector<512x128xf32>
    %27 = arith.truncf %26 : vector<512x128xf32> to vector<512x128xbf16>
    %c0_18 = arith.constant 0 : index
    %c0_19 = arith.constant 0 : index
    %28 = vector.load %arg8[%c0_18, %c0_19] : memref<512x128xbf16, #tpu.memory_space<vmem>>, vector<512x128xbf16>
    tpu.vector_store %arg8[%c0_18, %c0_19], %27 {strides = array<i32>} : memref<512x128xbf16, #tpu.memory_space<vmem>>, vector<512x128xbf16>,
    return
  }
  func.func @transform_0(%arg0: i32) -> (i32, i32) {
    %c0_i32 = arith.constant 0 : i32
    %c0_i32_0 = arith.constant 0 : i32
    return %arg0, %c0_i32 : i32, i32
  }
  func.func @transform_1(%arg0: i32) -> (i32, i32) {
    %c0_i32 = arith.constant 0 : i32
    %c0_i32_0 = arith.constant 0 : i32
    return %arg0, %c0_i32 : i32, i32
  }
  func.func @transform_2(%arg0: i32) -> (i32, i32) {
    %c0_i32 = arith.constant 0 : i32
    %c0_i32_0 = arith.constant 0 : i32
    %c0_i32_1 = arith.constant 0 : i32
    return %c0_i32, %c0_i32_0 : i32, i32
  }
  func.func @transform_3(%arg0: i32) -> (i32, i32) {
    %c0_i32 = arith.constant 0 : i32
    %c0_i32_0 = arith.constant 0 : i32
    %c0_i32_1 = arith.constant 0 : i32
    return %c0_i32, %c0_i32_0 : i32, i32
  }
  func.func @transform_4(%arg0: i32) -> (i32, i32) {
    %c0_i32 = arith.constant 0 : i32
    %c0_i32_0 = arith.constant 0 : i32
    %c0_i32_1 = arith.constant 0 : i32
    return %c0_i32, %c0_i32_0 : i32, i32
  }
  func.func @transform_5(%arg0: i32) -> (i32, i32) {
    %c0_i32 = arith.constant 0 : i32
    %c0_i32_0 = arith.constant 0 : i32
    %c0_i32_1 = arith.constant 0 : i32
    return %c0_i32, %c0_i32_0 : i32, i32
  }
  func.func @transform_6(%arg0: i32) -> (i32, i32) {
    %c0_i32 = arith.constant 0 : i32
    %c0_i32_0 = arith.constant 0 : i32
    %c0_i32_1 = arith.constant 0 : i32
    return %c0_i32, %c0_i32_0 : i32, i32
  }
  func.func @transform_7(%arg0: i32) -> (i32, i32) {
    %c0_i32 = arith.constant 0 : i32
    %c0_i32_0 = arith.constant 0 : i32
    return %arg0, %c0_i32 : i32, i32
  }
}

</mosaic_0001>

<llo_original>
// kernel: sghrq_forward.2
$region0: #{sghrq_forward.2}
  #allocation0 [shape = 'u32[]', space=smem, size = 0x4, offset = 0x4, fixed_abs, tag = 'smem constant byte address 0x4 - core index']
  #allocation1 [shape = 'u32[144,128]{1,0:T(1,128)}', space=vmem, size = 0x12000, scoped, tag = 'internal scratch']
  %s0 = inlined_call_operand.vmem [shape: bf16[128,640], index: 0, kind: input, shape index: {}]
  %s1 = inlined_call_operand.vmem [shape: bf16[640,256], index: 1, kind: input, shape index: {}]
  %s2 = inlined_call_operand.vmem [shape: f32[1,256], index: 2, kind: input, shape index: {}]
  %s3 = inlined_call_operand.vmem [shape: bf16[128,256], index: 3, kind: output, shape index: {}]
  %s4 = sld [smem:[#allocation0]]
  $region22: #{sghrq_forward.2} parent=0
    _
  %s6 = ssub.s32 1, %s4
  %s7 = scalar_select 0, %s6, %s4
  // Predicated region
  $region2: #{sghrq_forward.2} parent=0 // pred_check
    _
  $region3: #{sghrq_forward.2} parent=0 // pred_check_branch
    %9 = sbr.rel (0) target = $region5
  $region4: #{sghrq_forward.2} parent=0 // pred_region
    _
  $region5: #{sghrq_forward.2} parent=0 // pred_fallthru
    _
  // Predicated region
  $region6: #{sghrq_forward.2} parent=0 // pred_check
    _
  $region7: #{sghrq_forward.2} parent=0 // pred_check_branch
    %11 = sbr.rel (0) target = $region9
  $region8: #{sghrq_forward.2} parent=0 // pred_region
    _
  $region9: #{sghrq_forward.2} parent=0 // pred_fallthru
    _
  // Predicated region
  $region10: #{sghrq_forward.2} parent=0 // pred_check
    _
  $region11: #{sghrq_forward.2} parent=0 // pred_check_branch
    %13 = sbr.rel (0) target = $region13
  $region12: #{sghrq_forward.2} parent=0 // pred_region
    _
  $region13: #{sghrq_forward.2} parent=0 // pred_fallthru
    _
  %v15 = vld [vmem:[%s0] sm:$0xff]
  %v16 = vld [vmem:[%s0 + $0x8] sm:$0xff]
  %v17 = vld [vmem:[%s0 + $0x10] sm:$0xf]
  %v18 = vld [vmem:[%s0 + $0x14] sm:$0xff]
  %v19 = vld [vmem:[%s0 + $0x1c] sm:$0xff]
  %v20 = vld [vmem:[%s0 + $0x24] sm:$0xf]
  %v21 = vld [vmem:[%s0 + $0x28] sm:$0xff]
  %v22 = vld [vmem:[%s0 + $0x30] sm:$0xff]
  %v23 = vld [vmem:[%s0 + $0x38] sm:$0xf]
  %v24 = vld [vmem:[%s0 + $0x3c] sm:$0xff]
  %v25 = vld [vmem:[%s0 + $0x44] sm:$0xff]
  %v26 = vld [vmem:[%s0 + $0x4c] sm:$0xf]
  %v27 = vld [vmem:[%s0 + $0x50] sm:$0xff]
  %v28 = vld [vmem:[%s0 + $0x58] sm:$0xff]
  %v29 = vld [vmem:[%s0 + $0x60] sm:$0xf]
  %v30 = vld [vmem:[%s0 + $0x64] sm:$0xff]
  %v31 = vld [vmem:[%s0 + $0x6c] sm:$0xff]
  %v32 = vld [vmem:[%s0 + $0x74] sm:$0xf]
  %v33 = vld [vmem:[%s0 + $0x78] sm:$0xff]
  %v34 = vld [vmem:[%s0 + $0x80] sm:$0xff]
  %v35 = vld [vmem:[%s0 + $0x88] sm:$0xf]
  %v36 = vld [vmem:[%s0 + $0x8c] sm:$0xff]
  %v37 = vld [vmem:[%s0 + $0x94] sm:$0xff]
  %v38 = vld [vmem:[%s0 + $0x9c] sm:$0xf]
  %v39 = vld [vmem:[%s0 + $0xa0] sm:$0xff]
  %v40 = vld [vmem:[%s0 + $0xa8] sm:$0xff]
  %v41 = vld [vmem:[%s0 + $0xb0] sm:$0xf]
  %v42 = vld [vmem:[%s0 + $0xb4] sm:$0xff]
  %v43 = vld [vmem:[%s0 + $0xbc] sm:$0xff]
  %v44 = vld [vmem:[%s0 + $0xc4] sm:$0xf]
  %v45 = vld [vmem:[%s0 + $0xc8] sm:$0xff]
  %v46 = vld [vmem:[%s0 + $0xd0] sm:$0xff]
  %v47 = vld [vmem:[%s0 + $0xd8] sm:$0xf]
  %v48 = vld [vmem:[%s0 + $0xdc] sm:$0xff]
  %v49 = vld [vmem:[%s0 + $0xe4] sm:$0xff]
  %v50 = vld [vmem:[%s0 + $0xec] sm:$0xf]
  %v51 = vld [vmem:[%s0 + $0xf0] sm:$0xff]
  %v52 = vld [vmem:[%s0 + $0xf8] sm:$0xff]
  %v53 = vld [vmem:[%s0 + $0x100] sm:$0xf]
  %v54 = vld [vmem:[%s0 + $0x104] sm:$0xff]
  %v55 = vld [vmem:[%s0 + $0x10c] sm:$0xff]
  %v56 = vld [vmem:[%s0 + $0x114] sm:$0xf]
  %v57 = vld [vmem:[%s0 + $0x118] sm:$0xff]
  %v58 = vld [vmem:[%s0 + $0x120] sm:$0xff]
  %v59 = vld [vmem:[%s0 + $0x128] sm:$0xf]
  %v60 = vld [vmem:[%s0 + $0x12c] sm:$0xff]
  %v61 = vld [vmem:[%s0 + $0x134] sm:$0xff]
  %v62 = vld [vmem:[%s0 + $0x13c] sm:$0xf]
  %v63 = vld [vmem:[%s1] sm:$0xff]
  %v64 = vld [vmem:[%s1 + $0x8] sm:$0xff]
  %v65 = vld [vmem:[%s1 + $0x10] sm:$0xff]
  %v66 = vld [vmem:[%s1 + $0x18] sm:$0xff]
  %v67 = vld [vmem:[%s1 + $0x20] sm:$0xff]
  %v68 = vld [vmem:[%s1 + $0x28] sm:$0xff]
  %v69 = vld [vmem:[%s1 + $0x30] sm:$0xff]
  %v70 = vld [vmem:[%s1 + $0x38] sm:$0xff]
  %v71 = vld [vmem:[%s1 + $0x40] sm:$0xff]
  %v72 = vld [vmem:[%s1 + $0x48] sm:$0xff]
  %v73 = vld [vmem:[%s1 + $0x50] sm:$0xff]
  %v74 = vld [vmem:[%s1 + $0x58] sm:$0xff]
  %v75 = vld [vmem:[%s1 + $0x60] sm:$0xff]
  %v76 = vld [vmem:[%s1 + $0x68] sm:$0xff]
  %v77 = vld [vmem:[%s1 + $0x70] sm:$0xff]
  %v78 = vld [vmem:[%s1 + $0x78] sm:$0xff]
  %v79 = vld [vmem:[%s1 + $0x80] sm:$0xff]
  %v80 = vld [vmem:[%s1 + $0x88] sm:$0xff]
  %v81 = vld [vmem:[%s1 + $0x90] sm:$0xff]
  %v82 = vld [vmem:[%s1 + $0x98] sm:$0xff]
  %v83 = vld [vmem:[%s1 + $0xa0] sm:$0xff]
  %v84 = vld [vmem:[%s1 + $0xa8] sm:$0xff]
  %v85 = vld [vmem:[%s1 + $0xb0] sm:$0xff]
  %v86 = vld [vmem:[%s1 + $0xb8] sm:$0xff]
  %v87 = vld [vmem:[%s1 + $0xc0] sm:$0xff]
  %v88 = vld [vmem:[%s1 + $0xc8] sm:$0xff]
  %v89 = vld [vmem:[%s1 + $0xd0] sm:$0xff]
  %v90 = vld [vmem:[%s1 + $0xd8] sm:$0xff]
  %v91 = vld [vmem:[%s1 + $0xe0] sm:$0xff]
  %v92 = vld [vmem:[%s1 + $0xe8] sm:$0xff]
  %v93 = vld [vmem:[%s1 + $0xf0] sm:$0xff]
  %v94 = vld [vmem:[%s1 + $0xf8] sm:$0xff]
  %v95 = vld [vmem:[%s1 + $0x100] sm:$0xff]
  %v96 = vld [vmem:[%s1 + $0x108] sm:$0xff]
  %v97 = vld [vmem:[%s1 + $0x110] sm:$0xff]
  %v98 = vld [vmem:[%s1 + $0x118] sm:$0xff]
  %v99 = vld [vmem:[%s1 + $0x120] sm:$0xff]
  %v100 = vld [vmem:[%s1 + $0x128] sm:$0xff]
  %v101 = vld [vmem:[%s1 + $0x130] sm:$0xff]
  %v102 = vld [vmem:[%s1 + $0x138] sm:$0xff]
  %v103 = vld [vmem:[%s1 + $0x140] sm:$0xff]
  %v104 = vld [vmem:[%s1 + $0x148] sm:$0xff]
  %v105 = vld [vmem:[%s1 + $0x150] sm:$0xff]
  %v106 = vld [vmem:[%s1 + $0x158] sm:$0xff]
  %v107 = vld [vmem:[%s1 + $0x160] sm:$0xff]
  %v108 = vld [vmem:[%s1 + $0x168] sm:$0xff]
  %v109 = vld [vmem:[%s1 + $0x170] sm:$0xff]
  %v110 = vld [vmem:[%s1 + $0x178] sm:$0xff]
  %v111 = vld [vmem:[%s1 + $0x180] sm:$0xff]
  %v112 = vld [vmem:[%s1 + $0x188] sm:$0xff]
  %v113 = vld [vmem:[%s1 + $0x190] sm:$0xff]
  %v114 = vld [vmem:[%s1 + $0x198] sm:$0xff]
  %v115 = vld [vmem:[%s1 + $0x1a0] sm:$0xff]
  %v116 = vld [vmem:[%s1 + $0x1a8] sm:$0xff]
  %v117 = vld [vmem:[%s1 + $0x1b0] sm:$0xff]
  %v118 = vld [vmem:[%s1 + $0x1b8] sm:$0xff]
  %v119 = vld [vmem:[%s1 + $0x1c0] sm:$0xff]
  %v120 = vld [vmem:[%s1 + $0x1c8] sm:$0xff]
  %v121 = vld [vmem:[%s1 + $0x1d0] sm:$0xff]
  %v122 = vld [vmem:[%s1 + $0x1d8] sm:$0xff]
  %v123 = vld [vmem:[%s1 + $0x1e0] sm:$0xff]
  %v124 = vld [vmem:[%s1 + $0x1e8] sm:$0xff]
  %v125 = vld [vmem:[%s1 + $0x1f0] sm:$0xff]
  %v126 = vld [vmem:[%s1 + $0x1f8] sm:$0xff]
  %v127 = vld [vmem:[%s1 + $0x200] sm:$0xff]
  %v128 = vld [vmem:[%s1 + $0x208] sm:$0xff]
  %v129 = vld [vmem:[%s1 + $0x210] sm:$0xff]
  %v130 = vld [vmem:[%s1 + $0x218] sm:$0xff]
  %v131 = vld [vmem:[%s1 + $0x220] sm:$0xff]
  %v132 = vld [vmem:[%s1 + $0x228] sm:$0xff]
  %v133 = vld [vmem:[%s1 + $0x230] sm:$0xff]
  %v134 = vld [vmem:[%s1 + $0x238] sm:$0xff]
  %v135 = vld [vmem:[%s1 + $0x240] sm:$0xff]
  %v136 = vld [vmem:[%s1 + $0x248] sm:$0xff]
  %v137 = vld [vmem:[%s1 + $0x250] sm:$0xff]
  %v138 = vld [vmem:[%s1 + $0x258] sm:$0xff]
  %v139 = vld [vmem:[%s1 + $0x260] sm:$0xff]
  %v140 = vld [vmem:[%s1 + $0x268] sm:$0xff]
  %v141 = vld [vmem:[%s1 + $0x270] sm:$0xff]
  %v142 = vld [vmem:[%s1 + $0x278] sm:$0xff]
  %v143 = vld [vmem:[%s2] sm:$0x3]
  %v145 = vlaneseq
  %v146 = vshrl.u32 %v145, 7
  %v147 = vsub.s32 0, %v146
  %v148 = vrot.slane %v143, %v147
  %v149 = vlaneseq
  %v150 = vshrl.u32 %v149, 7
  %v151 = vsub.s32 1, %v150
  %v152 = vrot.slane %v143, %v151
  %v203 = vunpack.c.l.b16 %v15
  %v204 = vunpack.c.h.b16 %v15
  %v205 = vunpack.c.l.b16 %v16
  %v206 = vunpack.c.h.b16 %v16
  %v207 = vunpack.c.l.b16 %v17
  %v208 = vunpack.c.l.b16 %v18
  %v209 = vunpack.c.h.b16 %v18
  %v210 = vunpack.c.l.b16 %v19
  %v211 = vunpack.c.h.b16 %v19
  %v212 = vunpack.c.l.b16 %v20
  %v213 = vunpack.c.l.b16 %v21
  %v214 = vunpack.c.h.b16 %v21
  %v215 = vunpack.c.l.b16 %v22
  %v216 = vunpack.c.h.b16 %v22
  %v217 = vunpack.c.l.b16 %v23
  %v218 = vunpack.c.l.b16 %v24
  %v219 = vunpack.c.h.b16 %v24
  %v220 = vunpack.c.l.b16 %v25
  %v221 = vunpack.c.h.b16 %v25
  %v222 = vunpack.c.l.b16 %v26
  %v223 = vunpack.c.l.b16 %v27
  %v224 = vunpack.c.h.b16 %v27
  %v225 = vunpack.c.l.b16 %v28
  %v226 = vunpack.c.h.b16 %v28
  %v227 = vunpack.c.l.b16 %v29
  %v228 = vunpack.c.l.b16 %v30
  %v229 = vunpack.c.h.b16 %v30
  %v230 = vunpack.c.l.b16 %v31
  %v231 = vunpack.c.h.b16 %v31
  %v232 = vunpack.c.l.b16 %v32
  %v233 = vunpack.c.l.b16 %v33
  %v234 = vunpack.c.h.b16 %v33
  %v235 = vunpack.c.l.b16 %v34
  %v236 = vunpack.c.h.b16 %v34
  %v237 = vunpack.c.l.b16 %v35
  %v238 = vunpack.c.l.b16 %v36
  %v239 = vunpack.c.h.b16 %v36
  %v240 = vunpack.c.l.b16 %v37
  %v241 = vunpack.c.h.b16 %v37
  %v242 = vunpack.c.l.b16 %v38
  %v243 = vunpack.c.l.b16 %v39
  %v244 = vunpack.c.h.b16 %v39
  %v245 = vunpack.c.l.b16 %v40
  %v246 = vunpack.c.h.b16 %v40
  %v247 = vunpack.c.l.b16 %v41
  %v248 = vunpack.c.l.b16 %v42
  %v249 = vunpack.c.h.b16 %v42
  %v250 = vunpack.c.l.b16 %v43
  %v251 = vunpack.c.h.b16 %v43
  %v252 = vunpack.c.l.b16 %v44
  %v253 = vunpack.c.l.b16 %v45
  %v254 = vunpack.c.h.b16 %v45
  %v255 = vunpack.c.l.b16 %v46
  %v256 = vunpack.c.h.b16 %v46
  %v257 = vunpack.c.l.b16 %v47
  %v258 = vunpack.c.l.b16 %v48
  %v259 = vunpack.c.h.b16 %v48
  %v260 = vunpack.c.l.b16 %v49
  %v261 = vunpack.c.h.b16 %v49
  %v262 = vunpack.c.l.b16 %v50
  %v263 = vunpack.c.l.b16 %v51
  %v264 = vunpack.c.h.b16 %v51
  %v265 = vunpack.c.l.b16 %v52
  %v266 = vunpack.c.h.b16 %v52
  %v267 = vunpack.c.l.b16 %v53
  %v268 = vunpack.c.l.b16 %v54
  %v269 = vunpack.c.h.b16 %v54
  %v270 = vunpack.c.l.b16 %v55
  %v271 = vunpack.c.h.b16 %v55
  %v272 = vunpack.c.l.b16 %v56
  %v273 = vunpack.c.l.b16 %v57
  %v274 = vunpack.c.h.b16 %v57
  %v275 = vunpack.c.l.b16 %v58
  %v276 = vunpack.c.h.b16 %v58
  %v277 = vunpack.c.l.b16 %v59
  %v278 = vunpack.c.l.b16 %v60
  %v279 = vunpack.c.h.b16 %v60
  %v280 = vunpack.c.l.b16 %v61
  %v281 = vunpack.c.h.b16 %v61
  %v282 = vunpack.c.l.b16 %v62
  %v283 = vpack.c.b16 %v208, %v203
  %v284 = vpack.c.b16 %v209, %v204
  %v285 = vpack.c.b16 %v210, %v205
  %v286 = vpack.c.b16 %v211, %v206
  %v287 = vpack.c.b16 %v212, %v207
  %v288 = vpack.c.b16 %v218, %v213
  %v289 = vpack.c.b16 %v219, %v214
  %v290 = vpack.c.b16 %v220, %v215
  %v291 = vpack.c.b16 %v221, %v216
  %v292 = vpack.c.b16 %v222, %v217
  %v293 = vpack.c.b16 %v228, %v223
  %v294 = vpack.c.b16 %v229, %v224
  %v295 = vpack.c.b16 %v230, %v225
  %v296 = vpack.c.b16 %v231, %v226
  %v297 = vpack.c.b16 %v232, %v227
  %v298 = vpack.c.b16 %v238, %v233
  %v299 = vpack.c.b16 %v239, %v234
  %v300 = vpack.c.b16 %v240, %v235
  %v301 = vpack.c.b16 %v241, %v236
  %v302 = vpack.c.b16 %v242, %v237
  %v303 = vpack.c.b16 %v248, %v243
  %v304 = vpack.c.b16 %v249, %v244
  %v305 = vpack.c.b16 %v250, %v245
  %v306 = vpack.c.b16 %v251, %v246
  %v307 = vpack.c.b16 %v252, %v247
  %v308 = vpack.c.b16 %v258, %v253
  %v309 = vpack.c.b16 %v259, %v254
  %v310 = vpack.c.b16 %v260, %v255
  %v311 = vpack.c.b16 %v261, %v256
  %v312 = vpack.c.b16 %v262, %v257
  %v313 = vpack.c.b16 %v268, %v263
  %v314 = vpack.c.b16 %v269, %v264
  %v315 = vpack.c.b16 %v270, %v265
  %v316 = vpack.c.b16 %v271, %v266
  %v317 = vpack.c.b16 %v272, %v267
  %v318 = vpack.c.b16 %v278, %v273
  %v319 = vpack.c.b16 %v279, %v274
  %v320 = vpack.c.b16 %v280, %v275
  %v321 = vpack.c.b16 %v281, %v276
  %v322 = vpack.c.b16 %v282, %v277
  %v443 = vunpack.c.l.b16 %v63
  %v444 = vunpack.c.h.b16 %v63
  %v445 = vunpack.c.l.b16 %v64
  %v446 = vunpack.c.h.b16 %v64
  %v447 = vunpack.c.l.b16 %v65
  %v448 = vunpack.c.h.b16 %v65
  %v449 = vunpack.c.l.b16 %v66
  %v450 = vunpack.c.h.b16 %v66
  %v451 = vunpack.c.l.b16 %v67
  %v452 = vunpack.c.h.b16 %v67
  %v453 = vunpack.c.l.b16 %v68
  %v454 = vunpack.c.h.b16 %v68
  %v455 = vunpack.c.l.b16 %v69
  %v456 = vunpack.c.h.b16 %v69
  %v457 = vunpack.c.l.b16 %v70
  %v458 = vunpack.c.h.b16 %v70
  %v459 = vunpack.c.l.b16 %v71
  %v460 = vunpack.c.h.b16 %v71
  %v461 = vunpack.c.l.b16 %v72
  %v462 = vunpack.c.h.b16 %v72
  %v463 = vunpack.c.l.b16 %v73
  %v464 = vunpack.c.h.b16 %v73
  %v465 = vunpack.c.l.b16 %v74
  %v466 = vunpack.c.h.b16 %v74
  %v467 = vunpack.c.l.b16 %v75
  %v468 = vunpack.c.h.b16 %v75
  %v469 = vunpack.c.l.b16 %v76
  %v470 = vunpack.c.h.b16 %v76
  %v471 = vunpack.c.l.b16 %v77
  %v472 = vunpack.c.h.b16 %v77
  %v473 = vunpack.c.l.b16 %v78
  %v474 = vunpack.c.h.b16 %v78
  %v475 = vunpack.c.l.b16 %v79
  %v476 = vunpack.c.h.b16 %v79
  %v477 = vunpack.c.l.b16 %v80
  %v478 = vunpack.c.h.b16 %v80
  %v479 = vunpack.c.l.b16 %v81
  %v480 = vunpack.c.h.b16 %v81
  %v481 = vunpack.c.l.b16 %v82
  %v482 = vunpack.c.h.b16 %v82
  %v483 = vunpack.c.l.b16 %v83
  %v484 = vunpack.c.h.b16 %v83
  %v485 = vunpack.c.l.b16 %v84
  %v486 = vunpack.c.h.b16 %v84
  %v487 = vunpack.c.l.b16 %v85
  %v488 = vunpack.c.h.b16 %v85
  %v489 = vunpack.c.l.b16 %v86
  %v490 = vunpack.c.h.b16 %v86
  %v491 = vunpack.c.l.b16 %v87
  %v492 = vunpack.c.h.b16 %v87
  %v493 = vunpack.c.l.b16 %v88
  %v494 = vunpack.c.h.b16 %v88
  %v495 = vunpack.c.l.b16 %v89
  %v496 = vunpack.c.h.b16 %v89
  %v497 = vunpack.c.l.b16 %v90
  %v498 = vunpack.c.h.b16 %v90
  %v499 = vunpack.c.l.b16 %v91
  %v500 = vunpack.c.h.b16 %v91
  %v501 = vunpack.c.l.b16 %v92
  %v502 = vunpack.c.h.b16 %v92
  %v503 = vunpack.c.l.b16 %v93
  %v504 = vunpack.c.h.b16 %v93
  %v505 = vunpack.c.l.b16 %v94
  %v506 = vunpack.c.h.b16 %v94
  %v507 = vunpack.c.l.b16 %v95
  %v508 = vunpack.c.h.b16 %v95
  %v509 = vunpack.c.l.b16 %v96
  %v510 = vunpack.c.h.b16 %v96
  %v511 = vunpack.c.l.b16 %v97
  %v512 = vunpack.c.h.b16 %v97
  %v513 = vunpack.c.l.b16 %v98
  %v514 = vunpack.c.h.b16 %v98
  %v515 = vunpack.c.l.b16 %v99
  %v516 = vunpack.c.h.b16 %v99
  %v517 = vunpack.c.l.b16 %v100
  %v518 = vunpack.c.h.b16 %v100
  %v519 = vunpack.c.l.b16 %v101
  %v520 = vunpack.c.h.b16 %v101
  %v521 = vunpack.c.l.b16 %v102
  %v522 = vunpack.c.h.b16 %v102
  %v523 = vunpack.c.l.b16 %v103
  %v524 = vunpack.c.h.b16 %v103
  %v525 = vunpack.c.l.b16 %v104
  %v526 = vunpack.c.h.b16 %v104
  %v527 = vunpack.c.l.b16 %v105
  %v528 = vunpack.c.h.b16 %v105
  %v529 = vunpack.c.l.b16 %v106
  %v530 = vunpack.c.h.b16 %v106
  %v531 = vunpack.c.l.b16 %v107
  %v532 = vunpack.c.h.b16 %v107
  %v533 = vunpack.c.l.b16 %v108
  %v534 = vunpack.c.h.b16 %v108
  %v535 = vunpack.c.l.b16 %v109
  %v536 = vunpack.c.h.b16 %v109
  %v537 = vunpack.c.l.b16 %v110
  %v538 = vunpack.c.h.b16 %v110
  %v539 = vunpack.c.l.b16 %v111
  %v540 = vunpack.c.h.b16 %v111
  %v541 = vunpack.c.l.b16 %v112
  %v542 = vunpack.c.h.b16 %v112
  %v543 = vunpack.c.l.b16 %v113
  %v544 = vunpack.c.h.b16 %v113
  %v545 = vunpack.c.l.b16 %v114
  %v546 = vunpack.c.h.b16 %v114
  %v547 = vunpack.c.l.b16 %v115
  %v548 = vunpack.c.h.b16 %v115
  %v549 = vunpack.c.l.b16 %v116
  %v550 = vunpack.c.h.b16 %v116
  %v551 = vunpack.c.l.b16 %v117
  %v552 = vunpack.c.h.b16 %v117
  %v553 = vunpack.c.l.b16 %v118
  %v554 = vunpack.c.h.b16 %v118
  %v555 = vunpack.c.l.b16 %v119
  %v556 = vunpack.c.h.b16 %v119
  %v557 = vunpack.c.l.b16 %v120
  %v558 = vunpack.c.h.b16 %v120
  %v559 = vunpack.c.l.b16 %v121
  %v560 = vunpack.c.h.b16 %v121
  %v561 = vunpack.c.l.b16 %v122
  %v562 = vunpack.c.h.b16 %v122
  %v563 = vunpack.c.l.b16 %v123
  %v564 = vunpack.c.h.b16 %v123
  %v565 = vunpack.c.l.b16 %v124
  %v566 = vunpack.c.h.b16 %v124
  %v567 = vunpack.c.l.b16 %v125
  %v568 = vunpack.c.h.b16 %v125
  %v569 = vunpack.c.l.b16 %v126
  %v570 = vunpack.c.h.b16 %v126
  %v571 = vunpack.c.l.b16 %v127
  %v572 = vunpack.c.h.b16 %v127
  %v573 = vunpack.c.l.b16 %v128
  %v574 = vunpack.c.h.b16 %v128
  %v575 = vunpack.c.l.b16 %v129
  %v576 = vunpack.c.h.b16 %v129
  %v577 = vunpack.c.l.b16 %v130
  %v578 = vunpack.c.h.b16 %v130
  %v579 = vunpack.c.l.b16 %v131
  %v580 = vunpack.c.h.b16 %v131
  %v581 = vunpack.c.l.b16 %v132
  %v582 = vunpack.c.h.b16 %v132
  %v583 = vunpack.c.l.b16 %v133
  %v584 = vunpack.c.h.b16 %v133
  %v585 = vunpack.c.l.b16 %v134
  %v586 = vunpack.c.h.b16 %v134
  %v587 = vunpack.c.l.b16 %v135
  %v588 = vunpack.c.h.b16 %v135
  %v589 = vunpack.c.l.b16 %v136
  %v590 = vunpack.c.h.b16 %v136
  %v591 = vunpack.c.l.b16 %v137
  %v592 = vunpack.c.h.b16 %v137
  %v593 = vunpack.c.l.b16 %v138
  %v594 = vunpack.c.h.b16 %v138
  %v595 = vunpack.c.l.b16 %v139
  %v596 = vunpack.c.h.b16 %v139
  %v597 = vunpack.c.l.b16 %v140
  %v598 = vunpack.c.h.b16 %v140
  %v599 = vunpack.c.l.b16 %v141
  %v600 = vunpack.c.h.b16 %v141
  %v601 = vunpack.c.l.b16 %v142
  %v602 = vunpack.c.h.b16 %v142
  %v603 = vpack.c.b16 %v445, %v443
  %v604 = vpack.c.b16 %v446, %v444
  %v605 = vpack.c.b16 %v449, %v447
  %v606 = vpack.c.b16 %v450, %v448
  %v607 = vpack.c.b16 %v453, %v451
  %v608 = vpack.c.b16 %v454, %v452
  %v609 = vpack.c.b16 %v457, %v455
  %v610 = vpack.c.b16 %v458, %v456
  %v611 = vpack.c.b16 %v461, %v459
  %v612 = vpack.c.b16 %v462, %v460
  %v613 = vpack.c.b16 %v465, %v463
  %v614 = vpack.c.b16 %v466, %v464
  %v615 = vpack.c.b16 %v469, %v467
  %v616 = vpack.c.b16 %v470, %v468
  %v617 = vpack.c.b16 %v473, %v471
  %v618 = vpack.c.b16 %v474, %v472
  %v619 = vpack.c.b16 %v477, %v475
  %v620 = vpack.c.b16 %v478, %v476
  %v621 = vpack.c.b16 %v481, %v479
  %v622 = vpack.c.b16 %v482, %v480
  %v623 = vpack.c.b16 %v485, %v483
  %v624 = vpack.c.b16 %v486, %v484
  %v625 = vpack.c.b16 %v489, %v487
  %v626 = vpack.c.b16 %v490, %v488
  %v627 = vpack.c.b16 %v493, %v491
  %v628 = vpack.c.b16 %v494, %v492
  %v629 = vpack.c.b16 %v497, %v495
  %v630 = vpack.c.b16 %v498, %v496
  %v631 = vpack.c.b16 %v501, %v499
  %v632 = vpack.c.b16 %v502, %v500
  %v633 = vpack.c.b16 %v505, %v503
  %v634 = vpack.c.b16 %v506, %v504
  %v635 = vpack.c.b16 %v509, %v507
  %v636 = vpack.c.b16 %v510, %v508
  %v637 = vpack.c.b16 %v513, %v511
  %v638 = vpack.c.b16 %v514, %v512
  %v639 = vpack.c.b16 %v517, %v515
  %v640 = vpack.c.b16 %v518, %v516
  %v641 = vpack.c.b16 %v521, %v519
  %v642 = vpack.c.b16 %v522, %v520
  %v643 = vpack.c.b16 %v525, %v523
  %v644 = vpack.c.b16 %v526, %v524
  %v645 = vpack.c.b16 %v529, %v527
  %v646 = vpack.c.b16 %v530, %v528
  %v647 = vpack.c.b16 %v533, %v531
  %v648 = vpack.c.b16 %v534, %v532
  %v649 = vpack.c.b16 %v537, %v535
  %v650 = vpack.c.b16 %v538, %v536
  %v651 = vpack.c.b16 %v541, %v539
  %v652 = vpack.c.b16 %v542, %v540
  %v653 = vpack.c.b16 %v545, %v543
  %v654 = vpack.c.b16 %v546, %v544
  %v655 = vpack.c.b16 %v549, %v547
  %v656 = vpack.c.b16 %v550, %v548
  %v657 = vpack.c.b16 %v553, %v551
  %v658 = vpack.c.b16 %v554, %v552
  %v659 = vpack.c.b16 %v557, %v555
  %v660 = vpack.c.b16 %v558, %v556
  %v661 = vpack.c.b16 %v561, %v559
  %v662 = vpack.c.b16 %v562, %v560
  %v663 = vpack.c.b16 %v565, %v563
  %v664 = vpack.c.b16 %v566, %v564
  %v665 = vpack.c.b16 %v569, %v567
  %v666 = vpack.c.b16 %v570, %v568
  %v667 = vpack.c.b16 %v573, %v571
  %v668 = vpack.c.b16 %v574, %v572
  %v669 = vpack.c.b16 %v577, %v575
  %v670 = vpack.c.b16 %v578, %v576
  %v671 = vpack.c.b16 %v581, %v579
  %v672 = vpack.c.b16 %v582, %v580
  %v673 = vpack.c.b16 %v585, %v583
  %v674 = vpack.c.b16 %v586, %v584
  %v675 = vpack.c.b16 %v589, %v587
  %v676 = vpack.c.b16 %v590, %v588
  %v677 = vpack.c.b16 %v593, %v591
  %v678 = vpack.c.b16 %v594, %v592
  %v679 = vpack.c.b16 %v597, %v595
  %v680 = vpack.c.b16 %v598, %v596
  %v681 = vpack.c.b16 %v601, %v599
  %v682 = vpack.c.b16 %v602, %v600
  %763 = vmatprep.subr.bf16.mxu0 %v604
  %764 = vmatpush1.bf16.msra.mxu0 %v603
  %765 = vmatprep.subr.bf16.mxu0 %v606
  %766 = vmatpush1.bf16.msra.mxu0 %v605
  %767 = vmatprep.subr.bf16.mxu0 %v608
  %768 = vmatpush1.bf16.msra.mxu0 %v607
  %769 = vmatprep.subr.bf16.mxu0 %v610
  %770 = vmatpush1.bf16.msra.mxu0 %v609
  %771 = vmatprep.subr.bf16.mxu0 %v612
  %772 = vmatpush1.bf16.msra.mxu0 %v611
  %773 = vmatprep.subr.bf16.mxu0 %v614
  %774 = vmatpush1.bf16.msra.mxu0 %v613
  %775 = vmatprep.subr.bf16.mxu0 %v616
  %776 = vmatpush1.bf16.msra.mxu0 %v615
  %777 = vmatprep.subr.bf16.mxu0 %v618
  %778 = vmatpush1.bf16.msra.mxu0 %v617
  %779 = vmatprep.subr.bf16.mxu0 %v620
  %780 = vmatpush1.bf16.msra.mxu0 %v619
  %781 = vmatprep.subr.bf16.mxu0 %v622
  %782 = vmatpush1.bf16.msra.mxu0 %v621
  %783 = vmatprep.subr.bf16.mxu0 %v624
  %784 = vmatpush1.bf16.msra.mxu0 %v623
  %785 = vmatprep.subr.bf16.mxu0 %v626
  %786 = vmatpush1.bf16.msra.mxu0 %v625
  %787 = vmatprep.subr.bf16.mxu0 %v628
  %788 = vmatpush1.bf16.msra.mxu0 %v627
  %789 = vmatprep.subr.bf16.mxu0 %v630
  %790 = vmatpush1.bf16.msra.mxu0 %v629
  %791 = vmatprep.subr.bf16.mxu0 %v632
  %792 = vmatpush1.bf16.msra.mxu0 %v631
  %793 = vmatprep.subr.bf16.mxu0 %v634
  %794 = vmatpush1.bf16.msra.mxu0 %v633
  %795 = vmatprep.mubr.bf16.mxu0 %v284
  %796 = vmatmul.mubr.bf16.gmra.mrb[0].mxu0 %v283
  %v797 = vpop.f32.mrb[0].mxu0
  %v798 = vadd.f32 %v148, %v797
  %v799 = vpop.f32.mrb[0].mxu0
  %v800 = vadd.f32 %v152, %v799
  %v801 = vpop.f32.mrb[0].mxu0
  %v802 = vadd.f32 %v148, %v801
  %v803 = vpop.f32.mrb[0].mxu0
  %v804 = vadd.f32 %v152, %v803
  %805 = vmatprep.mubr.bf16.mxu0 %v289
  %806 = vmatmul.mubr.bf16.gmra.mrb[0].mxu0 %v288
  %v807 = vpop.f32.mrb[0].mxu0
  %v808 = vadd.f32 %v148, %v807
  %v809 = vpop.f32.mrb[0].mxu0
  %v810 = vadd.f32 %v152, %v809
  %v811 = vpop.f32.mrb[0].mxu0
  %v812 = vadd.f32 %v148, %v811
  %v813 = vpop.f32.mrb[0].mxu0
  %v814 = vadd.f32 %v152, %v813
  %815 = vmatprep.mubr.bf16.mxu0 %v294
  %816 = vmatmul.mubr.bf16.gmra.mrb[0].mxu0 %v293
  %v817 = vpop.f32.mrb[0].mxu0
  %v818 = vadd.f32 %v148, %v817
  %v819 = vpop.f32.mrb[0].mxu0
  %v820 = vadd.f32 %v152, %v819
  %v821 = vpop.f32.mrb[0].mxu0
  %v822 = vadd.f32 %v148, %v821
  %v823 = vpop.f32.mrb[0].mxu0
  %v824 = vadd.f32 %v152, %v823
  %825 = vmatprep.mubr.bf16.mxu0 %v299
  %826 = vmatmul.mubr.bf16.gmra.mrb[0].mxu0 %v298
  %v827 = vpop.f32.mrb[0].mxu0
  %v828 = vadd.f32 %v148, %v827
  %v829 = vpop.f32.mrb[0].mxu0
  %v830 = vadd.f32 %v152, %v829
  %v831 = vpop.f32.mrb[0].mxu0
  %v832 = vadd.f32 %v148, %v831
  %v833 = vpop.f32.mrb[0].mxu0
  %v834 = vadd.f32 %v152, %v833
  %835 = vmatprep.mubr.bf16.mxu0 %v304
  %836 = vmatmul.mubr.bf16.gmra.mrb[0].mxu0 %v303
  %v837 = vpop.f32.mrb[0].mxu0
  %v838 = vadd.f32 %v148, %v837
  %v839 = vpop.f32.mrb[0].mxu0
  %v840 = vadd.f32 %v152, %v839
  %v841 = vpop.f32.mrb[0].mxu0
  %v842 = vadd.f32 %v148, %v841
  %v843 = vpop.f32.mrb[0].mxu0
  %v844 = vadd.f32 %v152, %v843
  %845 = vmatprep.mubr.bf16.mxu0 %v309
  %846 = vmatmul.mubr.bf16.gmra.mrb[0].mxu0 %v308
  %v847 = vpop.f32.mrb[0].mxu0
  %v848 = vadd.f32 %v148, %v847
  %v849 = vpop.f32.mrb[0].mxu0
  %v850 = vadd.f32 %v152, %v849
  %v851 = vpop.f32.mrb[0].mxu0
  %v852 = vadd.f32 %v148, %v851
  %v853 = vpop.f32.mrb[0].mxu0
  %v854 = vadd.f32 %v152, %v853
  %855 = vmatprep.mubr.bf16.mxu0 %v314
  %856 = vmatmul.mubr.bf16.gmra.mrb[0].mxu0 %v313
  %v857 = vpop.f32.mrb[0].mxu0
  %v858 = vadd.f32 %v148, %v857
  %v859 = vpop.f32.mrb[0].mxu0
  %v860 = vadd.f32 %v152, %v859
  %v861 = vpop.f32.mrb[0].mxu0
  %v862 = vadd.f32 %v148, %v861
  %v863 = vpop.f32.mrb[0].mxu0
  %v864 = vadd.f32 %v152, %v863
  %865 = vmatprep.mubr.bf16.mxu0 %v319
  %866 = vmatmul.mubr.bf16.gmra.mrb[0].mxu0 %v318
  %v867 = vpop.f32.mrb[0].mxu0
  %v868 = vadd.f32 %v148, %v867
  %v869 = vpop.f32.mrb[0].mxu0
  %v870 = vadd.f32 %v152, %v869
  %v871 = vpop.f32.mrb[0].mxu0
  %v872 = vadd.f32 %v148, %v871
  %v873 = vpop.f32.mrb[0].mxu0
  %v874 = vadd.f32 %v152, %v873
  %875 = vdwg.mxu0
  %876 = vmatprep.subr.bf16.mxu0 %v636
  %877 = vmatpush1.bf16.msra.mxu0 %v635
  %878 = vmatprep.subr.bf16.mxu0 %v638
  %879 = vmatpush1.bf16.msra.mxu0 %v637
  %880 = vmatprep.subr.bf16.mxu0 %v640
  %881 = vmatpush1.bf16.msra.mxu0 %v639
  %882 = vmatprep.subr.bf16.mxu0 %v642
  %883 = vmatpush1.bf16.msra.mxu0 %v641
  %884 = vmatprep.subr.bf16.mxu0 %v644
  %885 = vmatpush1.bf16.msra.mxu0 %v643
  %886 = vmatprep.subr.bf16.mxu0 %v646
  %887 = vmatpush1.bf16.msra.mxu0 %v645
  %888 = vmatprep.subr.bf16.mxu0 %v648
  %889 = vmatpush1.bf16.msra.mxu0 %v647
  %890 = vmatprep.subr.bf16.mxu0 %v650
  %891 = vmatpush1.bf16.msra.mxu0 %v649
  %892 = vmatprep.subr.bf16.mxu0 %v652
  %893 = vmatpush1.bf16.msra.mxu0 %v651
  %894 = vmatprep.subr.bf16.mxu0 %v654
  %895 = vmatpush1.bf16.msra.mxu0 %v653
  %896 = vmatprep.subr.bf16.mxu0 %v656
  %897 = vmatpush1.bf16.msra.mxu0 %v655
  %898 = vmatprep.subr.bf16.mxu0 %v658
  %899 = vmatpush1.bf16.msra.mxu0 %v657
  %900 = vmatprep.subr.bf16.mxu0 %v660
  %901 = vmatpush1.bf16.msra.mxu0 %v659
  %902 = vmatprep.subr.bf16.mxu0 %v662
  %903 = vmatpush1.bf16.msra.mxu0 %v661
  %904 = vmatprep.subr.bf16.mxu0 %v664
  %905 = vmatpush1.bf16.msra.mxu0 %v663
  %906 = vmatprep.subr.bf16.mxu0 %v666
  %907 = vmatpush1.bf16.msra.mxu0 %v665
  %908 = vmatprep.mubr.bf16.mxu0 %v286
  %909 = vmatmul.mubr.bf16.gmra.mrb[0].mxu0 %v285
  %v910 = vpop.f32.mrb[0].mxu0
  %v911 = vadd.f32 %v798, %v910
  %v912 = vpop.f32.mrb[0].mxu0
  %v913 = vadd.f32 %v800, %v912
  %v914 = vpop.f32.mrb[0].mxu0
  %v915 = vadd.f32 %v802, %v914
  %v916 = vpop.f32.mrb[0].mxu0
  %v917 = vadd.f32 %v804, %v916
  %918 = vmatprep.mubr.bf16.mxu0 %v291
  %919 = vmatmul.mubr.bf16.gmra.mrb[0].mxu0 %v290
  %v920 = vpop.f32.mrb[0].mxu0
  %v921 = vadd.f32 %v808, %v920
  %v922 = vpop.f32.mrb[0].mxu0
  %v923 = vadd.f32 %v810, %v922
  %v924 = vpop.f32.mrb[0].mxu0
  %v925 = vadd.f32 %v812, %v924
  %v926 = vpop.f32.mrb[0].mxu0
  %v927 = vadd.f32 %v814, %v926
  %928 = vmatprep.mubr.bf16.mxu0 %v296
  %929 = vmatmul.mubr.bf16.gmra.mrb[0].mxu0 %v295
  %v930 = vpop.f32.mrb[0].mxu0
  %v931 = vadd.f32 %v818, %v930
  %v932 = vpop.f32.mrb[0].mxu0
  %v933 = vadd.f32 %v820, %v932
  %v934 = vpop.f32.mrb[0].mxu0
  %v935 = vadd.f32 %v822, %v934
  %v936 = vpop.f32.mrb[0].mxu0
  %v937 = vadd.f32 %v824, %v936
  %938 = vmatprep.mubr.bf16.mxu0 %v301
  %939 = vmatmul.mubr.bf16.gmra.mrb[0].mxu0 %v300
  %v940 = vpop.f32.mrb[0].mxu0
  %v941 = vadd.f32 %v828, %v940
  %v942 = vpop.f32.mrb[0].mxu0
  %v943 = vadd.f32 %v830, %v942
  %v944 = vpop.f32.mrb[0].mxu0
  %v945 = vadd.f32 %v832, %v944
  %v946 = vpop.f32.mrb[0].mxu0
  %v947 = vadd.f32 %v834, %v946
  %948 = vmatprep.mubr.bf16.mxu0 %v306
  %949 = vmatmul.mubr.bf16.gmra.mrb[0].mxu0 %v305
  %v950 = vpop.f32.mrb[0].mxu0
  %v951 = vadd.f32 %v838, %v950
  %v952 = vpop.f32.mrb[0].mxu0
  %v953 = vadd.f32 %v840, %v952
  %v954 = vpop.f32.mrb[0].mxu0
  %v955 = vadd.f32 %v842, %v954
  %v956 = vpop.f32.mrb[0].mxu0
  %v957 = vadd.f32 %v844, %v956
  %958 = vmatprep.mubr.bf16.mxu0 %v311
  %959 = vmatmul.mubr.bf16.gmra.mrb[0].mxu0 %v310
  %v960 = vpop.f32.mrb[0].mxu0
  %v961 = vadd.f32 %v848, %v960
  %v962 = vpop.f32.mrb[0].mxu0
  %v963 = vadd.f32 %v850, %v962
  %v964 = vpop.f32.mrb[0].mxu0
  %v965 = vadd.f32 %v852, %v964
  %v966 = vpop.f32.mrb[0].mxu0
  %v967 = vadd.f32 %v854, %v966
  %968 = vmatprep.mubr.bf16.mxu0 %v316
  %969 = vmatmul.mubr.bf16.gmra.mrb[0].mxu0 %v315
  %v970 = vpop.f32.mrb[0].mxu0
  %v971 = vadd.f32 %v858, %v970
  %v972 = vpop.f32.mrb[0].mxu0
  %v973 = vadd.f32 %v860, %v972
  %v974 = vpop.f32.mrb[0].mxu0
  %v975 = vadd.f32 %v862, %v974
  %v976 = vpop.f32.mrb[0].mxu0
  %v977 = vadd.f32 %v864, %v976
  %978 = vmatprep.mubr.bf16.mxu0 %v321
  %979 = vmatmul.mubr.bf16.gmra.mrb[0].mxu0 %v320
  %v980 = vpop.f32.mrb[0].mxu0
  %v981 = vadd.f32 %v868, %v980
  %v982 = vpop.f32.mrb[0].mxu0
  %v983 = vadd.f32 %v870, %v982
  %v984 = vpop.f32.mrb[0].mxu0
  %v985 = vadd.f32 %v872, %v984
  %v986 = vpop.f32.mrb[0].mxu0
  %v987 = vadd.f32 %v874, %v986
  %988 = vdwg.mxu0
  %989 = vmatprep.subr.bf16.mxu0 %v668
  %990 = vmatpush1.bf16.msra.mxu0 %v667
  %991 = vmatprep.subr.bf16.mxu0 %v670
  %992 = vmatpush1.bf16.msra.mxu0 %v669
  %993 = vmatprep.subr.bf16.mxu0 %v672
  %994 = vmatpush1.bf16.msra.mxu0 %v671
  %995 = vmatprep.subr.bf16.mxu0 %v674
  %996 = vmatpush1.bf16.msra.mxu0 %v673
  %997 = vmatprep.subr.bf16.mxu0 %v676
  %998 = vmatpush1.bf16.msra.mxu0 %v675
  %999 = vmatprep.subr.bf16.mxu0 %v678
  %1000 = vmatpush1.bf16.msra.mxu0 %v677
  %1001 = vmatprep.subr.bf16.mxu0 %v680
  %1002 = vmatpush1.bf16.msra.mxu0 %v679
  %1003 = vmatprep.subr.bf16.mxu0 %v682
  %1004 = vmatpush1.bf16.msra.mxu0 %v681
  %1005 = vmatprep.subr.bf16.mxu0 0
  %1006 = vmatpush1.bf16.msra.mxu0 0
  %1007 = vmatprep.subr.bf16.mxu0 0
  %1008 = vmatpush1.bf16.msra.mxu0 0
  %1009 = vmatprep.subr.bf16.mxu0 0
  %1010 = vmatpush1.bf16.msra.mxu0 0
  %1011 = vmatprep.subr.bf16.mxu0 0
  %1012 = vmatpush1.bf16.msra.mxu0 0
  %1013 = vmatprep.subr.bf16.mxu0 0
  %1014 = vmatpush1.bf16.msra.mxu0 0
  %1015 = vmatprep.subr.bf16.mxu0 0
  %1016 = vmatpush1.bf16.msra.mxu0 0
  %1017 = vmatprep.subr.bf16.mxu0 0
  %1018 = vmatpush1.bf16.msra.mxu0 0
  %1019 = vmatprep.subr.bf16.mxu0 0
  %1020 = vmatpush1.bf16.msra.mxu0 0
  %1021 = vmatprep.mubr.bf16.mxu0 0
  %1022 = vmatmul.mubr.bf16.gmra.mrb[0].mxu0 %v287
  %v1023 = vpop.f32.mrb[0].mxu0
  %v1024 = vadd.f32 %v911, %v1023
  %v1025 = vpop.f32.mrb[0].mxu0
  %v1026 = vadd.f32 %v913, %v1025
  %v1027 = vpop.f32.mrb[0].mxu0
  %v1028 = vadd.f32 %v915, %v1027
  %v1029 = vpop.f32.mrb[0].mxu0
  %v1030 = vadd.f32 %v917, %v1029
  %1031 = vmatprep.mubr.bf16.mxu0 0
  %1032 = vmatmul.mubr.bf16.gmra.mrb[0].mxu0 %v292
  %v1033 = vpop.f32.mrb[0].mxu0
  %v1034 = vadd.f32 %v921, %v1033
  %v1035 = vpop.f32.mrb[0].mxu0
  %v1036 = vadd.f32 %v923, %v1035
  %v1037 = vpop.f32.mrb[0].mxu0
  %v1038 = vadd.f32 %v925, %v1037
  %v1039 = vpop.f32.mrb[0].mxu0
  %v1040 = vadd.f32 %v927, %v1039
  %1041 = vmatprep.mubr.bf16.mxu0 0
  %1042 = vmatmul.mubr.bf16.gmra.mrb[0].mxu0 %v297
  %v1043 = vpop.f32.mrb[0].mxu0
  %v1044 = vadd.f32 %v931, %v1043
  %v1045 = vpop.f32.mrb[0].mxu0
  %v1046 = vadd.f32 %v933, %v1045
  %v1047 = vpop.f32.mrb[0].mxu0
  %v1048 = vadd.f32 %v935, %v1047
  %v1049 = vpop.f32.mrb[0].mxu0
  %v1050 = vadd.f32 %v937, %v1049
  %1051 = vmatprep.mubr.bf16.mxu0 0
  %1052 = vmatmul.mubr.bf16.gmra.mrb[0].mxu0 %v302
  %v1053 = vpop.f32.mrb[0].mxu0
  %v1054 = vadd.f32 %v941, %v1053
  %v1055 = vpop.f32.mrb[0].mxu0
  %v1056 = vadd.f32 %v943, %v1055
  %v1057 = vpop.f32.mrb[0].mxu0
  %v1058 = vadd.f32 %v945, %v1057
  %v1059 = vpop.f32.mrb[0].mxu0
  %v1060 = vadd.f32 %v947, %v1059
  %1061 = vmatprep.mubr.bf16.mxu0 0
  %1062 = vmatmul.mubr.bf16.gmra.mrb[0].mxu0 %v307
  %v1063 = vpop.f32.mrb[0].mxu0
  %v1064 = vadd.f32 %v951, %v1063
  %v1065 = vpop.f32.mrb[0].mxu0
  %v1066 = vadd.f32 %v953, %v1065
  %v1067 = vpop.f32.mrb[0].mxu0
  %v1068 = vadd.f32 %v955, %v1067
  %v1069 = vpop.f32.mrb[0].mxu0
  %v1070 = vadd.f32 %v957, %v1069
  %1071 = vmatprep.mubr.bf16.mxu0 0
  %1072 = vmatmul.mubr.bf16.gmra.mrb[0].mxu0 %v312
  %v1073 = vpop.f32.mrb[0].mxu0
  %v1074 = vadd.f32 %v961, %v1073
  %v1075 = vpop.f32.mrb[0].mxu0
  %v1076 = vadd.f32 %v963, %v1075
  %v1077 = vpop.f32.mrb[0].mxu0
  %v1078 = vadd.f32 %v965, %v1077
  %v1079 = vpop.f32.mrb[0].mxu0
  %v1080 = vadd.f32 %v967, %v1079
  %1081 = vmatprep.mubr.bf16.mxu0 0
  %1082 = vmatmul.mubr.bf16.gmra.mrb[0].mxu0 %v317
  %v1083 = vpop.f32.mrb[0].mxu0
  %v1084 = vadd.f32 %v971, %v1083
  %v1085 = vpop.f32.mrb[0].mxu0
  %v1086 = vadd.f32 %v973, %v1085
  %v1087 = vpop.f32.mrb[0].mxu0
  %v1088 = vadd.f32 %v975, %v1087
  %v1089 = vpop.f32.mrb[0].mxu0
  %v1090 = vadd.f32 %v977, %v1089
  %1091 = vmatprep.mubr.bf16.mxu0 0
  %1092 = vmatmul.mubr.bf16.gmra.mrb[0].mxu0 %v322
  %v1093 = vpop.f32.mrb[0].mxu0
  %v1094 = vadd.f32 %v981, %v1093
  %v1095 = vpop.f32.mrb[0].mxu0
  %v1096 = vadd.f32 %v983, %v1095
  %v1097 = vpop.f32.mrb[0].mxu0
  %v1098 = vadd.f32 %v985, %v1097
  %v1099 = vpop.f32.mrb[0].mxu0
  %v1100 = vadd.f32 %v987, %v1099
  %1101 = vdwg.mxu0
  %v1102 = vmax.f32 %v1024, 0.0
  %v1103 = vmax.f32 %v1026, 0.0
  %v1104 = vmax.f32 %v1028, 0.0
  %v1105 = vmax.f32 %v1030, 0.0
  %v1106 = vmax.f32 %v1034, 0.0
  %v1107 = vmax.f32 %v1036, 0.0
  %v1108 = vmax.f32 %v1038, 0.0
  %v1109 = vmax.f32 %v1040, 0.0
  %v1110 = vmax.f32 %v1044, 0.0
  %v1111 = vmax.f32 %v1046, 0.0
  %v1112 = vmax.f32 %v1048, 0.0
  %v1113 = vmax.f32 %v1050, 0.0
  %v1114 = vmax.f32 %v1054, 0.0
  %v1115 = vmax.f32 %v1056, 0.0
  %v1116 = vmax.f32 %v1058, 0.0
  %v1117 = vmax.f32 %v1060, 0.0
  %v1118 = vmax.f32 %v1064, 0.0
  %v1119 = vmax.f32 %v1066, 0.0
  %v1120 = vmax.f32 %v1068, 0.0
  %v1121 = vmax.f32 %v1070, 0.0
  %v1122 = vmax.f32 %v1074, 0.0
  %v1123 = vmax.f32 %v1076, 0.0
  %v1124 = vmax.f32 %v1078, 0.0
  %v1125 = vmax.f32 %v1080, 0.0
  %v1126 = vmax.f32 %v1084, 0.0
  %v1127 = vmax.f32 %v1086, 0.0
  %v1128 = vmax.f32 %v1088, 0.0
  %v1129 = vmax.f32 %v1090, 0.0
  %v1130 = vmax.f32 %v1094, 0.0
  %v1131 = vmax.f32 %v1096, 0.0
  %v1132 = vmax.f32 %v1098, 0.0
  %v1133 = vmax.f32 %v1100, 0.0
  %v1134 = vpack.c.bf16 %v1104, %v1102
  %v1135 = vpack.c.bf16 %v1105, %v1103
  %v1136 = vpack.c.bf16 %v1108, %v1106
  %v1137 = vpack.c.bf16 %v1109, %v1107
  %v1138 = vpack.c.bf16 %v1112, %v1110
  %v1139 = vpack.c.bf16 %v1113, %v1111
  %v1140 = vpack.c.bf16 %v1116, %v1114
  %v1141 = vpack.c.bf16 %v1117, %v1115
  %v1142 = vpack.c.bf16 %v1120, %v1118
  %v1143 = vpack.c.bf16 %v1121, %v1119
  %v1144 = vpack.c.bf16 %v1124, %v1122
  %v1145 = vpack.c.bf16 %v1125, %v1123
  %v1146 = vpack.c.bf16 %v1128, %v1126
  %v1147 = vpack.c.bf16 %v1129, %v1127
  %v1148 = vpack.c.bf16 %v1132, %v1130
  %v1149 = vpack.c.bf16 %v1133, %v1131
  %v1166 = vunpack.c.l.b16 %v1134
  %v1167 = vunpack.c.l.b16 %v1135
  %v1168 = vunpack.c.h.b16 %v1134
  %v1169 = vunpack.c.h.b16 %v1135
  %v1170 = vunpack.c.l.b16 %v1136
  %v1171 = vunpack.c.l.b16 %v1137
  %v1172 = vunpack.c.h.b16 %v1136
  %v1173 = vunpack.c.h.b16 %v1137
  %v1174 = vunpack.c.l.b16 %v1138
  %v1175 = vunpack.c.l.b16 %v1139
  %v1176 = vunpack.c.h.b16 %v1138
  %v1177 = vunpack.c.h.b16 %v1139
  %v1178 = vunpack.c.l.b16 %v1140
  %v1179 = vunpack.c.l.b16 %v1141
  %v1180 = vunpack.c.h.b16 %v1140
  %v1181 = vunpack.c.h.b16 %v1141
  %v1182 = vunpack.c.l.b16 %v1142
  %v1183 = vunpack.c.l.b16 %v1143
  %v1184 = vunpack.c.h.b16 %v1142
  %v1185 = vunpack.c.h.b16 %v1143
  %v1186 = vunpack.c.l.b16 %v1144
  %v1187 = vunpack.c.l.b16 %v1145
  %v1188 = vunpack.c.h.b16 %v1144
  %v1189 = vunpack.c.h.b16 %v1145
  %v1190 = vunpack.c.l.b16 %v1146
  %v1191 = vunpack.c.l.b16 %v1147
  %v1192 = vunpack.c.h.b16 %v1146
  %v1193 = vunpack.c.h.b16 %v1147
  %v1194 = vunpack.c.l.b16 %v1148
  %v1195 = vunpack.c.l.b16 %v1149
  %v1196 = vunpack.c.h.b16 %v1148
  %v1197 = vunpack.c.h.b16 %v1149
  %v1198 = vpack.c.b16 %v1167, %v1166
  %v1199 = vpack.c.b16 %v1169, %v1168
  %v1200 = vpack.c.b16 %v1171, %v1170
  %v1201 = vpack.c.b16 %v1173, %v1172
  %v1202 = vpack.c.b16 %v1175, %v1174
  %v1203 = vpack.c.b16 %v1177, %v1176
  %v1204 = vpack.c.b16 %v1179, %v1178
  %v1205 = vpack.c.b16 %v1181, %v1180
  %v1206 = vpack.c.b16 %v1183, %v1182
  %v1207 = vpack.c.b16 %v1185, %v1184
  %v1208 = vpack.c.b16 %v1187, %v1186
  %v1209 = vpack.c.b16 %v1189, %v1188
  %v1210 = vpack.c.b16 %v1191, %v1190
  %v1211 = vpack.c.b16 %v1193, %v1192
  %v1212 = vpack.c.b16 %v1195, %v1194
  %v1213 = vpack.c.b16 %v1197, %v1196
  %1230 = vst [vmem:[%s3] sm:$0xff] %v1198
  %1231 = vst [vmem:[%s3 + $0x8] sm:$0xff] %v1199
  %1232 = vst [vmem:[%s3 + $0x10] sm:$0xff] %v1200
  %1233 = vst [vmem:[%s3 + $0x18] sm:$0xff] %v1201
  %1234 = vst [vmem:[%s3 + $0x20] sm:$0xff] %v1202
  %1235 = vst [vmem:[%s3 + $0x28] sm:$0xff] %v1203
  %1236 = vst [vmem:[%s3 + $0x30] sm:$0xff] %v1204
  %1237 = vst [vmem:[%s3 + $0x38] sm:$0xff] %v1205
  %1238 = vst [vmem:[%s3 + $0x40] sm:$0xff] %v1206
  %1239 = vst [vmem:[%s3 + $0x48] sm:$0xff] %v1207
  %1240 = vst [vmem:[%s3 + $0x50] sm:$0xff] %v1208
  %1241 = vst [vmem:[%s3 + $0x58] sm:$0xff] %v1209
  %1242 = vst [vmem:[%s3 + $0x60] sm:$0xff] %v1210
  %1243 = vst [vmem:[%s3 + $0x68] sm:$0xff] %v1211
  %1244 = vst [vmem:[%s3 + $0x70] sm:$0xff] %v1212
  %1245 = vst [vmem:[%s3 + $0x78] sm:$0xff] %v1213
  // Predicated region
  $region14: #{sghrq_forward.2} parent=0 // pred_check
    _
  $region15: #{sghrq_forward.2} parent=0 // pred_check_branch
    %1247 = sbr.rel (0) target = $region17
  $region16: #{sghrq_forward.2} parent=0 // pred_region
    _
  $region17: #{sghrq_forward.2} parent=0 // pred_fallthru
    _
  // Predicated region
  $region18: #{sghrq_forward.2} parent=0 // pred_check
    _
  $region19: #{sghrq_forward.2} parent=0 // pred_check_branch
    %1249 = sbr.rel (0) target = $region21
  $region20: #{sghrq_forward.2} parent=0 // pred_region
    _
  $region21: #{sghrq_forward.2} parent=0 // pred_fallthru
    _

// kernel: sghrq_forward.3
$region0: #{sghrq_forward.3}
  #allocation0 [shape = 'u32[]', space=smem, size = 0x4, offset = 0x4, fixed_abs, tag = 'smem constant byte address 0x4 - core index']
  #allocation1 [shape = 'u32[144,128]{1,0:T(1,128)}', space=vmem, size = 0x12000, scoped, tag = 'internal scratch']
  %s0 = inlined_call_operand.vmem [shape: bf16[512,128], index: 0, kind: input, shape index: {}]
  %s1 = inlined_call_operand.vmem [shape: bf16[512,256], index: 1, kind: input, shape index: {}]
  %s2 = inlined_call_operand.vmem [shape: bf16[128,128], index: 2, kind: input, shape index: {}]
  %s3 = inlined_call_operand.vmem [shape: bf16[256,128], index: 3, kind: input, shape index: {}]
  %s4 = inlined_call_operand.vmem [shape: bf16[128,128], index: 4, kind: input, shape index: {}]
  %s5 = inlined_call_operand.vmem [shape: bf16[128,128], index: 5, kind: input, shape index: {}]
  %s6 = inlined_call_operand.vmem [shape: f32[3,128], index: 6, kind: input, shape index: {}]
  %s7 = inlined_call_operand.vmem [shape: bf16[512,128], index: 7, kind: output, shape index: {}]
  %s8 = sld [smem:[#allocation0]]
  $region38: #{sghrq_forward.3} parent=0
    _
  %s10 = ssub.s32 1, %s8
  %s11 = scalar_select 0, %s10, %s8
  // Predicated region
  $region2: #{sghrq_forward.3} parent=0 // pred_check
    _
  $region3: #{sghrq_forward.3} parent=0 // pred_check_branch
    %13 = sbr.rel (0) target = $region5
  $region4: #{sghrq_forward.3} parent=0 // pred_region
    _
  $region5: #{sghrq_forward.3} parent=0 // pred_fallthru
    _
  // Predicated region
  $region6: #{sghrq_forward.3} parent=0 // pred_check
    _
  $region7: #{sghrq_forward.3} parent=0 // pred_check_branch
    %15 = sbr.rel (0) target = $region9
  $region8: #{sghrq_forward.3} parent=0 // pred_region
    _
  $region9: #{sghrq_forward.3} parent=0 // pred_fallthru
    _
  // Predicated region
  $region10: #{sghrq_forward.3} parent=0 // pred_check
    _
  $region11: #{sghrq_forward.3} parent=0 // pred_check_branch
    %17 = sbr.rel (0) target = $region13
  $region12: #{sghrq_forward.3} parent=0 // pred_region
    _
  $region13: #{sghrq_forward.3} parent=0 // pred_fallthru
    _
  // Predicated region
  $region14: #{sghrq_forward.3} parent=0 // pred_check
    _
  $region15: #{sghrq_forward.3} parent=0 // pred_check_branch
    %19 = sbr.rel (0) target = $region17
  $region16: #{sghrq_forward.3} parent=0 // pred_region
    _
  $region17: #{sghrq_forward.3} parent=0 // pred_fallthru
    _
  // Predicated region
  $region18: #{sghrq_forward.3} parent=0 // pred_check
    _
  $region19: #{sghrq_forward.3} parent=0 // pred_check_branch
    %21 = sbr.rel (0) target = $region21
  $region20: #{sghrq_forward.3} parent=0 // pred_region
    _
  $region21: #{sghrq_forward.3} parent=0 // pred_fallthru
    _
  // Predicated region
  $region22: #{sghrq_forward.3} parent=0 // pred_check
    _
  $region23: #{sghrq_forward.3} parent=0 // pred_check_branch
    %23 = sbr.rel (0) target = $region25
  $region24: #{sghrq_forward.3} parent=0 // pred_region
    _
  $region25: #{sghrq_forward.3} parent=0 // pred_fallthru
    _
  // Predicated region
  $region26: #{sghrq_forward.3} parent=0 // pred_check
    _
  $region27: #{sghrq_forward.3} parent=0 // pred_check_branch
    %25 = sbr.rel (0) target = $region29
  $region28: #{sghrq_forward.3} parent=0 // pred_region
    _
  $region29: #{sghrq_forward.3} parent=0 // pred_fallthru
    _
  %v27 = vld [vmem:[%s6] sm:$0x7]
  %v28 = vld [vmem:[%s0] sm:$0xf]
  %v29 = vld [vmem:[%s0 + $0x4] sm:$0xf]
  %v30 = vld [vmem:[%s0 + $0x8] sm:$0xf]
  %v31 = vld [vmem:[%s0 + $0xc] sm:$0xf]
  %v32 = vld [vmem:[%s0 + $0x10] sm:$0xf]
  %v33 = vld [vmem:[%s0 + $0x14] sm:$0xf]
  %v34 = vld [vmem:[%s0 + $0x18] sm:$0xf]
  %v35 = vld [vmem:[%s0 + $0x1c] sm:$0xf]
  %v36 = vld [vmem:[%s0 + $0x20] sm:$0xf]
  %v37 = vld [vmem:[%s0 + $0x24] sm:$0xf]
  %v38 = vld [vmem:[%s0 + $0x28] sm:$0xf]
  %v39 = vld [vmem:[%s0 + $0x2c] sm:$0xf]
  %v40 = vld [vmem:[%s0 + $0x30] sm:$0xf]
  %v41 = vld [vmem:[%s0 + $0x34] sm:$0xf]
  %v42 = vld [vmem:[%s0 + $0x38] sm:$0xf]
  %v43 = vld [vmem:[%s0 + $0x3c] sm:$0xf]
  %v44 = vld [vmem:[%s0 + $0x40] sm:$0xf]
  %v45 = vld [vmem:[%s0 + $0x44] sm:$0xf]
  %v46 = vld [vmem:[%s0 + $0x48] sm:$0xf]
  %v47 = vld [vmem:[%s0 + $0x4c] sm:$0xf]
  %v48 = vld [vmem:[%s0 + $0x50] sm:$0xf]
  %v49 = vld [vmem:[%s0 + $0x54] sm:$0xf]
  %v50 = vld [vmem:[%s0 + $0x58] sm:$0xf]
  %v51 = vld [vmem:[%s0 + $0x5c] sm:$0xf]
  %v52 = vld [vmem:[%s0 + $0x60] sm:$0xf]
  %v53 = vld [vmem:[%s0 + $0x64] sm:$0xf]
  %v54 = vld [vmem:[%s0 + $0x68] sm:$0xf]
  %v55 = vld [vmem:[%s0 + $0x6c] sm:$0xf]
  %v56 = vld [vmem:[%s0 + $0x70] sm:$0xf]
  %v57 = vld [vmem:[%s0 + $0x74] sm:$0xf]
  %v58 = vld [vmem:[%s0 + $0x78] sm:$0xf]
  %v59 = vld [vmem:[%s0 + $0x7c] sm:$0xf]
  %v60 = vld [vmem:[%s0 + $0x80] sm:$0xf]
  %v61 = vld [vmem:[%s0 + $0x84] sm:$0xf]
  %v62 = vld [vmem:[%s0 + $0x88] sm:$0xf]
  %v63 = vld [vmem:[%s0 + $0x8c] sm:$0xf]
  %v64 = vld [vmem:[%s0 + $0x90] sm:$0xf]
  %v65 = vld [vmem:[%s0 + $0x94] sm:$0xf]
  %v66 = vld [vmem:[%s0 + $0x98] sm:$0xf]
  %v67 = vld [vmem:[%s0 + $0x9c] sm:$0xf]
  %v68 = vld [vmem:[%s0 + $0xa0] sm:$0xf]
  %v69 = vld [vmem:[%s0 + $0xa4] sm:$0xf]
  %v70 = vld [vmem:[%s0 + $0xa8] sm:$0xf]
  %v71 = vld [vmem:[%s0 + $0xac] sm:$0xf]
  %v72 = vld [vmem:[%s0 + $0xb0] sm:$0xf]
  %v73 = vld [vmem:[%s0 + $0xb4] sm:$0xf]
  %v74 = vld [vmem:[%s0 + $0xb8] sm:$0xf]
  %v75 = vld [vmem:[%s0 + $0xbc] sm:$0xf]
  %v76 = vld [vmem:[%s0 + $0xc0] sm:$0xf]
  %v77 = vld [vmem:[%s0 + $0xc4] sm:$0xf]
  %v78 = vld [vmem:[%s0 + $0xc8] sm:$0xf]
  %v79 = vld [vmem:[%s0 + $0xcc] sm:$0xf]
  %v80 = vld [vmem:[%s0 + $0xd0] sm:$0xf]
  %v81 = vld [vmem:[%s0 + $0xd4] sm:$0xf]
  %v82 = vld [vmem:[%s0 + $0xd8] sm:$0xf]
  %v83 = vld [vmem:[%s0 + $0xdc] sm:$0xf]
  %v84 = vld [vmem:[%s0 + $0xe0] sm:$0xf]
  %v85 = vld [vmem:[%s0 + $0xe4] sm:$0xf]
  %v86 = vld [vmem:[%s0 + $0xe8] sm:$0xf]
  %v87 = vld [vmem:[%s0 + $0xec] sm:$0xf]
  %v88 = vld [vmem:[%s0 + $0xf0] sm:$0xf]
  %v89 = vld [vmem:[%s0 + $0xf4] sm:$0xf]
  %v90 = vld [vmem:[%s0 + $0xf8] sm:$0xf]
  %v91 = vld [vmem:[%s0 + $0xfc] sm:$0xf]
  %v92 = vld [vmem:[%s2] sm:$0xf]
  %v93 = vld [vmem:[%s2 + $0x4] sm:$0xf]
  %v94 = vld [vmem:[%s2 + $0x8] sm:$0xf]
  %v95 = vld [vmem:[%s2 + $0xc] sm:$0xf]
  %v96 = vld [vmem:[%s2 + $0x10] sm:$0xf]
  %v97 = vld [vmem:[%s2 + $0x14] sm:$0xf]
  %v98 = vld [vmem:[%s2 + $0x18] sm:$0xf]
  %v99 = vld [vmem:[%s2 + $0x1c] sm:$0xf]
  %v100 = vld [vmem:[%s2 + $0x20] sm:$0xf]
  %v101 = vld [vmem:[%s2 + $0x24] sm:$0xf]
  %v102 = vld [vmem:[%s2 + $0x28] sm:$0xf]
  %v103 = vld [vmem:[%s2 + $0x2c] sm:$0xf]
  %v104 = vld [vmem:[%s2 + $0x30] sm:$0xf]
  %v105 = vld [vmem:[%s2 + $0x34] sm:$0xf]
  %v106 = vld [vmem:[%s2 + $0x38] sm:$0xf]
  %v107 = vld [vmem:[%s2 + $0x3c] sm:$0xf]
  %v108 = vld [vmem:[%s1] sm:$0xff]
  %v109 = vld [vmem:[%s1 + $0x8] sm:$0xff]
  %v110 = vld [vmem:[%s1 + $0x10] sm:$0xff]
  %v111 = vld [vmem:[%s1 + $0x18] sm:$0xff]
  %v112 = vld [vmem:[%s1 + $0x20] sm:$0xff]
  %v113 = vld [vmem:[%s1 + $0x28] sm:$0xff]
  %v114 = vld [vmem:[%s1 + $0x30] sm:$0xff]
  %v115 = vld [vmem:[%s1 + $0x38] sm:$0xff]
  %v116 = vld [vmem:[%s1 + $0x40] sm:$0xff]
  %v117 = vld [vmem:[%s1 + $0x48] sm:$0xff]
  %v118 = vld [vmem:[%s1 + $0x50] sm:$0xff]
  %v119 = vld [vmem:[%s1 + $0x58] sm:$0xff]
  %v120 = vld [vmem:[%s1 + $0x60] sm:$0xff]
  %v121 = vld [vmem:[%s1 + $0x68] sm:$0xff]
  %v122 = vld [vmem:[%s1 + $0x70] sm:$0xff]
  %v123 = vld [vmem:[%s1 + $0x78] sm:$0xff]
  %v124 = vld [vmem:[%s1 + $0x80] sm:$0xff]
  %v125 = vld [vmem:[%s1 + $0x88] sm:$0xff]
  %v126 = vld [vmem:[%s1 + $0x90] sm:$0xff]
  %v127 = vld [vmem:[%s1 + $0x98] sm:$0xff]
  %v128 = vld [vmem:[%s1 + $0xa0] sm:$0xff]
  %v129 = vld [vmem:[%s1 + $0xa8] sm:$0xff]
  %v130 = vld [vmem:[%s1 + $0xb0] sm:$0xff]
  %v131 = vld [vmem:[%s1 + $0xb8] sm:$0xff]
  %v132 = vld [vmem:[%s1 + $0xc0] sm:$0xff]
  %v133 = vld [vmem:[%s1 + $0xc8] sm:$0xff]
  %v134 = vld [vmem:[%s1 + $0xd0] sm:$0xff]
  %v135 = vld [vmem:[%s1 + $0xd8] sm:$0xff]
  %v136 = vld [vmem:[%s1 + $0xe0] sm:$0xff]
  %v137 = vld [vmem:[%s1 + $0xe8] sm:$0xff]
  %v138 = vld [vmem:[%s1 + $0xf0] sm:$0xff]
  %v139 = vld [vmem:[%s1 + $0xf8] sm:$0xff]
  %v140 = vld [vmem:[%s1 + $0x100] sm:$0xff]
  %v141 = vld [vmem:[%s1 + $0x108] sm:$0xff]
  %v142 = vld [vmem:[%s1 + $0x110] sm:$0xff]
  %v143 = vld [vmem:[%s1 + $0x118] sm:$0xff]
  %v144 = vld [vmem:[%s1 + $0x120] sm:$0xff]
  %v145 = vld [vmem:[%s1 + $0x128] sm:$0xff]
  %v146 = vld [vmem:[%s1 + $0x130] sm:$0xff]
  %v147 = vld [vmem:[%s1 + $0x138] sm:$0xff]
  %v148 = vld [vmem:[%s1 + $0x140] sm:$0xff]
  %v149 = vld [vmem:[%s1 + $0x148] sm:$0xff]
  %v150 = vld [vmem:[%s1 + $0x150] sm:$0xff]
  %v151 = vld [vmem:[%s1 + $0x158] sm:$0xff]
  %v152 = vld [vmem:[%s1 + $0x160] sm:$0xff]
  %v153 = vld [vmem:[%s1 + $0x168] sm:$0xff]
  %v154 = vld [vmem:[%s1 + $0x170] sm:$0xff]
  %v155 = vld [vmem:[%s1 + $0x178] sm:$0xff]
  %v156 = vld [vmem:[%s1 + $0x180] sm:$0xff]
  %v157 = vld [vmem:[%s1 + $0x188] sm:$0xff]
  %v158 = vld [vmem:[%s1 + $0x190] sm:$0xff]
  %v159 = vld [vmem:[%s1 + $0x198] sm:$0xff]
  %v160 = vld [vmem:[%s1 + $0x1a0] sm:$0xff]
  %v161 = vld [vmem:[%s1 + $0x1a8] sm:$0xff]
  %v162 = vld [vmem:[%s1 + $0x1b0] sm:$0xff]
  %v163 = vld [vmem:[%s1 + $0x1b8] sm:$0xff]
  %v164 = vld [vmem:[%s1 + $0x1c0] sm:$0xff]
  %v165 = vld [vmem:[%s1 + $0x1c8] sm:$0xff]
  %v166 = vld [vmem:[%s1 + $0x1d0] sm:$0xff]
  %v167 = vld [vmem:[%s1 + $0x1d8] sm:$0xff]
  %v168 = vld [vmem:[%s1 + $0x1e0] sm:$0xff]
  %v169 = vld [vmem:[%s1 + $0x1e8] sm:$0xff]
  %v170 = vld [vmem:[%s1 + $0x1f0] sm:$0xff]
  %v171 = vld [vmem:[%s1 + $0x1f8] sm:$0xff]
  %v172 = vld [vmem:[%s3] sm:$0xf]
  %v173 = vld [vmem:[%s3 + $0x4] sm:$0xf]
  %v174 = vld [vmem:[%s3 + $0x8] sm:$0xf]
  %v175 = vld [vmem:[%s3 + $0xc] sm:$0xf]
  %v176 = vld [vmem:[%s3 + $0x10] sm:$0xf]
  %v177 = vld [vmem:[%s3 + $0x14] sm:$0xf]
  %v178 = vld [vmem:[%s3 + $0x18] sm:$0xf]
  %v179 = vld [vmem:[%s3 + $0x1c] sm:$0xf]
  %v180 = vld [vmem:[%s3 + $0x20] sm:$0xf]
  %v181 = vld [vmem:[%s3 + $0x24] sm:$0xf]
  %v182 = vld [vmem:[%s3 + $0x28] sm:$0xf]
  %v183 = vld [vmem:[%s3 + $0x2c] sm:$0xf]
  %v184 = vld [vmem:[%s3 + $0x30] sm:$0xf]
  %v185 = vld [vmem:[%s3 + $0x34] sm:$0xf]
  %v186 = vld [vmem:[%s3 + $0x38] sm:$0xf]
  %v187 = vld [vmem:[%s3 + $0x3c] sm:$0xf]
  %v188 = vld [vmem:[%s3 + $0x40] sm:$0xf]
  %v189 = vld [vmem:[%s3 + $0x44] sm:$0xf]
  %v190 = vld [vmem:[%s3 + $0x48] sm:$0xf]
  %v191 = vld [vmem:[%s3 + $0x4c] sm:$0xf]
  %v192 = vld [vmem:[%s3 + $0x50] sm:$0xf]
  %v193 = vld [vmem:[%s3 + $0x54] sm:$0xf]
  %v194 = vld [vmem:[%s3 + $0x58] sm:$0xf]
  %v195 = vld [vmem:[%s3 + $0x5c] sm:$0xf]
  %v196 = vld [vmem:[%s3 + $0x60] sm:$0xf]
  %v197 = vld [vmem:[%s3 + $0x64] sm:$0xf]
  %v198 = vld [vmem:[%s3 + $0x68] sm:$0xf]
  %v199 = vld [vmem:[%s3 + $0x6c] sm:$0xf]
  %v200 = vld [vmem:[%s3 + $0x70] sm:$0xf]
  %v201 = vld [vmem:[%s3 + $0x74] sm:$0xf]
  %v202 = vld [vmem:[%s3 + $0x78] sm:$0xf]
  %v203 = vld [vmem:[%s3 + $0x7c] sm:$0xf]
  %v268 = vunpack.c.l.b16 %v108
  %v269 = vunpack.c.h.b16 %v108
  %v270 = vunpack.c.l.b16 %v109
  %v271 = vunpack.c.h.b16 %v109
  %v272 = vunpack.c.l.b16 %v110
  %v273 = vunpack.c.h.b16 %v110
  %v274 = vunpack.c.l.b16 %v111
  %v275 = vunpack.c.h.b16 %v111
  %v276 = vunpack.c.l.b16 %v112
  %v277 = vunpack.c.h.b16 %v112
  %v278 = vunpack.c.l.b16 %v113
  %v279 = vunpack.c.h.b16 %v113
  %v280 = vunpack.c.l.b16 %v114
  %v281 = vunpack.c.h.b16 %v114
  %v282 = vunpack.c.l.b16 %v115
  %v283 = vunpack.c.h.b16 %v115
  %v284 = vunpack.c.l.b16 %v116
  %v285 = vunpack.c.h.b16 %v116
  %v286 = vunpack.c.l.b16 %v117
  %v287 = vunpack.c.h.b16 %v117
  %v288 = vunpack.c.l.b16 %v118
  %v289 = vunpack.c.h.b16 %v118
  %v290 = vunpack.c.l.b16 %v119
  %v291 = vunpack.c.h.b16 %v119
  %v292 = vunpack.c.l.b16 %v120
  %v293 = vunpack.c.h.b16 %v120
  %v294 = vunpack.c.l.b16 %v121
  %v295 = vunpack.c.h.b16 %v121
  %v296 = vunpack.c.l.b16 %v122
  %v297 = vunpack.c.h.b16 %v122
  %v298 = vunpack.c.l.b16 %v123
  %v299 = vunpack.c.h.b16 %v123
  %v300 = vunpack.c.l.b16 %v124
  %v301 = vunpack.c.h.b16 %v124
  %v302 = vunpack.c.l.b16 %v125
  %v303 = vunpack.c.h.b16 %v125
  %v304 = vunpack.c.l.b16 %v126
  %v305 = vunpack.c.h.b16 %v126
  %v306 = vunpack.c.l.b16 %v127
  %v307 = vunpack.c.h.b16 %v127
  %v308 = vunpack.c.l.b16 %v128
  %v309 = vunpack.c.h.b16 %v128
  %v310 = vunpack.c.l.b16 %v129
  %v311 = vunpack.c.h.b16 %v129
  %v312 = vunpack.c.l.b16 %v130
  %v313 = vunpack.c.h.b16 %v130
  %v314 = vunpack.c.l.b16 %v131
  %v315 = vunpack.c.h.b16 %v131
  %v316 = vunpack.c.l.b16 %v132
  %v317 = vunpack.c.h.b16 %v132
  %v318 = vunpack.c.l.b16 %v133
  %v319 = vunpack.c.h.b16 %v133
  %v320 = vunpack.c.l.b16 %v134
  %v321 = vunpack.c.h.b16 %v134
  %v322 = vunpack.c.l.b16 %v135
  %v323 = vunpack.c.h.b16 %v135
  %v324 = vunpack.c.l.b16 %v136
  %v325 = vunpack.c.h.b16 %v136
  %v326 = vunpack.c.l.b16 %v137
  %v327 = vunpack.c.h.b16 %v137
  %v328 = vunpack.c.l.b16 %v138
  %v329 = vunpack.c.h.b16 %v138
  %v330 = vunpack.c.l.b16 %v139
  %v331 = vunpack.c.h.b16 %v139
  %v332 = vunpack.c.l.b16 %v140
  %v333 = vunpack.c.h.b16 %v140
  %v334 = vunpack.c.l.b16 %v141
  %v335 = vunpack.c.h.b16 %v141
  %v336 = vunpack.c.l.b16 %v142
  %v337 = vunpack.c.h.b16 %v142
  %v338 = vunpack.c.l.b16 %v143
  %v339 = vunpack.c.h.b16 %v143
  %v340 = vunpack.c.l.b16 %v144
  %v341 = vunpack.c.h.b16 %v144
  %v342 = vunpack.c.l.b16 %v145
  %v343 = vunpack.c.h.b16 %v145
  %v344 = vunpack.c.l.b16 %v146
  %v345 = vunpack.c.h.b16 %v146
  %v346 = vunpack.c.l.b16 %v147
  %v347 = vunpack.c.h.b16 %v147
  %v348 = vunpack.c.l.b16 %v148
  %v349 = vunpack.c.h.b16 %v148
  %v350 = vunpack.c.l.b16 %v149
  %v351 = vunpack.c.h.b16 %v149
  %v352 = vunpack.c.l.b16 %v150
  %v353 = vunpack.c.h.b16 %v150
  %v354 = vunpack.c.l.b16 %v151
  %v355 = vunpack.c.h.b16 %v151
  %v356 = vunpack.c.l.b16 %v152
  %v357 = vunpack.c.h.b16 %v152
  %v358 = vunpack.c.l.b16 %v153
  %v359 = vunpack.c.h.b16 %v153
  %v360 = vunpack.c.l.b16 %v154
  %v361 = vunpack.c.h.b16 %v154
  %v362 = vunpack.c.l.b16 %v155
  %v363 = vunpack.c.h.b16 %v155
  %v364 = vunpack.c.l.b16 %v156
  %v365 = vunpack.c.h.b16 %v156
  %v366 = vunpack.c.l.b16 %v157
  %v367 = vunpack.c.h.b16 %v157
  %v368 = vunpack.c.l.b16 %v158
  %v369 = vunpack.c.h.b16 %v158
  %v370 = vunpack.c.l.b16 %v159
  %v371 = vunpack.c.h.b16 %v159
  %v372 = vunpack.c.l.b16 %v160
  %v373 = vunpack.c.h.b16 %v160
  %v374 = vunpack.c.l.b16 %v161
  %v375 = vunpack.c.h.b16 %v161
  %v376 = vunpack.c.l.b16 %v162
  %v377 = vunpack.c.h.b16 %v162
  %v378 = vunpack.c.l.b16 %v163
  %v379 = vunpack.c.h.b16 %v163
  %v380 = vunpack.c.l.b16 %v164
  %v381 = vunpack.c.h.b16 %v164
  %v382 = vunpack.c.l.b16 %v165
  %v383 = vunpack.c.h.b16 %v165
  %v384 = vunpack.c.l.b16 %v166
  %v385 = vunpack.c.h.b16 %v166
  %v386 = vunpack.c.l.b16 %v167
  %v387 = vunpack.c.h.b16 %v167
  %v388 = vunpack.c.l.b16 %v168
  %v389 = vunpack.c.h.b16 %v168
  %v390 = vunpack.c.l.b16 %v169
  %v391 = vunpack.c.h.b16 %v169
  %v392 = vunpack.c.l.b16 %v170
  %v393 = vunpack.c.h.b16 %v170
  %v394 = vunpack.c.l.b16 %v171
  %v395 = vunpack.c.h.b16 %v171
  %v396 = vpack.c.b16 %v270, %v268
  %v397 = vpack.c.b16 %v271, %v269
  %v398 = vpack.c.b16 %v274, %v272
  %v399 = vpack.c.b16 %v275, %v273
  %v400 = vpack.c.b16 %v278, %v276
  %v401 = vpack.c.b16 %v279, %v277
  %v402 = vpack.c.b16 %v282, %v280
  %v403 = vpack.c.b16 %v283, %v281
  %v404 = vpack.c.b16 %v286, %v284
  %v405 = vpack.c.b16 %v287, %v285
  %v406 = vpack.c.b16 %v290, %v288
  %v407 = vpack.c.b16 %v291, %v289
  %v408 = vpack.c.b16 %v294, %v292
  %v409 = vpack.c.b16 %v295, %v293
  %v410 = vpack.c.b16 %v298, %v296
  %v411 = vpack.c.b16 %v299, %v297
  %v412 = vpack.c.b16 %v302, %v300
  %v413 = vpack.c.b16 %v303, %v301
  %v414 = vpack.c.b16 %v306, %v304
  %v415 = vpack.c.b16 %v307, %v305
  %v416 = vpack.c.b16 %v310, %v308
  %v417 = vpack.c.b16 %v311, %v309
  %v418 = vpack.c.b16 %v314, %v312
  %v419 = vpack.c.b16 %v315, %v313
  %v420 = vpack.c.b16 %v318, %v316
  %v421 = vpack.c.b16 %v319, %v317
  %v422 = vpack.c.b16 %v322, %v320
  %v423 = vpack.c.b16 %v323, %v321
  %v424 = vpack.c.b16 %v326, %v324
  %v425 = vpack.c.b16 %v327, %v325
  %v426 = vpack.c.b16 %v330, %v328
  %v427 = vpack.c.b16 %v331, %v329
  %v428 = vpack.c.b16 %v334, %v332
  %v429 = vpack.c.b16 %v335, %v333
  %v430 = vpack.c.b16 %v338, %v336
  %v431 = vpack.c.b16 %v339, %v337
  %v432 = vpack.c.b16 %v342, %v340
  %v433 = vpack.c.b16 %v343, %v341
  %v434 = vpack.c.b16 %v346, %v344
  %v435 = vpack.c.b16 %v347, %v345
  %v436 = vpack.c.b16 %v350, %v348
  %v437 = vpack.c.b16 %v351, %v349
  %v438 = vpack.c.b16 %v354, %v352
  %v439 = vpack.c.b16 %v355, %v353
  %v440 = vpack.c.b16 %v358, %v356
  %v441 = vpack.c.b16 %v359, %v357
  %v442 = vpack.c.b16 %v362, %v360
  %v443 = vpack.c.b16 %v363, %v361
  %v444 = vpack.c.b16 %v366, %v364
  %v445 = vpack.c.b16 %v367, %v365
  %v446 = vpack.c.b16 %v370, %v368
  %v447 = vpack.c.b16 %v371, %v369
  %v448 = vpack.c.b16 %v374, %v372
  %v449 = vpack.c.b16 %v375, %v373
  %v450 = vpack.c.b16 %v378, %v376
  %v451 = vpack.c.b16 %v379, %v377
  %v452 = vpack.c.b16 %v382, %v380
  %v453 = vpack.c.b16 %v383, %v381
  %v454 = vpack.c.b16 %v386, %v384
  %v455 = vpack.c.b16 %v387, %v385
  %v456 = vpack.c.b16 %v390, %v388
  %v457 = vpack.c.b16 %v391, %v389
  %v458 = vpack.c.b16 %v394, %v392
  %v459 = vpack.c.b16 %v395, %v393
  %v556 = vunpack.c.l.b16 %v172
  %v557 = vunpack.c.l.b16 %v173
  %v558 = vunpack.c.l.b16 %v174
  %v559 = vunpack.c.l.b16 %v175
  %v560 = vunpack.c.l.b16 %v176
  %v561 = vunpack.c.l.b16 %v177
  %v562 = vunpack.c.l.b16 %v178
  %v563 = vunpack.c.l.b16 %v179
  %v564 = vunpack.c.l.b16 %v180
  %v565 = vunpack.c.l.b16 %v181
  %v566 = vunpack.c.l.b16 %v182
  %v567 = vunpack.c.l.b16 %v183
  %v568 = vunpack.c.l.b16 %v184
  %v569 = vunpack.c.l.b16 %v185
  %v570 = vunpack.c.l.b16 %v186
  %v571 = vunpack.c.l.b16 %v187
  %v572 = vunpack.c.l.b16 %v188
  %v573 = vunpack.c.l.b16 %v189
  %v574 = vunpack.c.l.b16 %v190
  %v575 = vunpack.c.l.b16 %v191
  %v576 = vunpack.c.l.b16 %v192
  %v577 = vunpack.c.l.b16 %v193
  %v578 = vunpack.c.l.b16 %v194
  %v579 = vunpack.c.l.b16 %v195
  %v580 = vunpack.c.l.b16 %v196
  %v581 = vunpack.c.l.b16 %v197
  %v582 = vunpack.c.l.b16 %v198
  %v583 = vunpack.c.l.b16 %v199
  %v584 = vunpack.c.l.b16 %v200
  %v585 = vunpack.c.l.b16 %v201
  %v586 = vunpack.c.l.b16 %v202
  %v587 = vunpack.c.l.b16 %v203
  %v588 = vpack.c.b16 %v557, %v556
  %v589 = vpack.c.b16 %v559, %v558
  %v590 = vpack.c.b16 %v561, %v560
  %v591 = vpack.c.b16 %v563, %v562
  %v592 = vpack.c.b16 %v565, %v564
  %v593 = vpack.c.b16 %v567, %v566
  %v594 = vpack.c.b16 %v569, %v568
  %v595 = vpack.c.b16 %v571, %v570
  %v596 = vpack.c.b16 %v573, %v572
  %v597 = vpack.c.b16 %v575, %v574
  %v598 = vpack.c.b16 %v577, %v576
  %v599 = vpack.c.b16 %v579, %v578
  %v600 = vpack.c.b16 %v581, %v580
  %v601 = vpack.c.b16 %v583, %v582
  %v602 = vpack.c.b16 %v585, %v584
  %v603 = vpack.c.b16 %v587, %v586
  %620 = vmatprep.subr.bf16.mxu0 0
  %621 = vmatpush1.bf16.msra.mxu0 %v588
  %622 = vmatprep.subr.bf16.mxu0 0
  %623 = vmatpush1.bf16.msra.mxu0 %v589
  %624 = vmatprep.subr.bf16.mxu0 0
  %625 = vmatpush1.bf16.msra.mxu0 %v590
  %626 = vmatprep.subr.bf16.mxu0 0
  %627 = vmatpush1.bf16.msra.mxu0 %v591
  %628 = vmatprep.subr.bf16.mxu0 0
  %629 = vmatpush1.bf16.msra.mxu0 %v592
  %630 = vmatprep.subr.bf16.mxu0 0
  %631 = vmatpush1.bf16.msra.mxu0 %v593
  %632 = vmatprep.subr.bf16.mxu0 0
  %633 = vmatpush1.bf16.msra.mxu0 %v594
  %634 = vmatprep.subr.bf16.mxu0 0
  %635 = vmatpush1.bf16.msra.mxu0 %v595
  %636 = vmatprep.subr.bf16.mxu0 0
  %637 = vmatpush1.bf16.msra.mxu0 %v596
  %638 = vmatprep.subr.bf16.mxu0 0
  %639 = vmatpush1.bf16.msra.mxu0 %v597
  %640 = vmatprep.subr.bf16.mxu0 0
  %641 = vmatpush1.bf16.msra.mxu0 %v598
  %642 = vmatprep.subr.bf16.mxu0 0
  %643 = vmatpush1.bf16.msra.mxu0 %v599
  %644 = vmatprep.subr.bf16.mxu0 0
  %645 = vmatpush1.bf16.msra.mxu0 %v600
  %646 = vmatprep.subr.bf16.mxu0 0
  %647 = vmatpush1.bf16.msra.mxu0 %v601
  %648 = vmatprep.subr.bf16.mxu0 0
  %649 = vmatpush1.bf16.msra.mxu0 %v602
  %650 = vmatprep.subr.bf16.mxu0 0
  %651 = vmatpush1.bf16.msra.mxu0 %v603
  %652 = vmatprep.mubr.bf16.mxu0 %v397
  %653 = vmatmul.mubr.bf16.gmra.mrb[0].mxu0 %v396
  %v654 = vpop.f32.mrb[0].mxu0
  %v655 = vadd.f32 0.0, %v654
  %v656 = vpop.f32.mrb[0].mxu0
  %v657 = vpop.f32.mrb[0].mxu0
  %v658 = vadd.f32 0.0, %v657
  %v659 = vpop.f32.mrb[0].mxu0
  %660 = vmatprep.mubr.bf16.mxu0 %v399
  %661 = vmatmul.mubr.bf16.gmra.mrb[0].mxu0 %v398
  %v662 = vpop.f32.mrb[0].mxu0
  %v663 = vadd.f32 0.0, %v662
  %v664 = vpop.f32.mrb[0].mxu0
  %v665 = vpop.f32.mrb[0].mxu0
  %v666 = vadd.f32 0.0, %v665
  %v667 = vpop.f32.mrb[0].mxu0
  %668 = vmatprep.mubr.bf16.mxu0 %v401
  %669 = vmatmul.mubr.bf16.gmra.mrb[0].mxu0 %v400
  %v670 = vpop.f32.mrb[0].mxu0
  %v671 = vadd.f32 0.0, %v670
  %v672 = vpop.f32.mrb[0].mxu0
  %v673 = vpop.f32.mrb[0].mxu0
  %v674 = vadd.f32 0.0, %v673
  %v675 = vpop.f32.mrb[0].mxu0
  %676 = vmatprep.mubr.bf16.mxu0 %v403
  %677 = vmatmul.mubr.bf16.gmra.mrb[0].mxu0 %v402
  %v678 = vpop.f32.mrb[0].mxu0
  %v679 = vadd.f32 0.0, %v678
  %v680 = vpop.f32.mrb[0].mxu0
  %v681 = vpop.f32.mrb[0].mxu0
  %v682 = vadd.f32 0.0, %v681
  %v683 = vpop.f32.mrb[0].mxu0
  %684 = vmatprep.mubr.bf16.mxu0 %v405
  %685 = vmatmul.mubr.bf16.gmra.mrb[0].mxu0 %v404
  %v686 = vpop.f32.mrb[0].mxu0
  %v687 = vadd.f32 0.0, %v686
  %v688 = vpop.f32.mrb[0].mxu0
  %v689 = vpop.f32.mrb[0].mxu0
  %v690 = vadd.f32 0.0, %v689
  %v691 = vpop.f32.mrb[0].mxu0
  %692 = vmatprep.mubr.bf16.mxu0 %v407
  %693 = vmatmul.mubr.bf16.gmra.mrb[0].mxu0 %v406
  %v694 = vpop.f32.mrb[0].mxu0
  %v695 = vadd.f32 0.0, %v694
  %v696 = vpop.f32.mrb[0].mxu0
  %v697 = vpop.f32.mrb[0].mxu0
  %v698 = vadd.f32 0.0, %v697
  %v699 = vpop.f32.mrb[0].mxu0
  %700 = vmatprep.mubr.bf16.mxu0 %v409
  %701 = vmatmul.mubr.bf16.gmra.mrb[0].mxu0 %v408
  %v702 = vpop.f32.mrb[0].mxu0
  %v703 = vadd.f32 0.0, %v702
  %v704 = vpop.f32.mrb[0].mxu0
  %v705 = vpop.f32.mrb[0].mxu0
  %v706 = vadd.f32 0.0, %v705
  %v707 = vpop.f32.mrb[0].mxu0
  %708 = vmatprep.mubr.bf16.mxu0 %v411
  %709 = vmatmul.mubr.bf16.gmra.mrb[0].mxu0 %v410
  %v710 = vpop.f32.mrb[0].mxu0
  %v711 = vadd.f32 0.0, %v710
  %v712 = vpop.f32.mrb[0].mxu0
  %v713 = vpop.f32.mrb[0].mxu0
  %v714 = vadd.f32 0.0, %v713
  %v715 = vpop.f32.mrb[0].mxu0
  %716 = vmatprep.mubr.bf16.mxu0 %v413
  %717 = vmatmul.mubr.bf16.gmra.mrb[0].mxu0 %v412
  %v718 = vpop.f32.mrb[0].mxu0
  %v719 = vadd.f32 0.0, %v718
  %v720 = vpop.f32.mrb[0].mxu0
  %v721 = vpop.f32.mrb[0].mxu0
  %v722 = vadd.f32 0.0, %v721
  %v723 = vpop.f32.mrb[0].mxu0
  %724 = vmatprep.mubr.bf16.mxu0 %v415
  %725 = vmatmul.mubr.bf16.gmra.mrb[0].mxu0 %v414
  %v726 = vpop.f32.mrb[0].mxu0
  %v727 = vadd.f32 0.0, %v726
  %v728 = vpop.f32.mrb[0].mxu0
  %v729 = vpop.f32.mrb[0].mxu0
  %v730 = vadd.f32 0.0, %v729
  %v731 = vpop.f32.mrb[0].mxu0
  %732 = vmatprep.mubr.bf16.mxu0 %v417
  %733 = vmatmul.mubr.bf16.gmra.mrb[0].mxu0 %v416
  %v734 = vpop.f32.mrb[0].mxu0
  %v735 = vadd.f32 0.0, %v734
  %v736 = vpop.f32.mrb[0].mxu0
  %v737 = vpop.f32.mrb[0].mxu0
  %v738 = vadd.f32 0.0, %v737
  %v739 = vpop.f32.mrb[0].mxu0
  %740 = vmatprep.mubr.bf16.mxu0 %v419
  %741 = vmatmul.mubr.bf16.gmra.mrb[0].mxu0 %v418
  %v742 = vpop.f32.mrb[0].mxu0
  %v743 = vadd.f32 0.0, %v742
  %v744 = vpop.f32.mrb[0].mxu0
  %v745 = vpop.f32.mrb[0].mxu0
  %v746 = vadd.f32 0.0, %v745
  %v747 = vpop.f32.mrb[0].mxu0
  %748 = vmatprep.mubr.bf16.mxu0 %v421
  %749 = vmatmul.mubr.bf16.gmra.mrb[0].mxu0 %v420
  %v750 = vpop.f32.mrb[0].mxu0
  %v751 = vadd.f32 0.0, %v750
  %v752 = vpop.f32.mrb[0].mxu0
  %v753 = vpop.f32.mrb[0].mxu0
  %v754 = vadd.f32 0.0, %v753
  %v755 = vpop.f32.mrb[0].mxu0
  %756 = vmatprep.mubr.bf16.mxu0 %v423
  %757 = vmatmul.mubr.bf16.gmra.mrb[0].mxu0 %v422
  %v758 = vpop.f32.mrb[0].mxu0
  %v759 = vadd.f32 0.0, %v758
  %v760 = vpop.f32.mrb[0].mxu0
  %v761 = vpop.f32.mrb[0].mxu0
  %v762 = vadd.f32 0.0, %v761
  %v763 = vpop.f32.mrb[0].mxu0
  %764 = vmatprep.mubr.bf16.mxu0 %v425
  %765 = vmatmul.mubr.bf16.gmra.mrb[0].mxu0 %v424
  %v766 = vpop.f32.mrb[0].mxu0
  %v767 = vadd.f32 0.0, %v766
  %v768 = vpop.f32.mrb[0].mxu0
  %v769 = vpop.f32.mrb[0].mxu0
  %v770 = vadd.f32 0.0, %v769
  %v771 = vpop.f32.mrb[0].mxu0
  %772 = vmatprep.mubr.bf16.mxu0 %v427
  %773 = vmatmul.mubr.bf16.gmra.mrb[0].mxu0 %v426
  %v774 = vpop.f32.mrb[0].mxu0
  %v775 = vadd.f32 0.0, %v774
  %v776 = vpop.f32.mrb[0].mxu0
  %v777 = vpop.f32.mrb[0].mxu0
  %v778 = vadd.f32 0.0, %v777
  %v779 = vpop.f32.mrb[0].mxu0
  %780 = vmatprep.mubr.bf16.mxu0 %v429
  %781 = vmatmul.mubr.bf16.gmra.mrb[0].mxu0 %v428
  %v782 = vpop.f32.mrb[0].mxu0
  %v783 = vadd.f32 0.0, %v782
  %v784 = vpop.f32.mrb[0].mxu0
  %v785 = vpop.f32.mrb[0].mxu0
  %v786 = vadd.f32 0.0, %v785
  %v787 = vpop.f32.mrb[0].mxu0
  %788 = vmatprep.mubr.bf16.mxu0 %v431
  %789 = vmatmul.mubr.bf16.gmra.mrb[0].mxu0 %v430
  %v790 = vpop.f32.mrb[0].mxu0
  %v791 = vadd.f32 0.0, %v790
  %v792 = vpop.f32.mrb[0].mxu0
  %v793 = vpop.f32.mrb[0].mxu0
  %v794 = vadd.f32 0.0, %v793
  %v795 = vpop.f32.mrb[0].mxu0
  %796 = vmatprep.mubr.bf16.mxu0 %v433
  %797 = vmatmul.mubr.bf16.gmra.mrb[0].mxu0 %v432
  %v798 = vpop.f32.mrb[0].mxu0
  %v799 = vadd.f32 0.0, %v798
  %v800 = vpop.f32.mrb[0].mxu0
  %v801 = vpop.f32.mrb[0].mxu0
  %v802 = vadd.f32 0.0, %v801
  %v803 = vpop.f32.mrb[0].mxu0
  %804 = vmatprep.mubr.bf16.mxu0 %v435
  %805 = vmatmul.mubr.bf16.gmra.mrb[0].mxu0 %v434
  %v806 = vpop.f32.mrb[0].mxu0
  %v807 = vadd.f32 0.0, %v806
  %v808 = vpop.f32.mrb[0].mxu0
  %v809 = vpop.f32.mrb[0].mxu0
  %v810 = vadd.f32 0.0, %v809
  %v811 = vpop.f32.mrb[0].mxu0
  %812 = vmatprep.mubr.bf16.mxu0 %v437
  %813 = vmatmul.mubr.bf16.gmra.mrb[0].mxu0 %v436
  %v814 = vpop.f32.mrb[0].mxu0
  %v815 = vadd.f32 0.0, %v814
  %v816 = vpop.f32.mrb[0].mxu0
  %v817 = vpop.f32.mrb[0].mxu0
  %v818 = vadd.f32 0.0, %v817
  %v819 = vpop.f32.mrb[0].mxu0
  %820 = vmatprep.mubr.bf16.mxu0 %v439
  %821 = vmatmul.mubr.bf16.gmra.mrb[0].mxu0 %v438
  %v822 = vpop.f32.mrb[0].mxu0
  %v823 = vadd.f32 0.0, %v822
  %v824 = vpop.f32.mrb[0].mxu0
  %v825 = vpop.f32.mrb[0].mxu0
  %v826 = vadd.f32 0.0, %v825
  %v827 = vpop.f32.mrb[0].mxu0
  %828 = vmatprep.mubr.bf16.mxu0 %v441
  %829 = vmatmul.mubr.bf16.gmra.mrb[0].mxu0 %v440
  %v830 = vpop.f32.mrb[0].mxu0
  %v831 = vadd.f32 0.0, %v830
  %v832 = vpop.f32.mrb[0].mxu0
  %v833 = vpop.f32.mrb[0].mxu0
  %v834 = vadd.f32 0.0, %v833
  %v835 = vpop.f32.mrb[0].mxu0
  %836 = vmatprep.mubr.bf16.mxu0 %v443
  %837 = vmatmul.mubr.bf16.gmra.mrb[0].mxu0 %v442
  %v838 = vpop.f32.mrb[0].mxu0
  %v839 = vadd.f32 0.0, %v838
  %v840 = vpop.f32.mrb[0].mxu0
  %v841 = vpop.f32.mrb[0].mxu0
  %v842 = vadd.f32 0.0, %v841
  %v843 = vpop.f32.mrb[0].mxu0
  %844 = vmatprep.mubr.bf16.mxu0 %v445
  %845 = vmatmul.mubr.bf16.gmra.mrb[0].mxu0 %v444
  %v846 = vpop.f32.mrb[0].mxu0
  %v847 = vadd.f32 0.0, %v846
  %v848 = vpop.f32.mrb[0].mxu0
  %v849 = vpop.f32.mrb[0].mxu0
  %v850 = vadd.f32 0.0, %v849
  %v851 = vpop.f32.mrb[0].mxu0
  %852 = vmatprep.mubr.bf16.mxu0 %v447
  %853 = vmatmul.mubr.bf16.gmra.mrb[0].mxu0 %v446
  %v854 = vpop.f32.mrb[0].mxu0
  %v855 = vadd.f32 0.0, %v854
  %v856 = vpop.f32.mrb[0].mxu0
  %v857 = vpop.f32.mrb[0].mxu0
  %v858 = vadd.f32 0.0, %v857
  %v859 = vpop.f32.mrb[0].mxu0
  %860 = vmatprep.mubr.bf16.mxu0 %v449
  %861 = vmatmul.mubr.bf16.gmra.mrb[0].mxu0 %v448
  %v862 = vpop.f32.mrb[0].mxu0
  %v863 = vadd.f32 0.0, %v862
  %v864 = vpop.f32.mrb[0].mxu0
  %v865 = vpop.f32.mrb[0].mxu0
  %v866 = vadd.f32 0.0, %v865
  %v867 = vpop.f32.mrb[0].mxu0
  %868 = vmatprep.mubr.bf16.mxu0 %v451
  %869 = vmatmul.mubr.bf16.gmra.mrb[0].mxu0 %v450
  %v870 = vpop.f32.mrb[0].mxu0
  %v871 = vadd.f32 0.0, %v870
  %v872 = vpop.f32.mrb[0].mxu0
  %v873 = vpop.f32.mrb[0].mxu0
  %v874 = vadd.f32 0.0, %v873
  %v875 = vpop.f32.mrb[0].mxu0
  %876 = vmatprep.mubr.bf16.mxu0 %v453
  %877 = vmatmul.mubr.bf16.gmra.mrb[0].mxu0 %v452
  %v878 = vpop.f32.mrb[0].mxu0
  %v879 = vadd.f32 0.0, %v878
  %v880 = vpop.f32.mrb[0].mxu0
  %v881 = vpop.f32.mrb[0].mxu0
  %v882 = vadd.f32 0.0, %v881
  %v883 = vpop.f32.mrb[0].mxu0
  %884 = vmatprep.mubr.bf16.mxu0 %v455
  %885 = vmatmul.mubr.bf16.gmra.mrb[0].mxu0 %v454
  %v886 = vpop.f32.mrb[0].mxu0
  %v887 = vadd.f32 0.0, %v886
  %v888 = vpop.f32.mrb[0].mxu0
  %v889 = vpop.f32.mrb[0].mxu0
  %v890 = vadd.f32 0.0, %v889
  %v891 = vpop.f32.mrb[0].mxu0
  %892 = vmatprep.mubr.bf16.mxu0 %v457
  %893 = vmatmul.mubr.bf16.gmra.mrb[0].mxu0 %v456
  %v894 = vpop.f32.mrb[0].mxu0
  %v895 = vadd.f32 0.0, %v894
  %v896 = vpop.f32.mrb[0].mxu0
  %v897 = vpop.f32.mrb[0].mxu0
  %v898 = vadd.f32 0.0, %v897
  %v899 = vpop.f32.mrb[0].mxu0
  %900 = vmatprep.mubr.bf16.mxu0 %v459
  %901 = vmatmul.mubr.bf16.gmra.mrb[0].mxu0 %v458
  %v902 = vpop.f32.mrb[0].mxu0
  %v903 = vadd.f32 0.0, %v902
  %v904 = vpop.f32.mrb[0].mxu0
  %v905 = vpop.f32.mrb[0].mxu0
  %v906 = vadd.f32 0.0, %v905
  %v907 = vpop.f32.mrb[0].mxu0
  %908 = vdwg.mxu0
  %v973 = vunpack.c.l.b16 %v28
  %v974 = vunpack.c.l.b16 %v29
  %v975 = vunpack.c.l.b16 %v30
  %v976 = vunpack.c.l.b16 %v31
  %v977 = vunpack.c.l.b16 %v32
  %v978 = vunpack.c.l.b16 %v33
  %v979 = vunpack.c.l.b16 %v34
  %v980 = vunpack.c.l.b16 %v35
  %v981 = vunpack.c.l.b16 %v36
  %v982 = vunpack.c.l.b16 %v37
  %v983 = vunpack.c.l.b16 %v38
  %v984 = vunpack.c.l.b16 %v39
  %v985 = vunpack.c.l.b16 %v40
  %v986 = vunpack.c.l.b16 %v41
  %v987 = vunpack.c.l.b16 %v42
  %v988 = vunpack.c.l.b16 %v43
  %v989 = vunpack.c.l.b16 %v44
  %v990 = vunpack.c.l.b16 %v45
  %v991 = vunpack.c.l.b16 %v46
  %v992 = vunpack.c.l.b16 %v47
  %v993 = vunpack.c.l.b16 %v48
  %v994 = vunpack.c.l.b16 %v49
  %v995 = vunpack.c.l.b16 %v50
  %v996 = vunpack.c.l.b16 %v51
  %v997 = vunpack.c.l.b16 %v52
  %v998 = vunpack.c.l.b16 %v53
  %v999 = vunpack.c.l.b16 %v54
  %v1000 = vunpack.c.l.b16 %v55
  %v1001 = vunpack.c.l.b16 %v56
  %v1002 = vunpack.c.l.b16 %v57
  %v1003 = vunpack.c.l.b16 %v58
  %v1004 = vunpack.c.l.b16 %v59
  %v1005 = vunpack.c.l.b16 %v60
  %v1006 = vunpack.c.l.b16 %v61
  %v1007 = vunpack.c.l.b16 %v62
  %v1008 = vunpack.c.l.b16 %v63
  %v1009 = vunpack.c.l.b16 %v64
  %v1010 = vunpack.c.l.b16 %v65
  %v1011 = vunpack.c.l.b16 %v66
  %v1012 = vunpack.c.l.b16 %v67
  %v1013 = vunpack.c.l.b16 %v68
  %v1014 = vunpack.c.l.b16 %v69
  %v1015 = vunpack.c.l.b16 %v70
  %v1016 = vunpack.c.l.b16 %v71
  %v1017 = vunpack.c.l.b16 %v72
  %v1018 = vunpack.c.l.b16 %v73
  %v1019 = vunpack.c.l.b16 %v74
  %v1020 = vunpack.c.l.b16 %v75
  %v1021 = vunpack.c.l.b16 %v76
  %v1022 = vunpack.c.l.b16 %v77
  %v1023 = vunpack.c.l.b16 %v78
  %v1024 = vunpack.c.l.b16 %v79
  %v1025 = vunpack.c.l.b16 %v80
  %v1026 = vunpack.c.l.b16 %v81
  %v1027 = vunpack.c.l.b16 %v82
  %v1028 = vunpack.c.l.b16 %v83
  %v1029 = vunpack.c.l.b16 %v84
  %v1030 = vunpack.c.l.b16 %v85
  %v1031 = vunpack.c.l.b16 %v86
  %v1032 = vunpack.c.l.b16 %v87
  %v1033 = vunpack.c.l.b16 %v88
  %v1034 = vunpack.c.l.b16 %v89
  %v1035 = vunpack.c.l.b16 %v90
  %v1036 = vunpack.c.l.b16 %v91
  %v1037 = vpack.c.b16 %v974, %v973
  %v1038 = vpack.c.b16 %v976, %v975
  %v1039 = vpack.c.b16 %v978, %v977
  %v1040 = vpack.c.b16 %v980, %v979
  %v1041 = vpack.c.b16 %v982, %v981
  %v1042 = vpack.c.b16 %v984, %v983
  %v1043 = vpack.c.b16 %v986, %v985
  %v1044 = vpack.c.b16 %v988, %v987
  %v1045 = vpack.c.b16 %v990, %v989
  %v1046 = vpack.c.b16 %v992, %v991
  %v1047 = vpack.c.b16 %v994, %v993
  %v1048 = vpack.c.b16 %v996, %v995
  %v1049 = vpack.c.b16 %v998, %v997
  %v1050 = vpack.c.b16 %v1000, %v999
  %v1051 = vpack.c.b16 %v1002, %v1001
  %v1052 = vpack.c.b16 %v1004, %v1003
  %v1053 = vpack.c.b16 %v1006, %v1005
  %v1054 = vpack.c.b16 %v1008, %v1007
  %v1055 = vpack.c.b16 %v1010, %v1009
  %v1056 = vpack.c.b16 %v1012, %v1011
  %v1057 = vpack.c.b16 %v1014, %v1013
  %v1058 = vpack.c.b16 %v1016, %v1015
  %v1059 = vpack.c.b16 %v1018, %v1017
  %v1060 = vpack.c.b16 %v1020, %v1019
  %v1061 = vpack.c.b16 %v1022, %v1021
  %v1062 = vpack.c.b16 %v1024, %v1023
  %v1063 = vpack.c.b16 %v1026, %v1025
  %v1064 = vpack.c.b16 %v1028, %v1027
  %v1065 = vpack.c.b16 %v1030, %v1029
  %v1066 = vpack.c.b16 %v1032, %v1031
  %v1067 = vpack.c.b16 %v1034, %v1033
  %v1068 = vpack.c.b16 %v1036, %v1035
  %v1117 = vunpack.c.l.b16 %v92
  %v1118 = vunpack.c.l.b16 %v93
  %v1119 = vunpack.c.l.b16 %v94
  %v1120 = vunpack.c.l.b16 %v95
  %v1121 = vunpack.c.l.b16 %v96
  %v1122 = vunpack.c.l.b16 %v97
  %v1123 = vunpack.c.l.b16 %v98
  %v1124 = vunpack.c.l.b16 %v99
  %v1125 = vunpack.c.l.b16 %v100
  %v1126 = vunpack.c.l.b16 %v101
  %v1127 = vunpack.c.l.b16 %v102
  %v1128 = vunpack.c.l.b16 %v103
  %v1129 = vunpack.c.l.b16 %v104
  %v1130 = vunpack.c.l.b16 %v105
  %v1131 = vunpack.c.l.b16 %v106
  %v1132 = vunpack.c.l.b16 %v107
  %v1133 = vpack.c.b16 %v1118, %v1117
  %v1134 = vpack.c.b16 %v1120, %v1119
  %v1135 = vpack.c.b16 %v1122, %v1121
  %v1136 = vpack.c.b16 %v1124, %v1123
  %v1137 = vpack.c.b16 %v1126, %v1125
  %v1138 = vpack.c.b16 %v1128, %v1127
  %v1139 = vpack.c.b16 %v1130, %v1129
  %v1140 = vpack.c.b16 %v1132, %v1131
  %1149 = vmatprep.subr.bf16.mxu0 0
  %1150 = vmatpush1.bf16.msra.mxu0 %v1133
  %1151 = vmatprep.subr.bf16.mxu0 0
  %1152 = vmatpush1.bf16.msra.mxu0 %v1134
  %1153 = vmatprep.subr.bf16.mxu0 0
  %1154 = vmatpush1.bf16.msra.mxu0 %v1135
  %1155 = vmatprep.subr.bf16.mxu0 0
  %1156 = vmatpush1.bf16.msra.mxu0 %v1136
  %1157 = vmatprep.subr.bf16.mxu0 0
  %1158 = vmatpush1.bf16.msra.mxu0 %v1137
  %1159 = vmatprep.subr.bf16.mxu0 0
  %1160 = vmatpush1.bf16.msra.mxu0 %v1138
  %1161 = vmatprep.subr.bf16.mxu0 0
  %1162 = vmatpush1.bf16.msra.mxu0 %v1139
  %1163 = vmatprep.subr.bf16.mxu0 0
  %1164 = vmatpush1.bf16.msra.mxu0 %v1140
  %1165 = vmatprep.subr.bf16.mxu0 0
  %1166 = vmatpush1.bf16.msra.mxu0 0
  %1167 = vmatprep.subr.bf16.mxu0 0
  %1168 = vmatpush1.bf16.msra.mxu0 0
  %1169 = vmatprep.subr.bf16.mxu0 0
  %1170 = vmatpush1.bf16.msra.mxu0 0
  %1171 = vmatprep.subr.bf16.mxu0 0
  %1172 = vmatpush1.bf16.msra.mxu0 0
  %1173 = vmatprep.subr.bf16.mxu0 0
  %1174 = vmatpush1.bf16.msra.mxu0 0
  %1175 = vmatprep.subr.bf16.mxu0 0
  %1176 = vmatpush1.bf16.msra.mxu0 0
  %1177 = vmatprep.subr.bf16.mxu0 0
  %1178 = vmatpush1.bf16.msra.mxu0 0
  %1179 = vmatprep.subr.bf16.mxu0 0
  %1180 = vmatpush1.bf16.msra.mxu0 0
  %1181 = vmatprep.mubr.bf16.mxu0 0
  %1182 = vmatmul.mubr.bf16.gmra.mrb[0].mxu0 %v1037
  %v1183 = vpop.f32.mrb[0].mxu0
  %v1184 = vadd.f32 %v655, %v1183
  %v1185 = vpop.f32.mrb[0].mxu0
  %v1186 = vpop.f32.mrb[0].mxu0
  %v1187 = vadd.f32 %v658, %v1186
  %v1188 = vpop.f32.mrb[0].mxu0
  %1189 = vmatprep.mubr.bf16.mxu0 0
  %1190 = vmatmul.mubr.bf16.gmra.mrb[0].mxu0 %v1038
  %v1191 = vpop.f32.mrb[0].mxu0
  %v1192 = vadd.f32 %v663, %v1191
  %v1193 = vpop.f32.mrb[0].mxu0
  %v1194 = vpop.f32.mrb[0].mxu0
  %v1195 = vadd.f32 %v666, %v1194
  %v1196 = vpop.f32.mrb[0].mxu0
  %1197 = vmatprep.mubr.bf16.mxu0 0
  %1198 = vmatmul.mubr.bf16.gmra.mrb[0].mxu0 %v1039
  %v1199 = vpop.f32.mrb[0].mxu0
  %v1200 = vadd.f32 %v671, %v1199
  %v1201 = vpop.f32.mrb[0].mxu0
  %v1202 = vpop.f32.mrb[0].mxu0
  %v1203 = vadd.f32 %v674, %v1202
  %v1204 = vpop.f32.mrb[0].mxu0
  %1205 = vmatprep.mubr.bf16.mxu0 0
  %1206 = vmatmul.mubr.bf16.gmra.mrb[0].mxu0 %v1040
  %v1207 = vpop.f32.mrb[0].mxu0
  %v1208 = vadd.f32 %v679, %v1207
  %v1209 = vpop.f32.mrb[0].mxu0
  %v1210 = vpop.f32.mrb[0].mxu0
  %v1211 = vadd.f32 %v682, %v1210
  %v1212 = vpop.f32.mrb[0].mxu0
  %1213 = vmatprep.mubr.bf16.mxu0 0
  %1214 = vmatmul.mubr.bf16.gmra.mrb[0].mxu0 %v1041
  %v1215 = vpop.f32.mrb[0].mxu0
  %v1216 = vadd.f32 %v687, %v1215
  %v1217 = vpop.f32.mrb[0].mxu0
  %v1218 = vpop.f32.mrb[0].mxu0
  %v1219 = vadd.f32 %v690, %v1218
  %v1220 = vpop.f32.mrb[0].mxu0
  %1221 = vmatprep.mubr.bf16.mxu0 0
  %1222 = vmatmul.mubr.bf16.gmra.mrb[0].mxu0 %v1042
  %v1223 = vpop.f32.mrb[0].mxu0
  %v1224 = vadd.f32 %v695, %v1223
  %v1225 = vpop.f32.mrb[0].mxu0
  %v1226 = vpop.f32.mrb[0].mxu0
  %v1227 = vadd.f32 %v698, %v1226
  %v1228 = vpop.f32.mrb[0].mxu0
  %1229 = vmatprep.mubr.bf16.mxu0 0
  %1230 = vmatmul.mubr.bf16.gmra.mrb[0].mxu0 %v1043
  %v1231 = vpop.f32.mrb[0].mxu0
  %v1232 = vadd.f32 %v703, %v1231
  %v1233 = vpop.f32.mrb[0].mxu0
  %v1234 = vpop.f32.mrb[0].mxu0
  %v1235 = vadd.f32 %v706, %v1234
  %v1236 = vpop.f32.mrb[0].mxu0
  %1237 = vmatprep.mubr.bf16.mxu0 0
  %1238 = vmatmul.mubr.bf16.gmra.mrb[0].mxu0 %v1044
  %v1239 = vpop.f32.mrb[0].mxu0
  %v1240 = vadd.f32 %v711, %v1239
  %v1241 = vpop.f32.mrb[0].mxu0
  %v1242 = vpop.f32.mrb[0].mxu0
  %v1243 = vadd.f32 %v714, %v1242
  %v1244 = vpop.f32.mrb[0].mxu0
  %1245 = vmatprep.mubr.bf16.mxu0 0
  %1246 = vmatmul.mubr.bf16.gmra.mrb[0].mxu0 %v1045
  %v1247 = vpop.f32.mrb[0].mxu0
  %v1248 = vadd.f32 %v719, %v1247
  %v1249 = vpop.f32.mrb[0].mxu0
  %v1250 = vpop.f32.mrb[0].mxu0
  %v1251 = vadd.f32 %v722, %v1250
  %v1252 = vpop.f32.mrb[0].mxu0
  %1253 = vmatprep.mubr.bf16.mxu0 0
  %1254 = vmatmul.mubr.bf16.gmra.mrb[0].mxu0 %v1046
  %v1255 = vpop.f32.mrb[0].mxu0
  %v1256 = vadd.f32 %v727, %v1255
  %v1257 = vpop.f32.mrb[0].mxu0
  %v1258 = vpop.f32.mrb[0].mxu0
  %v1259 = vadd.f32 %v730, %v1258
  %v1260 = vpop.f32.mrb[0].mxu0
  %1261 = vmatprep.mubr.bf16.mxu0 0
  %1262 = vmatmul.mubr.bf16.gmra.mrb[0].mxu0 %v1047
  %v1263 = vpop.f32.mrb[0].mxu0
  %v1264 = vadd.f32 %v735, %v1263
  %v1265 = vpop.f32.mrb[0].mxu0
  %v1266 = vpop.f32.mrb[0].mxu0
  %v1267 = vadd.f32 %v738, %v1266
  %v1268 = vpop.f32.mrb[0].mxu0
  %1269 = vmatprep.mubr.bf16.mxu0 0
  %1270 = vmatmul.mubr.bf16.gmra.mrb[0].mxu0 %v1048
  %v1271 = vpop.f32.mrb[0].mxu0
  %v1272 = vadd.f32 %v743, %v1271
  %v1273 = vpop.f32.mrb[0].mxu0
  %v1274 = vpop.f32.mrb[0].mxu0
  %v1275 = vadd.f32 %v746, %v1274
  %v1276 = vpop.f32.mrb[0].mxu0
  %1277 = vmatprep.mubr.bf16.mxu0 0
  %1278 = vmatmul.mubr.bf16.gmra.mrb[0].mxu0 %v1049
  %v1279 = vpop.f32.mrb[0].mxu0
  %v1280 = vadd.f32 %v751, %v1279
  %v1281 = vpop.f32.mrb[0].mxu0
  %v1282 = vpop.f32.mrb[0].mxu0
  %v1283 = vadd.f32 %v754, %v1282
  %v1284 = vpop.f32.mrb[0].mxu0
  %1285 = vmatprep.mubr.bf16.mxu0 0
  %1286 = vmatmul.mubr.bf16.gmra.mrb[0].mxu0 %v1050
  %v1287 = vpop.f32.mrb[0].mxu0
  %v1288 = vadd.f32 %v759, %v1287
  %v1289 = vpop.f32.mrb[0].mxu0
  %v1290 = vpop.f32.mrb[0].mxu0
  %v1291 = vadd.f32 %v762, %v1290
  %v1292 = vpop.f32.mrb[0].mxu0
  %1293 = vmatprep.mubr.bf16.mxu0 0
  %1294 = vmatmul.mubr.bf16.gmra.mrb[0].mxu0 %v1051
  %v1295 = vpop.f32.mrb[0].mxu0
  %v1296 = vadd.f32 %v767, %v1295
  %v1297 = vpop.f32.mrb[0].mxu0
  %v1298 = vpop.f32.mrb[0].mxu0
  %v1299 = vadd.f32 %v770, %v1298
  %v1300 = vpop.f32.mrb[0].mxu0
  %1301 = vmatprep.mubr.bf16.mxu0 0
  %1302 = vmatmul.mubr.bf16.gmra.mrb[0].mxu0 %v1052
  %v1303 = vpop.f32.mrb[0].mxu0
  %v1304 = vadd.f32 %v775, %v1303
  %v1305 = vpop.f32.mrb[0].mxu0
  %v1306 = vpop.f32.mrb[0].mxu0
  %v1307 = vadd.f32 %v778, %v1306
  %v1308 = vpop.f32.mrb[0].mxu0
  %1309 = vmatprep.mubr.bf16.mxu0 0
  %1310 = vmatmul.mubr.bf16.gmra.mrb[0].mxu0 %v1053
  %v1311 = vpop.f32.mrb[0].mxu0
  %v1312 = vadd.f32 %v783, %v1311
  %v1313 = vpop.f32.mrb[0].mxu0
  %v1314 = vpop.f32.mrb[0].mxu0
  %v1315 = vadd.f32 %v786, %v1314
  %v1316 = vpop.f32.mrb[0].mxu0
  %1317 = vmatprep.mubr.bf16.mxu0 0
  %1318 = vmatmul.mubr.bf16.gmra.mrb[0].mxu0 %v1054
  %v1319 = vpop.f32.mrb[0].mxu0
  %v1320 = vadd.f32 %v791, %v1319
  %v1321 = vpop.f32.mrb[0].mxu0
  %v1322 = vpop.f32.mrb[0].mxu0
  %v1323 = vadd.f32 %v794, %v1322
  %v1324 = vpop.f32.mrb[0].mxu0
  %1325 = vmatprep.mubr.bf16.mxu0 0
  %1326 = vmatmul.mubr.bf16.gmra.mrb[0].mxu0 %v1055
  %v1327 = vpop.f32.mrb[0].mxu0
  %v1328 = vadd.f32 %v799, %v1327
  %v1329 = vpop.f32.mrb[0].mxu0
  %v1330 = vpop.f32.mrb[0].mxu0
  %v1331 = vadd.f32 %v802, %v1330
  %v1332 = vpop.f32.mrb[0].mxu0
  %1333 = vmatprep.mubr.bf16.mxu0 0
  %1334 = vmatmul.mubr.bf16.gmra.mrb[0].mxu0 %v1056
  %v1335 = vpop.f32.mrb[0].mxu0
  %v1336 = vadd.f32 %v807, %v1335
  %v1337 = vpop.f32.mrb[0].mxu0
  %v1338 = vpop.f32.mrb[0].mxu0
  %v1339 = vadd.f32 %v810, %v1338
  %v1340 = vpop.f32.mrb[0].mxu0
  %1341 = vmatprep.mubr.bf16.mxu0 0
  %1342 = vmatmul.mubr.bf16.gmra.mrb[0].mxu0 %v1057
  %v1343 = vpop.f32.mrb[0].mxu0
  %v1344 = vadd.f32 %v815, %v1343
  %v1345 = vpop.f32.mrb[0].mxu0
  %v1346 = vpop.f32.mrb[0].mxu0
  %v1347 = vadd.f32 %v818, %v1346
  %v1348 = vpop.f32.mrb[0].mxu0
  %1349 = vmatprep.mubr.bf16.mxu0 0
  %1350 = vmatmul.mubr.bf16.gmra.mrb[0].mxu0 %v1058
  %v1351 = vpop.f32.mrb[0].mxu0
  %v1352 = vadd.f32 %v823, %v1351
  %v1353 = vpop.f32.mrb[0].mxu0
  %v1354 = vpop.f32.mrb[0].mxu0
  %v1355 = vadd.f32 %v826, %v1354
  %v1356 = vpop.f32.mrb[0].mxu0
  %1357 = vmatprep.mubr.bf16.mxu0 0
  %1358 = vmatmul.mubr.bf16.gmra.mrb[0].mxu0 %v1059
  %v1359 = vpop.f32.mrb[0].mxu0
  %v1360 = vadd.f32 %v831, %v1359
  %v1361 = vpop.f32.mrb[0].mxu0
  %v1362 = vpop.f32.mrb[0].mxu0
  %v1363 = vadd.f32 %v834, %v1362
  %v1364 = vpop.f32.mrb[0].mxu0
  %1365 = vmatprep.mubr.bf16.mxu0 0
  %1366 = vmatmul.mubr.bf16.gmra.mrb[0].mxu0 %v1060
  %v1367 = vpop.f32.mrb[0].mxu0
  %v1368 = vadd.f32 %v839, %v1367
  %v1369 = vpop.f32.mrb[0].mxu0
  %v1370 = vpop.f32.mrb[0].mxu0
  %v1371 = vadd.f32 %v842, %v1370
  %v1372 = vpop.f32.mrb[0].mxu0
  %1373 = vmatprep.mubr.bf16.mxu0 0
  %1374 = vmatmul.mubr.bf16.gmra.mrb[0].mxu0 %v1061
  %v1375 = vpop.f32.mrb[0].mxu0
  %v1376 = vadd.f32 %v847, %v1375
  %v1377 = vpop.f32.mrb[0].mxu0
  %v1378 = vpop.f32.mrb[0].mxu0
  %v1379 = vadd.f32 %v850, %v1378
  %v1380 = vpop.f32.mrb[0].mxu0
  %1381 = vmatprep.mubr.bf16.mxu0 0
  %1382 = vmatmul.mubr.bf16.gmra.mrb[0].mxu0 %v1062
  %v1383 = vpop.f32.mrb[0].mxu0
  %v1384 = vadd.f32 %v855, %v1383
  %v1385 = vpop.f32.mrb[0].mxu0
  %v1386 = vpop.f32.mrb[0].mxu0
  %v1387 = vadd.f32 %v858, %v1386
  %v1388 = vpop.f32.mrb[0].mxu0
  %1389 = vmatprep.mubr.bf16.mxu0 0
  %1390 = vmatmul.mubr.bf16.gmra.mrb[0].mxu0 %v1063
  %v1391 = vpop.f32.mrb[0].mxu0
  %v1392 = vadd.f32 %v863, %v1391
  %v1393 = vpop.f32.mrb[0].mxu0
  %v1394 = vpop.f32.mrb[0].mxu0
  %v1395 = vadd.f32 %v866, %v1394
  %v1396 = vpop.f32.mrb[0].mxu0
  %1397 = vmatprep.mubr.bf16.mxu0 0
  %1398 = vmatmul.mubr.bf16.gmra.mrb[0].mxu0 %v1064
  %v1399 = vpop.f32.mrb[0].mxu0
  %v1400 = vadd.f32 %v871, %v1399
  %v1401 = vpop.f32.mrb[0].mxu0
  %v1402 = vpop.f32.mrb[0].mxu0
  %v1403 = vadd.f32 %v874, %v1402
  %v1404 = vpop.f32.mrb[0].mxu0
  %1405 = vmatprep.mubr.bf16.mxu0 0
  %1406 = vmatmul.mubr.bf16.gmra.mrb[0].mxu0 %v1065
  %v1407 = vpop.f32.mrb[0].mxu0
  %v1408 = vadd.f32 %v879, %v1407
  %v1409 = vpop.f32.mrb[0].mxu0
  %v1410 = vpop.f32.mrb[0].mxu0
  %v1411 = vadd.f32 %v882, %v1410
  %v1412 = vpop.f32.mrb[0].mxu0
  %1413 = vmatprep.mubr.bf16.mxu0 0
  %1414 = vmatmul.mubr.bf16.gmra.mrb[0].mxu0 %v1066
  %v1415 = vpop.f32.mrb[0].mxu0
  %v1416 = vadd.f32 %v887, %v1415
  %v1417 = vpop.f32.mrb[0].mxu0
  %v1418 = vpop.f32.mrb[0].mxu0
  %v1419 = vadd.f32 %v890, %v1418
  %v1420 = vpop.f32.mrb[0].mxu0
  %1421 = vmatprep.mubr.bf16.mxu0 0
  %1422 = vmatmul.mubr.bf16.gmra.mrb[0].mxu0 %v1067
  %v1423 = vpop.f32.mrb[0].mxu0
  %v1424 = vadd.f32 %v895, %v1423
  %v1425 = vpop.f32.mrb[0].mxu0
  %v1426 = vpop.f32.mrb[0].mxu0
  %v1427 = vadd.f32 %v898, %v1426
  %v1428 = vpop.f32.mrb[0].mxu0
  %1429 = vmatprep.mubr.bf16.mxu0 0
  %1430 = vmatmul.mubr.bf16.gmra.mrb[0].mxu0 %v1068
  %v1431 = vpop.f32.mrb[0].mxu0
  %v1432 = vadd.f32 %v903, %v1431
  %v1433 = vpop.f32.mrb[0].mxu0
  %v1434 = vpop.f32.mrb[0].mxu0
  %v1435 = vadd.f32 %v906, %v1434
  %v1436 = vpop.f32.mrb[0].mxu0
  %1437 = vdwg.mxu0
  %v1438 = vlaneseq
  %v1439 = vshrl.u32 %v1438, 7
  %v1440 = vsub.s32 0, %v1439
  %v1441 = vrot.slane %v27, %v1440
  %v1442 = vadd.f32 %v1184, %v1441
  %v1443 = vadd.f32 %v1187, %v1441
  %v1444 = vadd.f32 %v1192, %v1441
  %v1445 = vadd.f32 %v1195, %v1441
  %v1446 = vadd.f32 %v1200, %v1441
  %v1447 = vadd.f32 %v1203, %v1441
  %v1448 = vadd.f32 %v1208, %v1441
  %v1449 = vadd.f32 %v1211, %v1441
  %v1450 = vadd.f32 %v1216, %v1441
  %v1451 = vadd.f32 %v1219, %v1441
  %v1452 = vadd.f32 %v1224, %v1441
  %v1453 = vadd.f32 %v1227, %v1441
  %v1454 = vadd.f32 %v1232, %v1441
  %v1455 = vadd.f32 %v1235, %v1441
  %v1456 = vadd.f32 %v1240, %v1441
  %v1457 = vadd.f32 %v1243, %v1441
  %v1458 = vadd.f32 %v1248, %v1441
  %v1459 = vadd.f32 %v1251, %v1441
  %v1460 = vadd.f32 %v1256, %v1441
  %v1461 = vadd.f32 %v1259, %v1441
  %v1462 = vadd.f32 %v1264, %v1441
  %v1463 = vadd.f32 %v1267, %v1441
  %v1464 = vadd.f32 %v1272, %v1441
  %v1465 = vadd.f32 %v1275, %v1441
  %v1466 = vadd.f32 %v1280, %v1441
  %v1467 = vadd.f32 %v1283, %v1441
  %v1468 = vadd.f32 %v1288, %v1441
  %v1469 = vadd.f32 %v1291, %v1441
  %v1470 = vadd.f32 %v1296, %v1441
  %v1471 = vadd.f32 %v1299, %v1441
  %v1472 = vadd.f32 %v1304, %v1441
  %v1473 = vadd.f32 %v1307, %v1441
  %v1474 = vadd.f32 %v1312, %v1441
  %v1475 = vadd.f32 %v1315, %v1441
  %v1476 = vadd.f32 %v1320, %v1441
  %v1477 = vadd.f32 %v1323, %v1441
  %v1478 = vadd.f32 %v1328, %v1441
  %v1479 = vadd.f32 %v1331, %v1441
  %v1480 = vadd.f32 %v1336, %v1441
  %v1481 = vadd.f32 %v1339, %v1441
  %v1482 = vadd.f32 %v1344, %v1441
  %v1483 = vadd.f32 %v1347, %v1441
  %v1484 = vadd.f32 %v1352, %v1441
  %v1485 = vadd.f32 %v1355, %v1441
  %v1486 = vadd.f32 %v1360, %v1441
  %v1487 = vadd.f32 %v1363, %v1441
  %v1488 = vadd.f32 %v1368, %v1441
  %v1489 = vadd.f32 %v1371, %v1441
  %v1490 = vadd.f32 %v1376, %v1441
  %v1491 = vadd.f32 %v1379, %v1441
  %v1492 = vadd.f32 %v1384, %v1441
  %v1493 = vadd.f32 %v1387, %v1441
  %v1494 = vadd.f32 %v1392, %v1441
  %v1495 = vadd.f32 %v1395, %v1441
  %v1496 = vadd.f32 %v1400, %v1441
  %v1497 = vadd.f32 %v1403, %v1441
  %v1498 = vadd.f32 %v1408, %v1441
  %v1499 = vadd.f32 %v1411, %v1441
  %v1500 = vadd.f32 %v1416, %v1441
  %v1501 = vadd.f32 %v1419, %v1441
  %v1502 = vadd.f32 %v1424, %v1441
  %v1503 = vadd.f32 %v1427, %v1441
  %v1504 = vadd.f32 %v1432, %v1441
  %v1505 = vadd.f32 %v1435, %v1441
  %v1506 = vmax.f32 %v1442, 0.0
  %v1507 = vmax.f32 %v1443, 0.0
  %v1508 = vmax.f32 %v1444, 0.0
  %v1509 = vmax.f32 %v1445, 0.0
  %v1510 = vmax.f32 %v1446, 0.0
  %v1511 = vmax.f32 %v1447, 0.0
  %v1512 = vmax.f32 %v1448, 0.0
  %v1513 = vmax.f32 %v1449, 0.0
  %v1514 = vmax.f32 %v1450, 0.0
  %v1515 = vmax.f32 %v1451, 0.0
  %v1516 = vmax.f32 %v1452, 0.0
  %v1517 = vmax.f32 %v1453, 0.0
  %v1518 = vmax.f32 %v1454, 0.0
  %v1519 = vmax.f32 %v1455, 0.0
  %v1520 = vmax.f32 %v1456, 0.0
  %v1521 = vmax.f32 %v1457, 0.0
  %v1522 = vmax.f32 %v1458, 0.0
  %v1523 = vmax.f32 %v1459, 0.0
  %v1524 = vmax.f32 %v1460, 0.0
  %v1525 = vmax.f32 %v1461, 0.0
  %v1526 = vmax.f32 %v1462, 0.0
  %v1527 = vmax.f32 %v1463, 0.0
  %v1528 = vmax.f32 %v1464, 0.0
  %v1529 = vmax.f32 %v1465, 0.0
  %v1530 = vmax.f32 %v1466, 0.0
  %v1531 = vmax.f32 %v1467, 0.0
  %v1532 = vmax.f32 %v1468, 0.0
  %v1533 = vmax.f32 %v1469, 0.0
  %v1534 = vmax.f32 %v1470, 0.0
  %v1535 = vmax.f32 %v1471, 0.0
  %v1536 = vmax.f32 %v1472, 0.0
  %v1537 = vmax.f32 %v1473, 0.0
  %v1538 = vmax.f32 %v1474, 0.0
  %v1539 = vmax.f32 %v1475, 0.0
  %v1540 = vmax.f32 %v1476, 0.0
  %v1541 = vmax.f32 %v1477, 0.0
  %v1542 = vmax.f32 %v1478, 0.0
  %v1543 = vmax.f32 %v1479, 0.0
  %v1544 = vmax.f32 %v1480, 0.0
  %v1545 = vmax.f32 %v1481, 0.0
  %v1546 = vmax.f32 %v1482, 0.0
  %v1547 = vmax.f32 %v1483, 0.0
  %v1548 = vmax.f32 %v1484, 0.0
  %v1549 = vmax.f32 %v1485, 0.0
  %v1550 = vmax.f32 %v1486, 0.0
  %v1551 = vmax.f32 %v1487, 0.0
  %v1552 = vmax.f32 %v1488, 0.0
  %v1553 = vmax.f32 %v1489, 0.0
  %v1554 = vmax.f32 %v1490, 0.0
  %v1555 = vmax.f32 %v1491, 0.0
  %v1556 = vmax.f32 %v1492, 0.0
  %v1557 = vmax.f32 %v1493, 0.0
  %v1558 = vmax.f32 %v1494, 0.0
  %v1559 = vmax.f32 %v1495, 0.0
  %v1560 = vmax.f32 %v1496, 0.0
  %v1561 = vmax.f32 %v1497, 0.0
  %v1562 = vmax.f32 %v1498, 0.0
  %v1563 = vmax.f32 %v1499, 0.0
  %v1564 = vmax.f32 %v1500, 0.0
  %v1565 = vmax.f32 %v1501, 0.0
  %v1566 = vmax.f32 %v1502, 0.0
  %v1567 = vmax.f32 %v1503, 0.0
  %v1568 = vmax.f32 %v1504, 0.0
  %v1569 = vmax.f32 %v1505, 0.0
  %v1570 = vpack.c.bf16 %v1507, %v1506
  %v1571 = vpack.c.bf16 %v1509, %v1508
  %v1572 = vpack.c.bf16 %v1511, %v1510
  %v1573 = vpack.c.bf16 %v1513, %v1512
  %v1574 = vpack.c.bf16 %v1515, %v1514
  %v1575 = vpack.c.bf16 %v1517, %v1516
  %v1576 = vpack.c.bf16 %v1519, %v1518
  %v1577 = vpack.c.bf16 %v1521, %v1520
  %v1578 = vpack.c.bf16 %v1523, %v1522
  %v1579 = vpack.c.bf16 %v1525, %v1524
  %v1580 = vpack.c.bf16 %v1527, %v1526
  %v1581 = vpack.c.bf16 %v1529, %v1528
  %v1582 = vpack.c.bf16 %v1531, %v1530
  %v1583 = vpack.c.bf16 %v1533, %v1532
  %v1584 = vpack.c.bf16 %v1535, %v1534
  %v1585 = vpack.c.bf16 %v1537, %v1536
  %v1586 = vpack.c.bf16 %v1539, %v1538
  %v1587 = vpack.c.bf16 %v1541, %v1540
  %v1588 = vpack.c.bf16 %v1543, %v1542
  %v1589 = vpack.c.bf16 %v1545, %v1544
  %v1590 = vpack.c.bf16 %v1547, %v1546
  %v1591 = vpack.c.bf16 %v1549, %v1548
  %v1592 = vpack.c.bf16 %v1551, %v1550
  %v1593 = vpack.c.bf16 %v1553, %v1552
  %v1594 = vpack.c.bf16 %v1555, %v1554
  %v1595 = vpack.c.bf16 %v1557, %v1556
  %v1596 = vpack.c.bf16 %v1559, %v1558
  %v1597 = vpack.c.bf16 %v1561, %v1560
  %v1598 = vpack.c.bf16 %v1563, %v1562
  %v1599 = vpack.c.bf16 %v1565, %v1564
  %v1600 = vpack.c.bf16 %v1567, %v1566
  %v1601 = vpack.c.bf16 %v1569, %v1568
  %v1602 = vld [vmem:[%s4] sm:$0xf]
  %v1603 = vld [vmem:[%s4 + $0x4] sm:$0xf]
  %v1604 = vld [vmem:[%s4 + $0x8] sm:$0xf]
  %v1605 = vld [vmem:[%s4 + $0xc] sm:$0xf]
  %v1606 = vld [vmem:[%s4 + $0x10] sm:$0xf]
  %v1607 = vld [vmem:[%s4 + $0x14] sm:$0xf]
  %v1608 = vld [vmem:[%s4 + $0x18] sm:$0xf]
  %v1609 = vld [vmem:[%s4 + $0x1c] sm:$0xf]
  %v1610 = vld [vmem:[%s4 + $0x20] sm:$0xf]
  %v1611 = vld [vmem:[%s4 + $0x24] sm:$0xf]
  %v1612 = vld [vmem:[%s4 + $0x28] sm:$0xf]
  %v1613 = vld [vmem:[%s4 + $0x2c] sm:$0xf]
  %v1614 = vld [vmem:[%s4 + $0x30] sm:$0xf]
  %v1615 = vld [vmem:[%s4 + $0x34] sm:$0xf]
  %v1616 = vld [vmem:[%s4 + $0x38] sm:$0xf]
  %v1617 = vld [vmem:[%s4 + $0x3c] sm:$0xf]
  %v1618 = vlaneseq
  %v1619 = vshrl.u32 %v1618, 7
  %v1620 = vsub.s32 1, %v1619
  %v1621 = vrot.slane %v27, %v1620
  %v1638 = vunpack.c.l.b16 %v1602
  %v1639 = vunpack.c.l.b16 %v1603
  %v1640 = vunpack.c.l.b16 %v1604
  %v1641 = vunpack.c.l.b16 %v1605
  %v1642 = vunpack.c.l.b16 %v1606
  %v1643 = vunpack.c.l.b16 %v1607
  %v1644 = vunpack.c.l.b16 %v1608
  %v1645 = vunpack.c.l.b16 %v1609
  %v1646 = vunpack.c.l.b16 %v1610
  %v1647 = vunpack.c.l.b16 %v1611
  %v1648 = vunpack.c.l.b16 %v1612
  %v1649 = vunpack.c.l.b16 %v1613
  %v1650 = vunpack.c.l.b16 %v1614
  %v1651 = vunpack.c.l.b16 %v1615
  %v1652 = vunpack.c.l.b16 %v1616
  %v1653 = vunpack.c.l.b16 %v1617
  %v1654 = vpack.c.b16 %v1639, %v1638
  %v1655 = vpack.c.b16 %v1641, %v1640
  %v1656 = vpack.c.b16 %v1643, %v1642
  %v1657 = vpack.c.b16 %v1645, %v1644
  %v1658 = vpack.c.b16 %v1647, %v1646
  %v1659 = vpack.c.b16 %v1649, %v1648
  %v1660 = vpack.c.b16 %v1651, %v1650
  %v1661 = vpack.c.b16 %v1653, %v1652
  %1670 = vmatprep.subr.bf16.mxu0 0
  %1671 = vmatpush1.bf16.msra.mxu0 %v1654
  %1672 = vmatprep.subr.bf16.mxu0 0
  %1673 = vmatpush1.bf16.msra.mxu0 %v1655
  %1674 = vmatprep.subr.bf16.mxu0 0
  %1675 = vmatpush1.bf16.msra.mxu0 %v1656
  %1676 = vmatprep.subr.bf16.mxu0 0
  %1677 = vmatpush1.bf16.msra.mxu0 %v1657
  %1678 = vmatprep.subr.bf16.mxu0 0
  %1679 = vmatpush1.bf16.msra.mxu0 %v1658
  %1680 = vmatprep.subr.bf16.mxu0 0
  %1681 = vmatpush1.bf16.msra.mxu0 %v1659
  %1682 = vmatprep.subr.bf16.mxu0 0
  %1683 = vmatpush1.bf16.msra.mxu0 %v1660
  %1684 = vmatprep.subr.bf16.mxu0 0
  %1685 = vmatpush1.bf16.msra.mxu0 %v1661
  %1686 = vmatprep.subr.bf16.mxu0 0
  %1687 = vmatpush1.bf16.msra.mxu0 0
  %1688 = vmatprep.subr.bf16.mxu0 0
  %1689 = vmatpush1.bf16.msra.mxu0 0
  %1690 = vmatprep.subr.bf16.mxu0 0
  %1691 = vmatpush1.bf16.msra.mxu0 0
  %1692 = vmatprep.subr.bf16.mxu0 0
  %1693 = vmatpush1.bf16.msra.mxu0 0
  %1694 = vmatprep.subr.bf16.mxu0 0
  %1695 = vmatpush1.bf16.msra.mxu0 0
  %1696 = vmatprep.subr.bf16.mxu0 0
  %1697 = vmatpush1.bf16.msra.mxu0 0
  %1698 = vmatprep.subr.bf16.mxu0 0
  %1699 = vmatpush1.bf16.msra.mxu0 0
  %1700 = vmatprep.subr.bf16.mxu0 0
  %1701 = vmatpush1.bf16.msra.mxu0 0
  %1702 = vmatprep.mubr.bf16.mxu0 0
  %1703 = vmatmul.mubr.bf16.gmra.mrb[0].mxu0 %v1570
  %v1704 = vpop.f32.mrb[0].mxu0
  %v1705 = vadd.f32 %v1621, %v1704
  %v1706 = vpop.f32.mrb[0].mxu0
  %v1707 = vpop.f32.mrb[0].mxu0
  %v1708 = vadd.f32 %v1621, %v1707
  %v1709 = vpop.f32.mrb[0].mxu0
  %1710 = vmatprep.mubr.bf16.mxu0 0
  %1711 = vmatmul.mubr.bf16.gmra.mrb[0].mxu0 %v1571
  %v1712 = vpop.f32.mrb[0].mxu0
  %v1713 = vadd.f32 %v1621, %v1712
  %v1714 = vpop.f32.mrb[0].mxu0
  %v1715 = vpop.f32.mrb[0].mxu0
  %v1716 = vadd.f32 %v1621, %v1715
  %v1717 = vpop.f32.mrb[0].mxu0
  %1718 = vmatprep.mubr.bf16.mxu0 0
  %1719 = vmatmul.mubr.bf16.gmra.mrb[0].mxu0 %v1572
  %v1720 = vpop.f32.mrb[0].mxu0
  %v1721 = vadd.f32 %v1621, %v1720
  %v1722 = vpop.f32.mrb[0].mxu0
  %v1723 = vpop.f32.mrb[0].mxu0
  %v1724 = vadd.f32 %v1621, %v1723
  %v1725 = vpop.f32.mrb[0].mxu0
  %1726 = vmatprep.mubr.bf16.mxu0 0
  %1727 = vmatmul.mubr.bf16.gmra.mrb[0].mxu0 %v1573
  %v1728 = vpop.f32.mrb[0].mxu0
  %v1729 = vadd.f32 %v1621, %v1728
  %v1730 = vpop.f32.mrb[0].mxu0
  %v1731 = vpop.f32.mrb[0].mxu0
  %v1732 = vadd.f32 %v1621, %v1731
  %v1733 = vpop.f32.mrb[0].mxu0
  %1734 = vmatprep.mubr.bf16.mxu0 0
  %1735 = vmatmul.mubr.bf16.gmra.mrb[0].mxu0 %v1574
  %v1736 = vpop.f32.mrb[0].mxu0
  %v1737 = vadd.f32 %v1621, %v1736
  %v1738 = vpop.f32.mrb[0].mxu0
  %v1739 = vpop.f32.mrb[0].mxu0
  %v1740 = vadd.f32 %v1621, %v1739
  %v1741 = vpop.f32.mrb[0].mxu0
  %1742 = vmatprep.mubr.bf16.mxu0 0
  %1743 = vmatmul.mubr.bf16.gmra.mrb[0].mxu0 %v1575
  %v1744 = vpop.f32.mrb[0].mxu0
  %v1745 = vadd.f32 %v1621, %v1744
  %v1746 = vpop.f32.mrb[0].mxu0
  %v1747 = vpop.f32.mrb[0].mxu0
  %v1748 = vadd.f32 %v1621, %v1747
  %v1749 = vpop.f32.mrb[0].mxu0
  %1750 = vmatprep.mubr.bf16.mxu0 0
  %1751 = vmatmul.mubr.bf16.gmra.mrb[0].mxu0 %v1576
  %v1752 = vpop.f32.mrb[0].mxu0
  %v1753 = vadd.f32 %v1621, %v1752
  %v1754 = vpop.f32.mrb[0].mxu0
  %v1755 = vpop.f32.mrb[0].mxu0
  %v1756 = vadd.f32 %v1621, %v1755
  %v1757 = vpop.f32.mrb[0].mxu0
  %1758 = vmatprep.mubr.bf16.mxu0 0
  %1759 = vmatmul.mubr.bf16.gmra.mrb[0].mxu0 %v1577
  %v1760 = vpop.f32.mrb[0].mxu0
  %v1761 = vadd.f32 %v1621, %v1760
  %v1762 = vpop.f32.mrb[0].mxu0
  %v1763 = vpop.f32.mrb[0].mxu0
  %v1764 = vadd.f32 %v1621, %v1763
  %v1765 = vpop.f32.mrb[0].mxu0
  %1766 = vmatprep.mubr.bf16.mxu0 0
  %1767 = vmatmul.mubr.bf16.gmra.mrb[0].mxu0 %v1578
  %v1768 = vpop.f32.mrb[0].mxu0
  %v1769 = vadd.f32 %v1621, %v1768
  %v1770 = vpop.f32.mrb[0].mxu0
  %v1771 = vpop.f32.mrb[0].mxu0
  %v1772 = vadd.f32 %v1621, %v1771
  %v1773 = vpop.f32.mrb[0].mxu0
  %1774 = vmatprep.mubr.bf16.mxu0 0
  %1775 = vmatmul.mubr.bf16.gmra.mrb[0].mxu0 %v1579
  %v1776 = vpop.f32.mrb[0].mxu0
  %v1777 = vadd.f32 %v1621, %v1776
  %v1778 = vpop.f32.mrb[0].mxu0
  %v1779 = vpop.f32.mrb[0].mxu0
  %v1780 = vadd.f32 %v1621, %v1779
  %v1781 = vpop.f32.mrb[0].mxu0
  %1782 = vmatprep.mubr.bf16.mxu0 0
  %1783 = vmatmul.mubr.bf16.gmra.mrb[0].mxu0 %v1580
  %v1784 = vpop.f32.mrb[0].mxu0
  %v1785 = vadd.f32 %v1621, %v1784
  %v1786 = vpop.f32.mrb[0].mxu0
  %v1787 = vpop.f32.mrb[0].mxu0
  %v1788 = vadd.f32 %v1621, %v1787
  %v1789 = vpop.f32.mrb[0].mxu0
  %1790 = vmatprep.mubr.bf16.mxu0 0
  %1791 = vmatmul.mubr.bf16.gmra.mrb[0].mxu0 %v1581
  %v1792 = vpop.f32.mrb[0].mxu0
  %v1793 = vadd.f32 %v1621, %v1792
  %v1794 = vpop.f32.mrb[0].mxu0
  %v1795 = vpop.f32.mrb[0].mxu0
  %v1796 = vadd.f32 %v1621, %v1795
  %v1797 = vpop.f32.mrb[0].mxu0
  %1798 = vmatprep.mubr.bf16.mxu0 0
  %1799 = vmatmul.mubr.bf16.gmra.mrb[0].mxu0 %v1582
  %v1800 = vpop.f32.mrb[0].mxu0
  %v1801 = vadd.f32 %v1621, %v1800
  %v1802 = vpop.f32.mrb[0].mxu0
  %v1803 = vpop.f32.mrb[0].mxu0
  %v1804 = vadd.f32 %v1621, %v1803
  %v1805 = vpop.f32.mrb[0].mxu0
  %1806 = vmatprep.mubr.bf16.mxu0 0
  %1807 = vmatmul.mubr.bf16.gmra.mrb[0].mxu0 %v1583
  %v1808 = vpop.f32.mrb[0].mxu0
  %v1809 = vadd.f32 %v1621, %v1808
  %v1810 = vpop.f32.mrb[0].mxu0
  %v1811 = vpop.f32.mrb[0].mxu0
  %v1812 = vadd.f32 %v1621, %v1811
  %v1813 = vpop.f32.mrb[0].mxu0
  %1814 = vmatprep.mubr.bf16.mxu0 0
  %1815 = vmatmul.mubr.bf16.gmra.mrb[0].mxu0 %v1584
  %v1816 = vpop.f32.mrb[0].mxu0
  %v1817 = vadd.f32 %v1621, %v1816
  %v1818 = vpop.f32.mrb[0].mxu0
  %v1819 = vpop.f32.mrb[0].mxu0
  %v1820 = vadd.f32 %v1621, %v1819
  %v1821 = vpop.f32.mrb[0].mxu0
  %1822 = vmatprep.mubr.bf16.mxu0 0
  %1823 = vmatmul.mubr.bf16.gmra.mrb[0].mxu0 %v1585
  %v1824 = vpop.f32.mrb[0].mxu0
  %v1825 = vadd.f32 %v1621, %v1824
  %v1826 = vpop.f32.mrb[0].mxu0
  %v1827 = vpop.f32.mrb[0].mxu0
  %v1828 = vadd.f32 %v1621, %v1827
  %v1829 = vpop.f32.mrb[0].mxu0
  %1830 = vmatprep.mubr.bf16.mxu0 0
  %1831 = vmatmul.mubr.bf16.gmra.mrb[0].mxu0 %v1586
  %v1832 = vpop.f32.mrb[0].mxu0
  %v1833 = vadd.f32 %v1621, %v1832
  %v1834 = vpop.f32.mrb[0].mxu0
  %v1835 = vpop.f32.mrb[0].mxu0
  %v1836 = vadd.f32 %v1621, %v1835
  %v1837 = vpop.f32.mrb[0].mxu0
  %1838 = vmatprep.mubr.bf16.mxu0 0
  %1839 = vmatmul.mubr.bf16.gmra.mrb[0].mxu0 %v1587
  %v1840 = vpop.f32.mrb[0].mxu0
  %v1841 = vadd.f32 %v1621, %v1840
  %v1842 = vpop.f32.mrb[0].mxu0
  %v1843 = vpop.f32.mrb[0].mxu0
  %v1844 = vadd.f32 %v1621, %v1843
  %v1845 = vpop.f32.mrb[0].mxu0
  %1846 = vmatprep.mubr.bf16.mxu0 0
  %1847 = vmatmul.mubr.bf16.gmra.mrb[0].mxu0 %v1588
  %v1848 = vpop.f32.mrb[0].mxu0
  %v1849 = vadd.f32 %v1621, %v1848
  %v1850 = vpop.f32.mrb[0].mxu0
  %v1851 = vpop.f32.mrb[0].mxu0
  %v1852 = vadd.f32 %v1621, %v1851
  %v1853 = vpop.f32.mrb[0].mxu0
  %1854 = vmatprep.mubr.bf16.mxu0 0
  %1855 = vmatmul.mubr.bf16.gmra.mrb[0].mxu0 %v1589
  %v1856 = vpop.f32.mrb[0].mxu0
  %v1857 = vadd.f32 %v1621, %v1856
  %v1858 = vpop.f32.mrb[0].mxu0
  %v1859 = vpop.f32.mrb[0].mxu0
  %v1860 = vadd.f32 %v1621, %v1859
  %v1861 = vpop.f32.mrb[0].mxu0
  %1862 = vmatprep.mubr.bf16.mxu0 0
  %1863 = vmatmul.mubr.bf16.gmra.mrb[0].mxu0 %v1590
  %v1864 = vpop.f32.mrb[0].mxu0
  %v1865 = vadd.f32 %v1621, %v1864
  %v1866 = vpop.f32.mrb[0].mxu0
  %v1867 = vpop.f32.mrb[0].mxu0
  %v1868 = vadd.f32 %v1621, %v1867
  %v1869 = vpop.f32.mrb[0].mxu0
  %1870 = vmatprep.mubr.bf16.mxu0 0
  %1871 = vmatmul.mubr.bf16.gmra.mrb[0].mxu0 %v1591
  %v1872 = vpop.f32.mrb[0].mxu0
  %v1873 = vadd.f32 %v1621, %v1872
  %v1874 = vpop.f32.mrb[0].mxu0
  %v1875 = vpop.f32.mrb[0].mxu0
  %v1876 = vadd.f32 %v1621, %v1875
  %v1877 = vpop.f32.mrb[0].mxu0
  %1878 = vmatprep.mubr.bf16.mxu0 0
  %1879 = vmatmul.mubr.bf16.gmra.mrb[0].mxu0 %v1592
  %v1880 = vpop.f32.mrb[0].mxu0
  %v1881 = vadd.f32 %v1621, %v1880
  %v1882 = vpop.f32.mrb[0].mxu0
  %v1883 = vpop.f32.mrb[0].mxu0
  %v1884 = vadd.f32 %v1621, %v1883
  %v1885 = vpop.f32.mrb[0].mxu0
  %1886 = vmatprep.mubr.bf16.mxu0 0
  %1887 = vmatmul.mubr.bf16.gmra.mrb[0].mxu0 %v1593
  %v1888 = vpop.f32.mrb[0].mxu0
  %v1889 = vadd.f32 %v1621, %v1888
  %v1890 = vpop.f32.mrb[0].mxu0
  %v1891 = vpop.f32.mrb[0].mxu0
  %v1892 = vadd.f32 %v1621, %v1891
  %v1893 = vpop.f32.mrb[0].mxu0
  %1894 = vmatprep.mubr.bf16.mxu0 0
  %1895 = vmatmul.mubr.bf16.gmra.mrb[0].mxu0 %v1594
  %v1896 = vpop.f32.mrb[0].mxu0
  %v1897 = vadd.f32 %v1621, %v1896
  %v1898 = vpop.f32.mrb[0].mxu0
  %v1899 = vpop.f32.mrb[0].mxu0
  %v1900 = vadd.f32 %v1621, %v1899
  %v1901 = vpop.f32.mrb[0].mxu0
  %1902 = vmatprep.mubr.bf16.mxu0 0
  %1903 = vmatmul.mubr.bf16.gmra.mrb[0].mxu0 %v1595
  %v1904 = vpop.f32.mrb[0].mxu0
  %v1905 = vadd.f32 %v1621, %v1904
  %v1906 = vpop.f32.mrb[0].mxu0
  %v1907 = vpop.f32.mrb[0].mxu0
  %v1908 = vadd.f32 %v1621, %v1907
  %v1909 = vpop.f32.mrb[0].mxu0
  %1910 = vmatprep.mubr.bf16.mxu0 0
  %1911 = vmatmul.mubr.bf16.gmra.mrb[0].mxu0 %v1596
  %v1912 = vpop.f32.mrb[0].mxu0
  %v1913 = vadd.f32 %v1621, %v1912
  %v1914 = vpop.f32.mrb[0].mxu0
  %v1915 = vpop.f32.mrb[0].mxu0
  %v1916 = vadd.f32 %v1621, %v1915
  %v1917 = vpop.f32.mrb[0].mxu0
  %1918 = vmatprep.mubr.bf16.mxu0 0
  %1919 = vmatmul.mubr.bf16.gmra.mrb[0].mxu0 %v1597
  %v1920 = vpop.f32.mrb[0].mxu0
  %v1921 = vadd.f32 %v1621, %v1920
  %v1922 = vpop.f32.mrb[0].mxu0
  %v1923 = vpop.f32.mrb[0].mxu0
  %v1924 = vadd.f32 %v1621, %v1923
  %v1925 = vpop.f32.mrb[0].mxu0
  %1926 = vmatprep.mubr.bf16.mxu0 0
  %1927 = vmatmul.mubr.bf16.gmra.mrb[0].mxu0 %v1598
  %v1928 = vpop.f32.mrb[0].mxu0
  %v1929 = vadd.f32 %v1621, %v1928
  %v1930 = vpop.f32.mrb[0].mxu0
  %v1931 = vpop.f32.mrb[0].mxu0
  %v1932 = vadd.f32 %v1621, %v1931
  %v1933 = vpop.f32.mrb[0].mxu0
  %1934 = vmatprep.mubr.bf16.mxu0 0
  %1935 = vmatmul.mubr.bf16.gmra.mrb[0].mxu0 %v1599
  %v1936 = vpop.f32.mrb[0].mxu0
  %v1937 = vadd.f32 %v1621, %v1936
  %v1938 = vpop.f32.mrb[0].mxu0
  %v1939 = vpop.f32.mrb[0].mxu0
  %v1940 = vadd.f32 %v1621, %v1939
  %v1941 = vpop.f32.mrb[0].mxu0
  %1942 = vmatprep.mubr.bf16.mxu0 0
  %1943 = vmatmul.mubr.bf16.gmra.mrb[0].mxu0 %v1600
  %v1944 = vpop.f32.mrb[0].mxu0
  %v1945 = vadd.f32 %v1621, %v1944
  %v1946 = vpop.f32.mrb[0].mxu0
  %v1947 = vpop.f32.mrb[0].mxu0
  %v1948 = vadd.f32 %v1621, %v1947
  %v1949 = vpop.f32.mrb[0].mxu0
  %1950 = vmatprep.mubr.bf16.mxu0 0
  %1951 = vmatmul.mubr.bf16.gmra.mrb[0].mxu0 %v1601
  %v1952 = vpop.f32.mrb[0].mxu0
  %v1953 = vadd.f32 %v1621, %v1952
  %v1954 = vpop.f32.mrb[0].mxu0
  %v1955 = vpop.f32.mrb[0].mxu0
  %v1956 = vadd.f32 %v1621, %v1955
  %v1957 = vpop.f32.mrb[0].mxu0
  %1958 = vdwg.mxu0
  %v1959 = vmax.f32 %v1705, 0.0
  %v1960 = vmax.f32 %v1708, 0.0
  %v1961 = vmax.f32 %v1713, 0.0
  %v1962 = vmax.f32 %v1716, 0.0
  %v1963 = vmax.f32 %v1721, 0.0
  %v1964 = vmax.f32 %v1724, 0.0
  %v1965 = vmax.f32 %v1729, 0.0
  %v1966 = vmax.f32 %v1732, 0.0
  %v1967 = vmax.f32 %v1737, 0.0
  %v1968 = vmax.f32 %v1740, 0.0
  %v1969 = vmax.f32 %v1745, 0.0
  %v1970 = vmax.f32 %v1748, 0.0
  %v1971 = vmax.f32 %v1753, 0.0
  %v1972 = vmax.f32 %v1756, 0.0
  %v1973 = vmax.f32 %v1761, 0.0
  %v1974 = vmax.f32 %v1764, 0.0
  %v1975 = vmax.f32 %v1769, 0.0
  %v1976 = vmax.f32 %v1772, 0.0
  %v1977 = vmax.f32 %v1777, 0.0
  %v1978 = vmax.f32 %v1780, 0.0
  %v1979 = vmax.f32 %v1785, 0.0
  %v1980 = vmax.f32 %v1788, 0.0
  %v1981 = vmax.f32 %v1793, 0.0
  %v1982 = vmax.f32 %v1796, 0.0
  %v1983 = vmax.f32 %v1801, 0.0
  %v1984 = vmax.f32 %v1804, 0.0
  %v1985 = vmax.f32 %v1809, 0.0
  %v1986 = vmax.f32 %v1812, 0.0
  %v1987 = vmax.f32 %v1817, 0.0
  %v1988 = vmax.f32 %v1820, 0.0
  %v1989 = vmax.f32 %v1825, 0.0
  %v1990 = vmax.f32 %v1828, 0.0
  %v1991 = vmax.f32 %v1833, 0.0
  %v1992 = vmax.f32 %v1836, 0.0
  %v1993 = vmax.f32 %v1841, 0.0
  %v1994 = vmax.f32 %v1844, 0.0
  %v1995 = vmax.f32 %v1849, 0.0
  %v1996 = vmax.f32 %v1852, 0.0
  %v1997 = vmax.f32 %v1857, 0.0
  %v1998 = vmax.f32 %v1860, 0.0
  %v1999 = vmax.f32 %v1865, 0.0
  %v2000 = vmax.f32 %v1868, 0.0
  %v2001 = vmax.f32 %v1873, 0.0
  %v2002 = vmax.f32 %v1876, 0.0
  %v2003 = vmax.f32 %v1881, 0.0
  %v2004 = vmax.f32 %v1884, 0.0
  %v2005 = vmax.f32 %v1889, 0.0
  %v2006 = vmax.f32 %v1892, 0.0
  %v2007 = vmax.f32 %v1897, 0.0
  %v2008 = vmax.f32 %v1900, 0.0
  %v2009 = vmax.f32 %v1905, 0.0
  %v2010 = vmax.f32 %v1908, 0.0
  %v2011 = vmax.f32 %v1913, 0.0
  %v2012 = vmax.f32 %v1916, 0.0
  %v2013 = vmax.f32 %v1921, 0.0
  %v2014 = vmax.f32 %v1924, 0.0
  %v2015 = vmax.f32 %v1929, 0.0
  %v2016 = vmax.f32 %v1932, 0.0
  %v2017 = vmax.f32 %v1937, 0.0
  %v2018 = vmax.f32 %v1940, 0.0
  %v2019 = vmax.f32 %v1945, 0.0
  %v2020 = vmax.f32 %v1948, 0.0
  %v2021 = vmax.f32 %v1953, 0.0
  %v2022 = vmax.f32 %v1956, 0.0
  %v2023 = vpack.c.bf16 %v1960, %v1959
  %v2024 = vpack.c.bf16 %v1962, %v1961
  %v2025 = vpack.c.bf16 %v1964, %v1963
  %v2026 = vpack.c.bf16 %v1966, %v1965
  %v2027 = vpack.c.bf16 %v1968, %v1967
  %v2028 = vpack.c.bf16 %v1970, %v1969
  %v2029 = vpack.c.bf16 %v1972, %v1971
  %v2030 = vpack.c.bf16 %v1974, %v1973
  %v2031 = vpack.c.bf16 %v1976, %v1975
  %v2032 = vpack.c.bf16 %v1978, %v1977
  %v2033 = vpack.c.bf16 %v1980, %v1979
  %v2034 = vpack.c.bf16 %v1982, %v1981
  %v2035 = vpack.c.bf16 %v1984, %v1983
  %v2036 = vpack.c.bf16 %v1986, %v1985
  %v2037 = vpack.c.bf16 %v1988, %v1987
  %v2038 = vpack.c.bf16 %v1990, %v1989
  %v2039 = vpack.c.bf16 %v1992, %v1991
  %v2040 = vpack.c.bf16 %v1994, %v1993
  %v2041 = vpack.c.bf16 %v1996, %v1995
  %v2042 = vpack.c.bf16 %v1998, %v1997
  %v2043 = vpack.c.bf16 %v2000, %v1999
  %v2044 = vpack.c.bf16 %v2002, %v2001
  %v2045 = vpack.c.bf16 %v2004, %v2003
  %v2046 = vpack.c.bf16 %v2006, %v2005
  %v2047 = vpack.c.bf16 %v2008, %v2007
  %v2048 = vpack.c.bf16 %v2010, %v2009
  %v2049 = vpack.c.bf16 %v2012, %v2011
  %v2050 = vpack.c.bf16 %v2014, %v2013
  %v2051 = vpack.c.bf16 %v2016, %v2015
  %v2052 = vpack.c.bf16 %v2018, %v2017
  %v2053 = vpack.c.bf16 %v2020, %v2019
  %v2054 = vpack.c.bf16 %v2022, %v2021
  %v2055 = vld [vmem:[%s5] sm:$0xf]
  %v2056 = vld [vmem:[%s5 + $0x4] sm:$0xf]
  %v2057 = vld [vmem:[%s5 + $0x8] sm:$0xf]
  %v2058 = vld [vmem:[%s5 + $0xc] sm:$0xf]
  %v2059 = vld [vmem:[%s5 + $0x10] sm:$0xf]
  %v2060 = vld [vmem:[%s5 + $0x14] sm:$0xf]
  %v2061 = vld [vmem:[%s5 + $0x18] sm:$0xf]
  %v2062 = vld [vmem:[%s5 + $0x1c] sm:$0xf]
  %v2063 = vld [vmem:[%s5 + $0x20] sm:$0xf]
  %v2064 = vld [vmem:[%s5 + $0x24] sm:$0xf]
  %v2065 = vld [vmem:[%s5 + $0x28] sm:$0xf]
  %v2066 = vld [vmem:[%s5 + $0x2c] sm:$0xf]
  %v2067 = vld [vmem:[%s5 + $0x30] sm:$0xf]
  %v2068 = vld [vmem:[%s5 + $0x34] sm:$0xf]
  %v2069 = vld [vmem:[%s5 + $0x38] sm:$0xf]
  %v2070 = vld [vmem:[%s5 + $0x3c] sm:$0xf]
  %v2071 = vlaneseq
  %v2072 = vshrl.u32 %v2071, 7
  %v2073 = vsub.s32 2, %v2072
  %v2074 = vrot.slane %v27, %v2073
  %v2091 = vunpack.c.l.b16 %v2055
  %v2092 = vunpack.c.l.b16 %v2056
  %v2093 = vunpack.c.l.b16 %v2057
  %v2094 = vunpack.c.l.b16 %v2058
  %v2095 = vunpack.c.l.b16 %v2059
  %v2096 = vunpack.c.l.b16 %v2060
  %v2097 = vunpack.c.l.b16 %v2061
  %v2098 = vunpack.c.l.b16 %v2062
  %v2099 = vunpack.c.l.b16 %v2063
  %v2100 = vunpack.c.l.b16 %v2064
  %v2101 = vunpack.c.l.b16 %v2065
  %v2102 = vunpack.c.l.b16 %v2066
  %v2103 = vunpack.c.l.b16 %v2067
  %v2104 = vunpack.c.l.b16 %v2068
  %v2105 = vunpack.c.l.b16 %v2069
  %v2106 = vunpack.c.l.b16 %v2070
  %v2107 = vpack.c.b16 %v2092, %v2091
  %v2108 = vpack.c.b16 %v2094, %v2093
  %v2109 = vpack.c.b16 %v2096, %v2095
  %v2110 = vpack.c.b16 %v2098, %v2097
  %v2111 = vpack.c.b16 %v2100, %v2099
  %v2112 = vpack.c.b16 %v2102, %v2101
  %v2113 = vpack.c.b16 %v2104, %v2103
  %v2114 = vpack.c.b16 %v2106, %v2105
  %2123 = vmatprep.subr.bf16.mxu0 0
  %2124 = vmatpush1.bf16.msra.mxu0 %v2107
  %2125 = vmatprep.subr.bf16.mxu0 0
  %2126 = vmatpush1.bf16.msra.mxu0 %v2108
  %2127 = vmatprep.subr.bf16.mxu0 0
  %2128 = vmatpush1.bf16.msra.mxu0 %v2109
  %2129 = vmatprep.subr.bf16.mxu0 0
  %2130 = vmatpush1.bf16.msra.mxu0 %v2110
  %2131 = vmatprep.subr.bf16.mxu0 0
  %2132 = vmatpush1.bf16.msra.mxu0 %v2111
  %2133 = vmatprep.subr.bf16.mxu0 0
  %2134 = vmatpush1.bf16.msra.mxu0 %v2112
  %2135 = vmatprep.subr.bf16.mxu0 0
  %2136 = vmatpush1.bf16.msra.mxu0 %v2113
  %2137 = vmatprep.subr.bf16.mxu0 0
  %2138 = vmatpush1.bf16.msra.mxu0 %v2114
  %2139 = vmatprep.subr.bf16.mxu0 0
  %2140 = vmatpush1.bf16.msra.mxu0 0
  %2141 = vmatprep.subr.bf16.mxu0 0
  %2142 = vmatpush1.bf16.msra.mxu0 0
  %2143 = vmatprep.subr.bf16.mxu0 0
  %2144 = vmatpush1.bf16.msra.mxu0 0
  %2145 = vmatprep.subr.bf16.mxu0 0
  %2146 = vmatpush1.bf16.msra.mxu0 0
  %2147 = vmatprep.subr.bf16.mxu0 0
  %2148 = vmatpush1.bf16.msra.mxu0 0
  %2149 = vmatprep.subr.bf16.mxu0 0
  %2150 = vmatpush1.bf16.msra.mxu0 0
  %2151 = vmatprep.subr.bf16.mxu0 0
  %2152 = vmatpush1.bf16.msra.mxu0 0
  %2153 = vmatprep.subr.bf16.mxu0 0
  %2154 = vmatpush1.bf16.msra.mxu0 0
  %2155 = vmatprep.mubr.bf16.mxu0 0
  %2156 = vmatmul.mubr.bf16.gmra.mrb[0].mxu0 %v2023
  %v2157 = vpop.f32.mrb[0].mxu0
  %v2158 = vadd.f32 %v2074, %v2157
  %v2159 = vpop.f32.mrb[0].mxu0
  %v2160 = vpop.f32.mrb[0].mxu0
  %v2161 = vadd.f32 %v2074, %v2160
  %v2162 = vpop.f32.mrb[0].mxu0
  %2163 = vmatprep.mubr.bf16.mxu0 0
  %2164 = vmatmul.mubr.bf16.gmra.mrb[0].mxu0 %v2024
  %v2165 = vpop.f32.mrb[0].mxu0
  %v2166 = vadd.f32 %v2074, %v2165
  %v2167 = vpop.f32.mrb[0].mxu0
  %v2168 = vpop.f32.mrb[0].mxu0
  %v2169 = vadd.f32 %v2074, %v2168
  %v2170 = vpop.f32.mrb[0].mxu0
  %2171 = vmatprep.mubr.bf16.mxu0 0
  %2172 = vmatmul.mubr.bf16.gmra.mrb[0].mxu0 %v2025
  %v2173 = vpop.f32.mrb[0].mxu0
  %v2174 = vadd.f32 %v2074, %v2173
  %v2175 = vpop.f32.mrb[0].mxu0
  %v2176 = vpop.f32.mrb[0].mxu0
  %v2177 = vadd.f32 %v2074, %v2176
  %v2178 = vpop.f32.mrb[0].mxu0
  %2179 = vmatprep.mubr.bf16.mxu0 0
  %2180 = vmatmul.mubr.bf16.gmra.mrb[0].mxu0 %v2026
  %v2181 = vpop.f32.mrb[0].mxu0
  %v2182 = vadd.f32 %v2074, %v2181
  %v2183 = vpop.f32.mrb[0].mxu0
  %v2184 = vpop.f32.mrb[0].mxu0
  %v2185 = vadd.f32 %v2074, %v2184
  %v2186 = vpop.f32.mrb[0].mxu0
  %2187 = vmatprep.mubr.bf16.mxu0 0
  %2188 = vmatmul.mubr.bf16.gmra.mrb[0].mxu0 %v2027
  %v2189 = vpop.f32.mrb[0].mxu0
  %v2190 = vadd.f32 %v2074, %v2189
  %v2191 = vpop.f32.mrb[0].mxu0
  %v2192 = vpop.f32.mrb[0].mxu0
  %v2193 = vadd.f32 %v2074, %v2192
  %v2194 = vpop.f32.mrb[0].mxu0
  %2195 = vmatprep.mubr.bf16.mxu0 0
  %2196 = vmatmul.mubr.bf16.gmra.mrb[0].mxu0 %v2028
  %v2197 = vpop.f32.mrb[0].mxu0
  %v2198 = vadd.f32 %v2074, %v2197
  %v2199 = vpop.f32.mrb[0].mxu0
  %v2200 = vpop.f32.mrb[0].mxu0
  %v2201 = vadd.f32 %v2074, %v2200
  %v2202 = vpop.f32.mrb[0].mxu0
  %2203 = vmatprep.mubr.bf16.mxu0 0
  %2204 = vmatmul.mubr.bf16.gmra.mrb[0].mxu0 %v2029
  %v2205 = vpop.f32.mrb[0].mxu0
  %v2206 = vadd.f32 %v2074, %v2205
  %v2207 = vpop.f32.mrb[0].mxu0
  %v2208 = vpop.f32.mrb[0].mxu0
  %v2209 = vadd.f32 %v2074, %v2208
  %v2210 = vpop.f32.mrb[0].mxu0
  %2211 = vmatprep.mubr.bf16.mxu0 0
  %2212 = vmatmul.mubr.bf16.gmra.mrb[0].mxu0 %v2030
  %v2213 = vpop.f32.mrb[0].mxu0
  %v2214 = vadd.f32 %v2074, %v2213
  %v2215 = vpop.f32.mrb[0].mxu0
  %v2216 = vpop.f32.mrb[0].mxu0
  %v2217 = vadd.f32 %v2074, %v2216
  %v2218 = vpop.f32.mrb[0].mxu0
  %2219 = vmatprep.mubr.bf16.mxu0 0
  %2220 = vmatmul.mubr.bf16.gmra.mrb[0].mxu0 %v2031
  %v2221 = vpop.f32.mrb[0].mxu0
  %v2222 = vadd.f32 %v2074, %v2221
  %v2223 = vpop.f32.mrb[0].mxu0
  %v2224 = vpop.f32.mrb[0].mxu0
  %v2225 = vadd.f32 %v2074, %v2224
  %v2226 = vpop.f32.mrb[0].mxu0
  %2227 = vmatprep.mubr.bf16.mxu0 0
  %2228 = vmatmul.mubr.bf16.gmra.mrb[0].mxu0 %v2032
  %v2229 = vpop.f32.mrb[0].mxu0
  %v2230 = vadd.f32 %v2074, %v2229
  %v2231 = vpop.f32.mrb[0].mxu0
  %v2232 = vpop.f32.mrb[0].mxu0
  %v2233 = vadd.f32 %v2074, %v2232
  %v2234 = vpop.f32.mrb[0].mxu0
  %2235 = vmatprep.mubr.bf16.mxu0 0
  %2236 = vmatmul.mubr.bf16.gmra.mrb[0].mxu0 %v2033
  %v2237 = vpop.f32.mrb[0].mxu0
  %v2238 = vadd.f32 %v2074, %v2237
  %v2239 = vpop.f32.mrb[0].mxu0
  %v2240 = vpop.f32.mrb[0].mxu0
  %v2241 = vadd.f32 %v2074, %v2240
  %v2242 = vpop.f32.mrb[0].mxu0
  %2243 = vmatprep.mubr.bf16.mxu0 0
  %2244 = vmatmul.mubr.bf16.gmra.mrb[0].mxu0 %v2034
  %v2245 = vpop.f32.mrb[0].mxu0
  %v2246 = vadd.f32 %v2074, %v2245
  %v2247 = vpop.f32.mrb[0].mxu0
  %v2248 = vpop.f32.mrb[0].mxu0
  %v2249 = vadd.f32 %v2074, %v2248
  %v2250 = vpop.f32.mrb[0].mxu0
  %2251 = vmatprep.mubr.bf16.mxu0 0
  %2252 = vmatmul.mubr.bf16.gmra.mrb[0].mxu0 %v2035
  %v2253 = vpop.f32.mrb[0].mxu0
  %v2254 = vadd.f32 %v2074, %v2253
  %v2255 = vpop.f32.mrb[0].mxu0
  %v2256 = vpop.f32.mrb[0].mxu0
  %v2257 = vadd.f32 %v2074, %v2256
  %v2258 = vpop.f32.mrb[0].mxu0
  %2259 = vmatprep.mubr.bf16.mxu0 0
  %2260 = vmatmul.mubr.bf16.gmra.mrb[0].mxu0 %v2036
  %v2261 = vpop.f32.mrb[0].mxu0
  %v2262 = vadd.f32 %v2074, %v2261
  %v2263 = vpop.f32.mrb[0].mxu0
  %v2264 = vpop.f32.mrb[0].mxu0
  %v2265 = vadd.f32 %v2074, %v2264
  %v2266 = vpop.f32.mrb[0].mxu0
  %2267 = vmatprep.mubr.bf16.mxu0 0
  %2268 = vmatmul.mubr.bf16.gmra.mrb[0].mxu0 %v2037
  %v2269 = vpop.f32.mrb[0].mxu0
  %v2270 = vadd.f32 %v2074, %v2269
  %v2271 = vpop.f32.mrb[0].mxu0
  %v2272 = vpop.f32.mrb[0].mxu0
  %v2273 = vadd.f32 %v2074, %v2272
  %v2274 = vpop.f32.mrb[0].mxu0
  %2275 = vmatprep.mubr.bf16.mxu0 0
  %2276 = vmatmul.mubr.bf16.gmra.mrb[0].mxu0 %v2038
  %v2277 = vpop.f32.mrb[0].mxu0
  %v2278 = vadd.f32 %v2074, %v2277
  %v2279 = vpop.f32.mrb[0].mxu0
  %v2280 = vpop.f32.mrb[0].mxu0
  %v2281 = vadd.f32 %v2074, %v2280
  %v2282 = vpop.f32.mrb[0].mxu0
  %2283 = vmatprep.mubr.bf16.mxu0 0
  %2284 = vmatmul.mubr.bf16.gmra.mrb[0].mxu0 %v2039
  %v2285 = vpop.f32.mrb[0].mxu0
  %v2286 = vadd.f32 %v2074, %v2285
  %v2287 = vpop.f32.mrb[0].mxu0
  %v2288 = vpop.f32.mrb[0].mxu0
  %v2289 = vadd.f32 %v2074, %v2288
  %v2290 = vpop.f32.mrb[0].mxu0
  %2291 = vmatprep.mubr.bf16.mxu0 0
  %2292 = vmatmul.mubr.bf16.gmra.mrb[0].mxu0 %v2040
  %v2293 = vpop.f32.mrb[0].mxu0
  %v2294 = vadd.f32 %v2074, %v2293
  %v2295 = vpop.f32.mrb[0].mxu0
  %v2296 = vpop.f32.mrb[0].mxu0
  %v2297 = vadd.f32 %v2074, %v2296
  %v2298 = vpop.f32.mrb[0].mxu0
  %2299 = vmatprep.mubr.bf16.mxu0 0
  %2300 = vmatmul.mubr.bf16.gmra.mrb[0].mxu0 %v2041
  %v2301 = vpop.f32.mrb[0].mxu0
  %v2302 = vadd.f32 %v2074, %v2301
  %v2303 = vpop.f32.mrb[0].mxu0
  %v2304 = vpop.f32.mrb[0].mxu0
  %v2305 = vadd.f32 %v2074, %v2304
  %v2306 = vpop.f32.mrb[0].mxu0
  %2307 = vmatprep.mubr.bf16.mxu0 0
  %2308 = vmatmul.mubr.bf16.gmra.mrb[0].mxu0 %v2042
  %v2309 = vpop.f32.mrb[0].mxu0
  %v2310 = vadd.f32 %v2074, %v2309
  %v2311 = vpop.f32.mrb[0].mxu0
  %v2312 = vpop.f32.mrb[0].mxu0
  %v2313 = vadd.f32 %v2074, %v2312
  %v2314 = vpop.f32.mrb[0].mxu0
  %2315 = vmatprep.mubr.bf16.mxu0 0
  %2316 = vmatmul.mubr.bf16.gmra.mrb[0].mxu0 %v2043
  %v2317 = vpop.f32.mrb[0].mxu0
  %v2318 = vadd.f32 %v2074, %v2317
  %v2319 = vpop.f32.mrb[0].mxu0
  %v2320 = vpop.f32.mrb[0].mxu0
  %v2321 = vadd.f32 %v2074, %v2320
  %v2322 = vpop.f32.mrb[0].mxu0
  %2323 = vmatprep.mubr.bf16.mxu0 0
  %2324 = vmatmul.mubr.bf16.gmra.mrb[0].mxu0 %v2044
  %v2325 = vpop.f32.mrb[0].mxu0
  %v2326 = vadd.f32 %v2074, %v2325
  %v2327 = vpop.f32.mrb[0].mxu0
  %v2328 = vpop.f32.mrb[0].mxu0
  %v2329 = vadd.f32 %v2074, %v2328
  %v2330 = vpop.f32.mrb[0].mxu0
  %2331 = vmatprep.mubr.bf16.mxu0 0
  %2332 = vmatmul.mubr.bf16.gmra.mrb[0].mxu0 %v2045
  %v2333 = vpop.f32.mrb[0].mxu0
  %v2334 = vadd.f32 %v2074, %v2333
  %v2335 = vpop.f32.mrb[0].mxu0
  %v2336 = vpop.f32.mrb[0].mxu0
  %v2337 = vadd.f32 %v2074, %v2336
  %v2338 = vpop.f32.mrb[0].mxu0
  %2339 = vmatprep.mubr.bf16.mxu0 0
  %2340 = vmatmul.mubr.bf16.gmra.mrb[0].mxu0 %v2046
  %v2341 = vpop.f32.mrb[0].mxu0
  %v2342 = vadd.f32 %v2074, %v2341
  %v2343 = vpop.f32.mrb[0].mxu0
  %v2344 = vpop.f32.mrb[0].mxu0
  %v2345 = vadd.f32 %v2074, %v2344
  %v2346 = vpop.f32.mrb[0].mxu0
  %2347 = vmatprep.mubr.bf16.mxu0 0
  %2348 = vmatmul.mubr.bf16.gmra.mrb[0].mxu0 %v2047
  %v2349 = vpop.f32.mrb[0].mxu0
  %v2350 = vadd.f32 %v2074, %v2349
  %v2351 = vpop.f32.mrb[0].mxu0
  %v2352 = vpop.f32.mrb[0].mxu0
  %v2353 = vadd.f32 %v2074, %v2352
  %v2354 = vpop.f32.mrb[0].mxu0
  %2355 = vmatprep.mubr.bf16.mxu0 0
  %2356 = vmatmul.mubr.bf16.gmra.mrb[0].mxu0 %v2048
  %v2357 = vpop.f32.mrb[0].mxu0
  %v2358 = vadd.f32 %v2074, %v2357
  %v2359 = vpop.f32.mrb[0].mxu0
  %v2360 = vpop.f32.mrb[0].mxu0
  %v2361 = vadd.f32 %v2074, %v2360
  %v2362 = vpop.f32.mrb[0].mxu0
  %2363 = vmatprep.mubr.bf16.mxu0 0
  %2364 = vmatmul.mubr.bf16.gmra.mrb[0].mxu0 %v2049
  %v2365 = vpop.f32.mrb[0].mxu0
  %v2366 = vadd.f32 %v2074, %v2365
  %v2367 = vpop.f32.mrb[0].mxu0
  %v2368 = vpop.f32.mrb[0].mxu0
  %v2369 = vadd.f32 %v2074, %v2368
  %v2370 = vpop.f32.mrb[0].mxu0
  %2371 = vmatprep.mubr.bf16.mxu0 0
  %2372 = vmatmul.mubr.bf16.gmra.mrb[0].mxu0 %v2050
  %v2373 = vpop.f32.mrb[0].mxu0
  %v2374 = vadd.f32 %v2074, %v2373
  %v2375 = vpop.f32.mrb[0].mxu0
  %v2376 = vpop.f32.mrb[0].mxu0
  %v2377 = vadd.f32 %v2074, %v2376
  %v2378 = vpop.f32.mrb[0].mxu0
  %2379 = vmatprep.mubr.bf16.mxu0 0
  %2380 = vmatmul.mubr.bf16.gmra.mrb[0].mxu0 %v2051
  %v2381 = vpop.f32.mrb[0].mxu0
  %v2382 = vadd.f32 %v2074, %v2381
  %v2383 = vpop.f32.mrb[0].mxu0
  %v2384 = vpop.f32.mrb[0].mxu0
  %v2385 = vadd.f32 %v2074, %v2384
  %v2386 = vpop.f32.mrb[0].mxu0
  %2387 = vmatprep.mubr.bf16.mxu0 0
  %2388 = vmatmul.mubr.bf16.gmra.mrb[0].mxu0 %v2052
  %v2389 = vpop.f32.mrb[0].mxu0
  %v2390 = vadd.f32 %v2074, %v2389
  %v2391 = vpop.f32.mrb[0].mxu0
  %v2392 = vpop.f32.mrb[0].mxu0
  %v2393 = vadd.f32 %v2074, %v2392
  %v2394 = vpop.f32.mrb[0].mxu0
  %2395 = vmatprep.mubr.bf16.mxu0 0
  %2396 = vmatmul.mubr.bf16.gmra.mrb[0].mxu0 %v2053
  %v2397 = vpop.f32.mrb[0].mxu0
  %v2398 = vadd.f32 %v2074, %v2397
  %v2399 = vpop.f32.mrb[0].mxu0
  %v2400 = vpop.f32.mrb[0].mxu0
  %v2401 = vadd.f32 %v2074, %v2400
  %v2402 = vpop.f32.mrb[0].mxu0
  %2403 = vmatprep.mubr.bf16.mxu0 0
  %2404 = vmatmul.mubr.bf16.gmra.mrb[0].mxu0 %v2054
  %v2405 = vpop.f32.mrb[0].mxu0
  %v2406 = vadd.f32 %v2074, %v2405
  %v2407 = vpop.f32.mrb[0].mxu0
  %v2408 = vpop.f32.mrb[0].mxu0
  %v2409 = vadd.f32 %v2074, %v2408
  %v2410 = vpop.f32.mrb[0].mxu0
  %2411 = vdwg.mxu0
  %v2412 = vpack.c.bf16 %v2161, %v2158
  %v2413 = vpack.c.bf16 %v2169, %v2166
  %v2414 = vpack.c.bf16 %v2177, %v2174
  %v2415 = vpack.c.bf16 %v2185, %v2182
  %v2416 = vpack.c.bf16 %v2193, %v2190
  %v2417 = vpack.c.bf16 %v2201, %v2198
  %v2418 = vpack.c.bf16 %v2209, %v2206
  %v2419 = vpack.c.bf16 %v2217, %v2214
  %v2420 = vpack.c.bf16 %v2225, %v2222
  %v2421 = vpack.c.bf16 %v2233, %v2230
  %v2422 = vpack.c.bf16 %v2241, %v2238
  %v2423 = vpack.c.bf16 %v2249, %v2246
  %v2424 = vpack.c.bf16 %v2257, %v2254
  %v2425 = vpack.c.bf16 %v2265, %v2262
  %v2426 = vpack.c.bf16 %v2273, %v2270
  %v2427 = vpack.c.bf16 %v2281, %v2278
  %v2428 = vpack.c.bf16 %v2289, %v2286
  %v2429 = vpack.c.bf16 %v2297, %v2294
  %v2430 = vpack.c.bf16 %v2305, %v2302
  %v2431 = vpack.c.bf16 %v2313, %v2310
  %v2432 = vpack.c.bf16 %v2321, %v2318
  %v2433 = vpack.c.bf16 %v2329, %v2326
  %v2434 = vpack.c.bf16 %v2337, %v2334
  %v2435 = vpack.c.bf16 %v2345, %v2342
  %v2436 = vpack.c.bf16 %v2353, %v2350
  %v2437 = vpack.c.bf16 %v2361, %v2358
  %v2438 = vpack.c.bf16 %v2369, %v2366
  %v2439 = vpack.c.bf16 %v2377, %v2374
  %v2440 = vpack.c.bf16 %v2385, %v2382
  %v2441 = vpack.c.bf16 %v2393, %v2390
  %v2442 = vpack.c.bf16 %v2401, %v2398
  %v2443 = vpack.c.bf16 %v2409, %v2406
  %v2476 = vunpack.c.l.b16 %v2412
  %v2477 = vunpack.c.h.b16 %v2412
  %v2478 = vunpack.c.l.b16 %v2413
  %v2479 = vunpack.c.h.b16 %v2413
  %v2480 = vunpack.c.l.b16 %v2414
  %v2481 = vunpack.c.h.b16 %v2414
  %v2482 = vunpack.c.l.b16 %v2415
  %v2483 = vunpack.c.h.b16 %v2415
  %v2484 = vunpack.c.l.b16 %v2416
  %v2485 = vunpack.c.h.b16 %v2416
  %v2486 = vunpack.c.l.b16 %v2417
  %v2487 = vunpack.c.h.b16 %v2417
  %v2488 = vunpack.c.l.b16 %v2418
  %v2489 = vunpack.c.h.b16 %v2418
  %v2490 = vunpack.c.l.b16 %v2419
  %v2491 = vunpack.c.h.b16 %v2419
  %v2492 = vunpack.c.l.b16 %v2420
  %v2493 = vunpack.c.h.b16 %v2420
  %v2494 = vunpack.c.l.b16 %v2421
  %v2495 = vunpack.c.h.b16 %v2421
  %v2496 = vunpack.c.l.b16 %v2422
  %v2497 = vunpack.c.h.b16 %v2422
  %v2498 = vunpack.c.l.b16 %v2423
  %v2499 = vunpack.c.h.b16 %v2423
  %v2500 = vunpack.c.l.b16 %v2424
  %v2501 = vunpack.c.h.b16 %v2424
  %v2502 = vunpack.c.l.b16 %v2425
  %v2503 = vunpack.c.h.b16 %v2425
  %v2504 = vunpack.c.l.b16 %v2426
  %v2505 = vunpack.c.h.b16 %v2426
  %v2506 = vunpack.c.l.b16 %v2427
  %v2507 = vunpack.c.h.b16 %v2427
  %v2508 = vunpack.c.l.b16 %v2428
  %v2509 = vunpack.c.h.b16 %v2428
  %v2510 = vunpack.c.l.b16 %v2429
  %v2511 = vunpack.c.h.b16 %v2429
  %v2512 = vunpack.c.l.b16 %v2430
  %v2513 = vunpack.c.h.b16 %v2430
  %v2514 = vunpack.c.l.b16 %v2431
  %v2515 = vunpack.c.h.b16 %v2431
  %v2516 = vunpack.c.l.b16 %v2432
  %v2517 = vunpack.c.h.b16 %v2432
  %v2518 = vunpack.c.l.b16 %v2433
  %v2519 = vunpack.c.h.b16 %v2433
  %v2520 = vunpack.c.l.b16 %v2434
  %v2521 = vunpack.c.h.b16 %v2434
  %v2522 = vunpack.c.l.b16 %v2435
  %v2523 = vunpack.c.h.b16 %v2435
  %v2524 = vunpack.c.l.b16 %v2436
  %v2525 = vunpack.c.h.b16 %v2436
  %v2526 = vunpack.c.l.b16 %v2437
  %v2527 = vunpack.c.h.b16 %v2437
  %v2528 = vunpack.c.l.b16 %v2438
  %v2529 = vunpack.c.h.b16 %v2438
  %v2530 = vunpack.c.l.b16 %v2439
  %v2531 = vunpack.c.h.b16 %v2439
  %v2532 = vunpack.c.l.b16 %v2440
  %v2533 = vunpack.c.h.b16 %v2440
  %v2534 = vunpack.c.l.b16 %v2441
  %v2535 = vunpack.c.h.b16 %v2441
  %v2536 = vunpack.c.l.b16 %v2442
  %v2537 = vunpack.c.h.b16 %v2442
  %v2538 = vunpack.c.l.b16 %v2443
  %v2539 = vunpack.c.h.b16 %v2443
  %v2540 = vpack.c.b16 %v2476, %v2476
  %v2541 = vpack.c.b16 %v2477, %v2477
  %v2542 = vpack.c.b16 %v2478, %v2478
  %v2543 = vpack.c.b16 %v2479, %v2479
  %v2544 = vpack.c.b16 %v2480, %v2480
  %v2545 = vpack.c.b16 %v2481, %v2481
  %v2546 = vpack.c.b16 %v2482, %v2482
  %v2547 = vpack.c.b16 %v2483, %v2483
  %v2548 = vpack.c.b16 %v2484, %v2484
  %v2549 = vpack.c.b16 %v2485, %v2485
  %v2550 = vpack.c.b16 %v2486, %v2486
  %v2551 = vpack.c.b16 %v2487, %v2487
  %v2552 = vpack.c.b16 %v2488, %v2488
  %v2553 = vpack.c.b16 %v2489, %v2489
  %v2554 = vpack.c.b16 %v2490, %v2490
  %v2555 = vpack.c.b16 %v2491, %v2491
  %v2556 = vpack.c.b16 %v2492, %v2492
  %v2557 = vpack.c.b16 %v2493, %v2493
  %v2558 = vpack.c.b16 %v2494, %v2494
  %v2559 = vpack.c.b16 %v2495, %v2495
  %v2560 = vpack.c.b16 %v2496, %v2496
  %v2561 = vpack.c.b16 %v2497, %v2497
  %v2562 = vpack.c.b16 %v2498, %v2498
  %v2563 = vpack.c.b16 %v2499, %v2499
  %v2564 = vpack.c.b16 %v2500, %v2500
  %v2565 = vpack.c.b16 %v2501, %v2501
  %v2566 = vpack.c.b16 %v2502, %v2502
  %v2567 = vpack.c.b16 %v2503, %v2503
  %v2568 = vpack.c.b16 %v2504, %v2504
  %v2569 = vpack.c.b16 %v2505, %v2505
  %v2570 = vpack.c.b16 %v2506, %v2506
  %v2571 = vpack.c.b16 %v2507, %v2507
  %v2572 = vpack.c.b16 %v2508, %v2508
  %v2573 = vpack.c.b16 %v2509, %v2509
  %v2574 = vpack.c.b16 %v2510, %v2510
  %v2575 = vpack.c.b16 %v2511, %v2511
  %v2576 = vpack.c.b16 %v2512, %v2512
  %v2577 = vpack.c.b16 %v2513, %v2513
  %v2578 = vpack.c.b16 %v2514, %v2514
  %v2579 = vpack.c.b16 %v2515, %v2515
  %v2580 = vpack.c.b16 %v2516, %v2516
  %v2581 = vpack.c.b16 %v2517, %v2517
  %v2582 = vpack.c.b16 %v2518, %v2518
  %v2583 = vpack.c.b16 %v2519, %v2519
  %v2584 = vpack.c.b16 %v2520, %v2520
  %v2585 = vpack.c.b16 %v2521, %v2521
  %v2586 = vpack.c.b16 %v2522, %v2522
  %v2587 = vpack.c.b16 %v2523, %v2523
  %v2588 = vpack.c.b16 %v2524, %v2524
  %v2589 = vpack.c.b16 %v2525, %v2525
  %v2590 = vpack.c.b16 %v2526, %v2526
  %v2591 = vpack.c.b16 %v2527, %v2527
  %v2592 = vpack.c.b16 %v2528, %v2528
  %v2593 = vpack.c.b16 %v2529, %v2529
  %v2594 = vpack.c.b16 %v2530, %v2530
  %v2595 = vpack.c.b16 %v2531, %v2531
  %v2596 = vpack.c.b16 %v2532, %v2532
  %v2597 = vpack.c.b16 %v2533, %v2533
  %v2598 = vpack.c.b16 %v2534, %v2534
  %v2599 = vpack.c.b16 %v2535, %v2535
  %v2600 = vpack.c.b16 %v2536, %v2536
  %v2601 = vpack.c.b16 %v2537, %v2537
  %v2602 = vpack.c.b16 %v2538, %v2538
  %v2603 = vpack.c.b16 %v2539, %v2539
  %2668 = vst [vmem:[%s7] sm:$0xf] %v2540
  %2669 = vst [vmem:[%s7 + $0x4] sm:$0xf] %v2541
  %2670 = vst [vmem:[%s7 + $0x8] sm:$0xf] %v2542
  %2671 = vst [vmem:[%s7 + $0xc] sm:$0xf] %v2543
  %2672 = vst [vmem:[%s7 + $0x10] sm:$0xf] %v2544
  %2673 = vst [vmem:[%s7 + $0x14] sm:$0xf] %v2545
  %2674 = vst [vmem:[%s7 + $0x18] sm:$0xf] %v2546
  %2675 = vst [vmem:[%s7 + $0x1c] sm:$0xf] %v2547
  %2676 = vst [vmem:[%s7 + $0x20] sm:$0xf] %v2548
  %2677 = vst [vmem:[%s7 + $0x24] sm:$0xf] %v2549
  %2678 = vst [vmem:[%s7 + $0x28] sm:$0xf] %v2550
  %2679 = vst [vmem:[%s7 + $0x2c] sm:$0xf] %v2551
  %2680 = vst [vmem:[%s7 + $0x30] sm:$0xf] %v2552
  %2681 = vst [vmem:[%s7 + $0x34] sm:$0xf] %v2553
  %2682 = vst [vmem:[%s7 + $0x38] sm:$0xf] %v2554
  %2683 = vst [vmem:[%s7 + $0x3c] sm:$0xf] %v2555
  %2684 = vst [vmem:[%s7 + $0x40] sm:$0xf] %v2556
  %2685 = vst [vmem:[%s7 + $0x44] sm:$0xf] %v2557
  %2686 = vst [vmem:[%s7 + $0x48] sm:$0xf] %v2558
  %2687 = vst [vmem:[%s7 + $0x4c] sm:$0xf] %v2559
  %2688 = vst [vmem:[%s7 + $0x50] sm:$0xf] %v2560
  %2689 = vst [vmem:[%s7 + $0x54] sm:$0xf] %v2561
  %2690 = vst [vmem:[%s7 + $0x58] sm:$0xf] %v2562
  %2691 = vst [vmem:[%s7 + $0x5c] sm:$0xf] %v2563
  %2692 = vst [vmem:[%s7 + $0x60] sm:$0xf] %v2564
  %2693 = vst [vmem:[%s7 + $0x64] sm:$0xf] %v2565
  %2694 = vst [vmem:[%s7 + $0x68] sm:$0xf] %v2566
  %2695 = vst [vmem:[%s7 + $0x6c] sm:$0xf] %v2567
  %2696 = vst [vmem:[%s7 + $0x70] sm:$0xf] %v2568
  %2697 = vst [vmem:[%s7 + $0x74] sm:$0xf] %v2569
  %2698 = vst [vmem:[%s7 + $0x78] sm:$0xf] %v2570
  %2699 = vst [vmem:[%s7 + $0x7c] sm:$0xf] %v2571
  %2700 = vst [vmem:[%s7 + $0x80] sm:$0xf] %v2572
  %2701 = vst [vmem:[%s7 + $0x84] sm:$0xf] %v2573
  %2702 = vst [vmem:[%s7 + $0x88] sm:$0xf] %v2574
  %2703 = vst [vmem:[%s7 + $0x8c] sm:$0xf] %v2575
  %2704 = vst [vmem:[%s7 + $0x90] sm:$0xf] %v2576
  %2705 = vst [vmem:[%s7 + $0x94] sm:$0xf] %v2577
  %2706 = vst [vmem:[%s7 + $0x98] sm:$0xf] %v2578
  %2707 = vst [vmem:[%s7 + $0x9c] sm:$0xf] %v2579
  %2708 = vst [vmem:[%s7 + $0xa0] sm:$0xf] %v2580
  %2709 = vst [vmem:[%s7 + $0xa4] sm:$0xf] %v2581
  %2710 = vst [vmem:[%s7 + $0xa8] sm:$0xf] %v2582
  %2711 = vst [vmem:[%s7 + $0xac] sm:$0xf] %v2583
  %2712 = vst [vmem:[%s7 + $0xb0] sm:$0xf] %v2584
  %2713 = vst [vmem:[%s7 + $0xb4] sm:$0xf] %v2585
  %2714 = vst [vmem:[%s7 + $0xb8] sm:$0xf] %v2586
  %2715 = vst [vmem:[%s7 + $0xbc] sm:$0xf] %v2587
  %2716 = vst [vmem:[%s7 + $0xc0] sm:$0xf] %v2588
  %2717 = vst [vmem:[%s7 + $0xc4] sm:$0xf] %v2589
  %2718 = vst [vmem:[%s7 + $0xc8] sm:$0xf] %v2590
  %2719 = vst [vmem:[%s7 + $0xcc] sm:$0xf] %v2591
  %2720 = vst [vmem:[%s7 + $0xd0] sm:$0xf] %v2592
  %2721 = vst [vmem:[%s7 + $0xd4] sm:$0xf] %v2593
  %2722 = vst [vmem:[%s7 + $0xd8] sm:$0xf] %v2594
  %2723 = vst [vmem:[%s7 + $0xdc] sm:$0xf] %v2595
  %2724 = vst [vmem:[%s7 + $0xe0] sm:$0xf] %v2596
  %2725 = vst [vmem:[%s7 + $0xe4] sm:$0xf] %v2597
  %2726 = vst [vmem:[%s7 + $0xe8] sm:$0xf] %v2598
  %2727 = vst [vmem:[%s7 + $0xec] sm:$0xf] %v2599
  %2728 = vst [vmem:[%s7 + $0xf0] sm:$0xf] %v2600
  %2729 = vst [vmem:[%s7 + $0xf4] sm:$0xf] %v2601
  %2730 = vst [vmem:[%s7 + $0xf8] sm:$0xf] %v2602
  %2731 = vst [vmem:[%s7 + $0xfc] sm:$0xf] %v2603
  // Predicated region
  $region30: #{sghrq_forward.3} parent=0 // pred_check
    _
  $region31: #{sghrq_forward.3} parent=0 // pred_check_branch
    %2733 = sbr.rel (0) target = $region33
  $region32: #{sghrq_forward.3} parent=0 // pred_region
    _
  $region33: #{sghrq_forward.3} parent=0 // pred_fallthru
    _
  // Predicated region
  $region34: #{sghrq_forward.3} parent=0 // pred_check
    _
  $region35: #{sghrq_forward.3} parent=0 // pred_check_branch
    %2735 = sbr.rel (0) target = $region37
  $region36: #{sghrq_forward.3} parent=0 // pred_region
    _
  $region37: #{sghrq_forward.3} parent=0 // pred_fallthru
    _

</llo_original>
